<compile_context>
chip_gen: v7x
topology: tpu7x:2x2x1
jax: 0.10.0
libtpu: 0.0.40
codegen_flags: <defaults>
</compile_context>

<pallas_src>
import numpy as np
import jax
import jax.numpy as jnp
from jax.experimental import pallas as pl
from jax.experimental.pallas import tpu as pltpu

# ---- module hyper-parameters (this HybridVoxelNeuralField instance) ----
RES_D, RES_H, RES_W = 16, 16, 16        # resolution_per_dim (D, H, W)
FEATURE_DIM = 32                        # feature_dim: grid channels == MLP width
OUT_DIM = 16                            # out_dim
MAX_TILE = 2048                         # review: 1024-2048; VMEM/step ~3 MiB << 32 MiB scoped


# =============================== Pallas kernel ===============================

def mlp_kernel(x_ref, w_ref, b_ref, o_ref):
    """4-layer MLP (Linear/ReLU x3 + Linear) on one (TILE, C) bf16 feature block.

    x_ref : (TILE, C)        bf16  trilinearly interpolated grid features
    w_ref : (C, 3C+OUT)      bf16  [W1 | W2 | W3 | W4] packed along lanes
    b_ref : (1, 3C+OUT)      f32   [b1 | b2 | b3 | b4] packed along lanes
    o_ref : (TILE, OUT)      f32
    """
    C = FEATURE_DIM

    def layer(h_bf16, lo, hi, relu):
        # bf16 x bf16 MXU matmul with f32 accumulation; f32 bias add.
        y = jnp.dot(h_bf16, w_ref[:, lo:hi],
                    preferred_element_type=jnp.float32) + b_ref[:, lo:hi]
        if relu:
            return jnp.maximum(y, 0.0).astype(jnp.bfloat16)
        return y

    h = layer(x_ref[...], 0, C, relu=True)
    h = layer(h, C, 2 * C, relu=True)
    h = layer(h, 2 * C, 3 * C, relu=True)
    o_ref[...] = layer(h, 3 * C, 3 * C + OUT_DIM, relu=False)


def mlp_field_pallas(feats, w_pack, b_pack, *, tile):
    """feats (Np, C) bf16, Np % tile == 0 -> (Np, OUT_DIM) f32."""
    Np, C = feats.shape
    assert Np % tile == 0 and tile % 8 == 0

    def const_spec(shape):                 # whole-array (constant) block -> single DMA
        return pl.BlockSpec(shape, lambda i: (0, 0))

    return pl.pallas_call(
        mlp_kernel,
        out_shape=jax.ShapeDtypeStruct((Np, OUT_DIM), jnp.float32),
        grid_spec=pltpu.PrefetchScalarGridSpec(
            num_scalar_prefetch=0,
            grid=(Np // tile,),
            in_specs=[
                pl.BlockSpec((tile, C), lambda i: (i, 0)),   # bf16 interpolated features
                const_spec(w_pack.shape),                    # packed bf16 weights
                const_spec(b_pack.shape),                    # packed f32 biases
            ],
            out_specs=pl.BlockSpec((tile, OUT_DIM), lambda i: (i, 0)),
        ),
        compiler_params=pltpu.CompilerParams(
            dimension_semantics=("parallel",)),              # shards steps across TCs on v7x
    )(feats, w_pack, b_pack)


# ========================= grid_sample glue (JAX / XLA) ======================

def grid_sample_corners(coords):
    """coords (N,3) in [-1,1] with PyTorch (x,y,z)->(W,H,D) order.

    Returns flat corner indices (N,8) int32 into the (D*H*W, C) voxel table and
    trilinear weights (N,8) f32, matching F.grid_sample(mode='bilinear',
    padding_mode='zeros', align_corners=False)."""
    ix = (coords[:, 0] + 1.0) * (0.5 * RES_W) - 0.5
    iy = (coords[:, 1] + 1.0) * (0.5 * RES_H) - 0.5
    iz = (coords[:, 2] + 1.0) * (0.5 * RES_D) - 0.5
    x0f, y0f, z0f = jnp.floor(ix), jnp.floor(iy), jnp.floor(iz)
    fx, fy, fz = ix - x0f, iy - y0f, iz - z0f
    x0, y0, z0 = x0f.astype(jnp.int32), y0f.astype(jnp.int32), z0f.astype(jnp.int32)

    idx_list, w_list = [], []
    for c in range(8):
        dx, dy, dz = c & 1, (c >> 1) & 1, (c >> 2) & 1
        xc, yc, zc = x0 + dx, y0 + dy, z0 + dz
        wx = fx if dx else (1.0 - fx)
        wy = fy if dy else (1.0 - fy)
        wz = fz if dz else (1.0 - fz)
        w = wx * wy * wz
        inb = ((xc >= 0) & (xc < RES_W) & (yc >= 0) & (yc < RES_H)
               & (zc >= 0) & (zc < RES_D))
        w = jnp.where(inb, w, 0.0)                         # padding_mode='zeros'
        xc = jnp.clip(xc, 0, RES_W - 1)
        yc = jnp.clip(yc, 0, RES_H - 1)
        zc = jnp.clip(zc, 0, RES_D - 1)
        idx_list.append((zc * RES_H + yc) * RES_W + xc)
        w_list.append(w)
    return jnp.stack(idx_list, axis=1), jnp.stack(w_list, axis=1).astype(jnp.float32)


def trilinear_sample(grid, coords):
    """grid (1,C,D,H,W) f32, coords (N,3) -> (N, C) bf16 interpolated features.

    The gather, the per-corner trilinear scaling, the 8-way sum and the bf16
    convert all live in one XLA fusion, so only the (N, C) bf16 result is
    materialized in HBM as the Pallas kernel's input stream."""
    C = grid.shape[1]
    idx, w = grid_sample_corners(coords)                            # (N,8), (N,8)
    table = jnp.transpose(grid[0], (1, 2, 3, 0)).reshape(-1, C)     # (V, C) f32
    sampled = jnp.sum(table[idx] * w[:, :, None], axis=1)           # (N, C) f32 interp
    return sampled.astype(jnp.bfloat16)


def pack_mlp_params(mlp_params):
    """Pack 8 MLP parameter arrays into one bf16 weight slab and one f32 bias slab."""
    W1, b1, W2, b2, W3, b3, W4, b4 = mlp_params
    w_pack = jnp.concatenate([W1, W2, W3, W4], axis=1).astype(jnp.bfloat16)  # (C, 3C+OUT)
    b_pack = jnp.concatenate([b1, b2, b3, b4], axis=1).astype(jnp.float32)   # (1, 3C+OUT)
    return w_pack, b_pack


def _pick_tile(n_points):
    """Largest tile <= MAX_TILE that still gives >= 2 grid steps (v7x: 2 TensorCores)."""
    for t in (2048, 1024, 512, 256, 128):
        if t <= MAX_TILE and pl.cdiv(n_points, t) >= 2:
            return t
    return 128


# ================================= forward ===================================

def hybrid_voxel_neural_field(coordinate, grid, mlp_params, *, tile=None):
    B, P, _ = coordinate.shape
    coords = coordinate.reshape(-1, 3)                     # == coordinate flattened over (B,P)
    N = coords.shape[0]
    t = _pick_tile(N) if tile is None else tile
    n_pad = (-N) % t
    if n_pad:
        # Pad BEFORE the gather (12 B/pt on coords) instead of padding the feature stream.
        coords = jnp.pad(coords, ((0, n_pad), (0, 0)))
    feats = trilinear_sample(grid, coords)                 # (Np, C) bf16, Np % t == 0
    w_pack, b_pack = pack_mlp_params(mlp_params)
    out = mlp_field_pallas(feats, w_pack, b_pack, tile=t)
    return out[:N].reshape(B, P, OUT_DIM)


def reference_forward(coordinate, grid, mlp_params):
    """Pure-JAX f32 reference (grid_sample equivalent + MLP)."""
    W1, b1, W2, b2, W3, b3, W4, b4 = mlp_params
    B, P, _ = coordinate.shape
    coords = coordinate.reshape(-1, 3)
    idx, w = grid_sample_corners(coords)
    C = grid.shape[1]
    table = jnp.transpose(grid[0], (1, 2, 3, 0)).reshape(-1, C)
    sampled = jnp.sum(table[idx] * w[:, :, None], axis=1)  # (N, C) trilinear interp
    hp = jax.lax.Precision.HIGHEST
    h = jnp.maximum(jnp.dot(sampled, W1, precision=hp) + b1, 0.0)
    h = jnp.maximum(jnp.dot(h, W2, precision=hp) + b2, 0.0)
    h = jnp.maximum(jnp.dot(h, W3, precision=hp) + b3, 0.0)
    out = jnp.dot(h, W4, precision=hp) + b4
    return out.reshape(B, P, OUT_DIM)


if __name__ == "__main__":
    key = jax.random.PRNGKey(0)
    k_coord, k_grid, k1, k2, k3, k4 = jax.random.split(key, 6)

    # grid_sample requires the coordinate batch to match the grid's batch (=1).
    B, P = 1, 2048
    coordinate = jax.random.uniform(k_coord, (B, P, 3), jnp.float32, minval=-1.0, maxval=1.0)

    # Deterministic "checkpoint": grid ~ 0.1*N(0,1); Linear weights kaiming(fan_in, relu); bias 0.
    grid = jax.random.normal(k_grid, (1, FEATURE_DIM, RES_D, RES_H, RES_W), jnp.float32) * 0.1

    def kaiming(k, fan_in, fan_out):
        return jax.random.normal(k, (fan_in, fan_out), jnp.float32) * np.sqrt(2.0 / fan_in)

    W1 = kaiming(k1, FEATURE_DIM, FEATURE_DIM); b1 = jnp.zeros((1, FEATURE_DIM), jnp.float32)
    W2 = kaiming(k2, FEATURE_DIM, FEATURE_DIM); b2 = jnp.zeros((1, FEATURE_DIM), jnp.float32)
    W3 = kaiming(k3, FEATURE_DIM, FEATURE_DIM); b3 = jnp.zeros((1, FEATURE_DIM), jnp.float32)
    W4 = kaiming(k4, FEATURE_DIM, OUT_DIM);     b4 = jnp.zeros((1, OUT_DIM), jnp.float32)
    mlp_params = (W1, b1, W2, b2, W3, b3, W4, b4)

    fwd = jax.jit(hybrid_voxel_neural_field)
    out = jax.block_until_ready(fwd(coordinate, grid, mlp_params))
    assert out.shape == (B, P, OUT_DIM)

    ref = jax.block_until_ready(reference_forward(coordinate, grid, mlp_params))
    # Kernel path uses bf16 features + bf16 MXU operands -> bf16-level tolerance.
    np.testing.assert_allclose(np.asarray(out), np.asarray(ref), rtol=2e-2, atol=5e-3)

    print("KERNEL_OK")
</pallas_src>

<mosaic_0001>
module attributes {stable_mosaic.version = 11 : i64} {
  func.func @mlp_kernel(%arg0: i32, %arg1: memref<1024x32xbf16, #tpu.memory_space<vmem>>, %arg2: memref<32x112xbf16, #tpu.memory_space<vmem>>, %arg3: memref<1x112xf32, #tpu.memory_space<vmem>>, %arg4: memref<1024x16xf32, #tpu.memory_space<vmem>>) attributes {dimension_semantics = [#tpu.dimension_semantics<parallel>], iteration_bounds = array<i64: 2>, scalar_prefetch = 0 : i64, scratch_operands = 0 : i64, tpu.core_type = #tpu.core_type<tc>, window_params = [{transform_indices = @transform_0, window_bounds = array<i64: 1024, 32>}, {pipeline_mode = #tpu.pipeline_mode<synchronous>, transform_indices = @transform_1, window_bounds = array<i64: 32, 112>}, {pipeline_mode = #tpu.pipeline_mode<synchronous>, transform_indices = @transform_2, window_bounds = array<i64: 1, 112>}, {transform_indices = @transform_3, window_bounds = array<i64: 1024, 16>}]} {
    %c0 = arith.constant 0 : index
    %c0_0 = arith.constant 0 : index
    %0 = vector.load %arg1[%c0, %c0_0] : memref<1024x32xbf16, #tpu.memory_space<vmem>>, vector<1024x32xbf16>
    %c0_1 = arith.constant 0 : index
    %c0_2 = arith.constant 0 : index
    %1 = vector.load %arg2[%c0_1, %c0_2] : memref<32x112xbf16, #tpu.memory_space<vmem>>, vector<32x32xbf16>
    %cst = arith.constant dense<0.000000e+00> : vector<1024x32xf32>
    %2 = tpu.matmul %0, %1, %cst {dimension_numbers = #tpu.dot_dimension_numbers<[1], [0], [0], [1], [0, 0, 1, 1], [], []>} : vector<1024x32xbf16>, vector<32x32xbf16>, vector<1024x32xf32> -> vector<1024x32xf32>
    %c0_3 = arith.constant 0 : index
    %c0_4 = arith.constant 0 : index
    %3 = vector.load %arg3[%c0_3, %c0_4] : memref<1x112xf32, #tpu.memory_space<vmem>>, vector<1x32xf32>
    %4 = vector.broadcast %3 : vector<1x32xf32> to vector<1024x32xf32>
    %5 = arith.addf %2, %4 : vector<1024x32xf32>
    %cst_5 = arith.constant 0.000000e+00 : f32
    %6 = vector.broadcast %cst_5 : f32 to vector<1024x32xf32>
    %7 = arith.maximumf %5, %6 : vector<1024x32xf32>
    %8 = arith.truncf %7 : vector<1024x32xf32> to vector<1024x32xbf16>
    %c0_6 = arith.constant 0 : index
    %c32 = arith.constant 32 : index
    %9 = vector.load %arg2[%c0_6, %c32] : memref<32x112xbf16, #tpu.memory_space<vmem>>, vector<32x32xbf16>
    %cst_7 = arith.constant dense<0.000000e+00> : vector<1024x32xf32>
    %10 = tpu.matmul %8, %9, %cst_7 {dimension_numbers = #tpu.dot_dimension_numbers<[1], [0], [0], [1], [0, 0, 1, 1], [], []>} : vector<1024x32xbf16>, vector<32x32xbf16>, vector<1024x32xf32> -> vector<1024x32xf32>
    %c0_8 = arith.constant 0 : index
    %c32_9 = arith.constant 32 : index
    %11 = vector.load %arg3[%c0_8, %c32_9] : memref<1x112xf32, #tpu.memory_space<vmem>>, vector<1x32xf32>
    %12 = vector.broadcast %11 : vector<1x32xf32> to vector<1024x32xf32>
    %13 = arith.addf %10, %12 : vector<1024x32xf32>
    %cst_10 = arith.constant 0.000000e+00 : f32
    %14 = vector.broadcast %cst_10 : f32 to vector<1024x32xf32>
    %15 = arith.maximumf %13, %14 : vector<1024x32xf32>
    %16 = arith.truncf %15 : vector<1024x32xf32> to vector<1024x32xbf16>
    %c0_11 = arith.constant 0 : index
    %c64 = arith.constant 64 : index
    %17 = vector.load %arg2[%c0_11, %c64] : memref<32x112xbf16, #tpu.memory_space<vmem>>, vector<32x32xbf16>
    %cst_12 = arith.constant dense<0.000000e+00> : vector<1024x32xf32>
    %18 = tpu.matmul %16, %17, %cst_12 {dimension_numbers = #tpu.dot_dimension_numbers<[1], [0], [0], [1], [0, 0, 1, 1], [], []>} : vector<1024x32xbf16>, vector<32x32xbf16>, vector<1024x32xf32> -> vector<1024x32xf32>
    %c0_13 = arith.constant 0 : index
    %c64_14 = arith.constant 64 : index
    %19 = vector.load %arg3[%c0_13, %c64_14] : memref<1x112xf32, #tpu.memory_space<vmem>>, vector<1x32xf32>
    %20 = vector.broadcast %19 : vector<1x32xf32> to vector<1024x32xf32>
    %21 = arith.addf %18, %20 : vector<1024x32xf32>
    %cst_15 = arith.constant 0.000000e+00 : f32
    %22 = vector.broadcast %cst_15 : f32 to vector<1024x32xf32>
    %23 = arith.maximumf %21, %22 : vector<1024x32xf32>
    %24 = arith.truncf %23 : vector<1024x32xf32> to vector<1024x32xbf16>
    %c0_16 = arith.constant 0 : index
    %c96 = arith.constant 96 : index
    %25 = vector.load %arg2[%c0_16, %c96] : memref<32x112xbf16, #tpu.memory_space<vmem>>, vector<32x16xbf16>
    %cst_17 = arith.constant dense<0.000000e+00> : vector<1024x16xf32>
    %26 = tpu.matmul %24, %25, %cst_17 {dimension_numbers = #tpu.dot_dimension_numbers<[1], [0], [0], [1], [0, 0, 1, 1], [], []>} : vector<1024x32xbf16>, vector<32x16xbf16>, vector<1024x16xf32> -> vector<1024x16xf32>
    %c0_18 = arith.constant 0 : index
    %c96_19 = arith.constant 96 : index
    %27 = vector.load %arg3[%c0_18, %c96_19] : memref<1x112xf32, #tpu.memory_space<vmem>>, vector<1x16xf32>
    %28 = vector.broadcast %27 : vector<1x16xf32> to vector<1024x16xf32>
    %29 = arith.addf %26, %28 : vector<1024x16xf32>
    %c0_20 = arith.constant 0 : index
    %c0_21 = arith.constant 0 : index
    %30 = vector.load %arg4[%c0_20, %c0_21] : memref<1024x16xf32, #tpu.memory_space<vmem>>, vector<1024x16xf32>
    tpu.vector_store %arg4[%c0_20, %c0_21], %29 {strides = array<i32>} : memref<1024x16xf32, #tpu.memory_space<vmem>>, vector<1024x16xf32>,
    return
  }
  func.func @transform_0(%arg0: i32) -> (i32, i32) {
    %c0_i32 = arith.constant 0 : i32
    %c0_i32_0 = arith.constant 0 : i32
    return %arg0, %c0_i32 : i32, i32
  }
  func.func @transform_1(%arg0: i32) -> (i32, i32) {
    %c0_i32 = arith.constant 0 : i32
    %c0_i32_0 = arith.constant 0 : i32
    %c0_i32_1 = arith.constant 0 : i32
    return %c0_i32, %c0_i32_0 : i32, i32
  }
  func.func @transform_2(%arg0: i32) -> (i32, i32) {
    %c0_i32 = arith.constant 0 : i32
    %c0_i32_0 = arith.constant 0 : i32
    %c0_i32_1 = arith.constant 0 : i32
    return %c0_i32, %c0_i32_0 : i32, i32
  }
  func.func @transform_3(%arg0: i32) -> (i32, i32) {
    %c0_i32 = arith.constant 0 : i32
    %c0_i32_0 = arith.constant 0 : i32
    return %arg0, %c0_i32 : i32, i32
  }
}

</mosaic_0001>

<llo_original>
// kernel: hybrid_voxel_neural_field.1
$region0: #{hybrid_voxel_neural_field.1}
  #allocation0 [shape = 'u32[]', space=smem, size = 0x4, offset = 0x4, fixed_abs, tag = 'smem constant byte address 0x4 - core index']
  #allocation1 [shape = 'u32[144,128]{1,0:T(1,128)}', space=vmem, size = 0x12000, scoped, tag = 'internal scratch']
  %s0 = inlined_call_operand.vmem [shape: bf16[2048,32], index: 0, kind: input, shape index: {}]
  %s1 = inlined_call_operand.vmem [shape: bf16[32,112], index: 1, kind: input, shape index: {}]
  %s2 = inlined_call_operand.vmem [shape: f32[1,112], index: 2, kind: input, shape index: {}]
  %s3 = inlined_call_operand.vmem [shape: f32[2048,16], index: 3, kind: output, shape index: {}]
  %s4 = sld [smem:[#allocation0]]
  $region45: #{hybrid_voxel_neural_field.1} parent=0
    _
  %s6 = ssub.s32 1, %s4
  %s7 = scalar_select 0, %s6, %s4
  loop: start=0, step=1, limit=4
  $region2: #{hybrid_voxel_neural_field.1} parent=0 // loop_pre_header
    _
  $region3: #{hybrid_voxel_neural_field.1} parent=0 // loop_header
    %s9 = sphi 0, %s13
    %p10 = scmp.ge.s32.totalorder %s9, 4
    %s19 = sphi 0, %s21
    %s22 = sphi 0, %s19
    %s23 = sphi 0, %s22
    %s39 = sphi 0, %s23
    %s43 = sphi 0, %s43
    %s45 = sphi 0, %s43
    %s46 = sphi 0, %s45
    %s60 = sphi 0, %s46
    %s64 = sphi 0, %s64
    %s66 = sphi 0, %s64
    %s67 = sphi 0, %s66
    %s81 = sphi 0, %s67
    %s87 = sphi 0, %s89
    %s90 = sphi 0, %s87
    %s91 = sphi 0, %s90
    %s107 = sphi 0, %s91
  $region4: #{hybrid_voxel_neural_field.1} parent=0 // loop_header_branch
    %12 = sbr.rel (%p10) target = $region8
  $region5: #{hybrid_voxel_neural_field.1} parent=0 // loop_body
    %s14 = ssub.s32 %s9, 1
    %s15 = ssub.s32 %s9, 2
    %s16 = sadd.s32 %s9, 1
    %s17 = ssub.s32 %s9, %s16
    %p18 = scmp.eq.s32.totalorder %s17, 0
    %s20 = sadd.s32 %s19, 1
    %s21 = scalar_select %p18, %s19, %s20
    %p24 = pneg %p18
    %p25 = scmp.eq.s32.totalorder %s9, 1
    %p26 = por %p24, %p25
    %p27 = scmp.ne.s32.totalorder %s19, %s22
    %p28 = scmp.eq.s32.totalorder %s9, 0
    %p29 = por %p27, %p28
    %p30 = scmp.ne.s32.totalorder %s19, %s22
    %p31 = scmp.eq.s32.totalorder %s14, 1
    %p32 = por %p30, %p31
    %p33 = scmp.ne.s32.totalorder %s22, %s23
    %p34 = scmp.eq.s32.totalorder %s14, 0
    %p35 = por %p33, %p34
    %p36 = scmp.ne.s32.totalorder %s22, %s23
    %p37 = scmp.eq.s32.totalorder %s15, 1
    %p38 = por %p36, %p37
    %p40 = scmp.ne.s32.totalorder %s23, %s39
    %p41 = scmp.eq.s32.totalorder %s15, 0
    %p42 = por %p40, %p41
    %s44 = sadd.s32 %s43, 1
    %p47 = scmp.eq.s32.totalorder %s9, 1
    %p48 = scmp.ne.s32.totalorder %s43, %s45
    %p49 = scmp.eq.s32.totalorder %s9, 0
    %p50 = por %p48, %p49
    %p51 = scmp.ne.s32.totalorder %s43, %s45
    %p52 = scmp.eq.s32.totalorder %s14, 1
    %p53 = por %p51, %p52
    %p54 = scmp.ne.s32.totalorder %s45, %s46
    %p55 = scmp.eq.s32.totalorder %s14, 0
    %p56 = por %p54, %p55
    %p57 = scmp.ne.s32.totalorder %s45, %s46
    %p58 = scmp.eq.s32.totalorder %s15, 1
    %p59 = por %p57, %p58
    %p61 = scmp.ne.s32.totalorder %s46, %s60
    %p62 = scmp.eq.s32.totalorder %s15, 0
    %p63 = por %p61, %p62
    %s65 = sadd.s32 %s64, 1
    %p68 = scmp.eq.s32.totalorder %s9, 1
    %p69 = scmp.ne.s32.totalorder %s64, %s66
    %p70 = scmp.eq.s32.totalorder %s9, 0
    %p71 = por %p69, %p70
    %p72 = scmp.ne.s32.totalorder %s64, %s66
    %p73 = scmp.eq.s32.totalorder %s14, 1
    %p74 = por %p72, %p73
    %p75 = scmp.ne.s32.totalorder %s66, %s67
    %p76 = scmp.eq.s32.totalorder %s14, 0
    %p77 = por %p75, %p76
    %p78 = scmp.ne.s32.totalorder %s66, %s67
    %p79 = scmp.eq.s32.totalorder %s15, 1
    %p80 = por %p78, %p79
    %p82 = scmp.ne.s32.totalorder %s67, %s81
    %p83 = scmp.eq.s32.totalorder %s15, 0
    %p84 = por %p82, %p83
    %s85 = ssub.s32 %s9, %s16
    %p86 = scmp.eq.s32.totalorder %s85, 0
    %s88 = sadd.s32 %s87, 1
    %s89 = scalar_select %p86, %s87, %s88
    %p92 = pneg %p86
    %p93 = scmp.eq.s32.totalorder %s9, 1
    %p94 = por %p92, %p93
    %p95 = scmp.ne.s32.totalorder %s87, %s90
    %p96 = scmp.eq.s32.totalorder %s9, 0
    %p97 = por %p95, %p96
    %p98 = scmp.ne.s32.totalorder %s87, %s90
    %p99 = scmp.eq.s32.totalorder %s14, 1
    %p100 = por %p98, %p99
    %p101 = scmp.ne.s32.totalorder %s90, %s91
    %p102 = scmp.eq.s32.totalorder %s14, 0
    %p103 = por %p101, %p102
    %p104 = scmp.ne.s32.totalorder %s90, %s91
    %p105 = scmp.eq.s32.totalorder %s15, 1
    %p106 = por %p104, %p105
    %p108 = scmp.ne.s32.totalorder %s91, %s107
    %p109 = scmp.eq.s32.totalorder %s15, 0
    %p110 = por %p108, %p109
    %p111 = scmp.le.s32.totalorder 1, %s9
    %p112 = scmp.lt.s32.totalorder %s9, 3
    %p113 = pnand %p111, %p112
    %p114 = pneg %p113
    // Predicated region
    $region9: #{hybrid_voxel_neural_field.1} parent=5 // pred_check
      _
    $region10: #{hybrid_voxel_neural_field.1} parent=5 // pred_check_branch
      %116 = sbr.rel (%p113) target = $region12
    $region11: #{hybrid_voxel_neural_field.1} parent=5 // pred_region
      %s117 = ssub.s32 %s9, 1
      // Predicated region
      $region13: #{hybrid_voxel_neural_field.1} parent=11 // pred_check
        %p118 = pneg %p56
      $region14: #{hybrid_voxel_neural_field.1} parent=11 // pred_check_branch
        %120 = sbr.rel (%p118) target = $region16
      $region15: #{hybrid_voxel_neural_field.1} parent=11 // pred_region
        _
      $region16: #{hybrid_voxel_neural_field.1} parent=11 // pred_fallthru
        _
      // Predicated region
      $region17: #{hybrid_voxel_neural_field.1} parent=11 // pred_check
        %p121 = pneg %p77
      $region18: #{hybrid_voxel_neural_field.1} parent=11 // pred_check_branch
        %123 = sbr.rel (%p121) target = $region20
      $region19: #{hybrid_voxel_neural_field.1} parent=11 // pred_region
        _
      $region20: #{hybrid_voxel_neural_field.1} parent=11 // pred_fallthru
        _
    $region12: #{hybrid_voxel_neural_field.1} parent=5 // pred_fallthru
      _
    %p124 = scmp.lt.s32.totalorder %s9, 2
    // Predicated region
    $region21: #{hybrid_voxel_neural_field.1} parent=5 // pred_check
      %p125 = pneg %p124
    $region22: #{hybrid_voxel_neural_field.1} parent=5 // pred_check_branch
      %127 = sbr.rel (%p125) target = $region24
    $region23: #{hybrid_voxel_neural_field.1} parent=5 // pred_region
      // Predicated region
      $region25: #{hybrid_voxel_neural_field.1} parent=23 // pred_check
        %p128 = pneg %p29
      $region26: #{hybrid_voxel_neural_field.1} parent=23 // pred_check_branch
        %130 = sbr.rel (%p128) target = $region28
      $region27: #{hybrid_voxel_neural_field.1} parent=23 // pred_region
        %s131 = smul.u32 128, %s9
        %p132 = scmp.lt.s32.totalorder %s131, 255
        %s133 = scalar_select %p132, %s131, 255
        %s134 = smul.addr %s133, 4
        %s135 = scalar_lea.vmem %s0, %s134
        %s136 = smul.u32 128, %s9
      $region28: #{hybrid_voxel_neural_field.1} parent=23 // pred_fallthru
        _
    $region24: #{hybrid_voxel_neural_field.1} parent=5 // pred_fallthru
      _
    %p137 = scmp.le.s32.totalorder 1, %s9
    %p138 = scmp.lt.s32.totalorder %s9, 3
    %p139 = pnand %p137, %p138
    %p140 = pneg %p139
    // Predicated region
    $region29: #{hybrid_voxel_neural_field.1} parent=5 // pred_check
      _
    $region30: #{hybrid_voxel_neural_field.1} parent=5 // pred_check_branch
      %142 = sbr.rel (%p139) target = $region32
    $region31: #{hybrid_voxel_neural_field.1} parent=5 // pred_region
      %s143 = ssub.s32 %s9, 1
      %s144 = smul.u32 128, %s14
      %p145 = scmp.lt.s32.totalorder %s144, 255
      %s146 = scalar_select %p145, %s144, 255
      %s147 = smul.addr %s146, 4
      %s148 = scalar_lea.vmem %s0, %s147
      %p149 = pneg %p35
      %p150 = pneg %p32
      %p151 = pneg %p56
      %p152 = pneg %p53
      %p153 = pneg %p77
      %p154 = pneg %p74
      %p155 = pneg %p103
      %p156 = pneg %p100
      %s157 = smul.u32 128, %s14
      %p158 = scmp.lt.s32.totalorder %s157, 255
      %s159 = scalar_select %p158, %s157, 255
      %s160 = smul.addr %s159, 8
      %s161 = scalar_lea.vmem %s3, %s160
      %s162 = smul.u32 128, %s14
      %p163 = scmp.lt.s32.totalorder %s162, 255
      %s164 = scalar_select %p163, %s162, 255
      %s165 = smul.addr %s164, 4
      %s166 = scalar_lea.vmem %s0, %s165
      %s167 = smul.u32 128, %s14
      %s168 = smul.u32 128, %s14
      %p169 = scmp.lt.s32.totalorder %s168, 255
      %s170 = scalar_select %p169, %s168, 255
      %s171 = smul.addr %s170, 8
      %s172 = scalar_lea.vmem %s3, %s171
      %s173 = smul.u32 128, %s14
      %v175 = vld [vmem:[%s166] sm:$0xf]
      %v176 = vld [vmem:[%s166 + $0x4] sm:$0xf]
      %v177 = vld [vmem:[%s166 + $0x8] sm:$0xf]
      %v178 = vld [vmem:[%s166 + $0xc] sm:$0xf]
      %v179 = vld [vmem:[%s166 + $0x10] sm:$0xf]
      %v180 = vld [vmem:[%s166 + $0x14] sm:$0xf]
      %v181 = vld [vmem:[%s166 + $0x18] sm:$0xf]
      %v182 = vld [vmem:[%s166 + $0x1c] sm:$0xf]
      %v183 = vld [vmem:[%s166 + $0x20] sm:$0xf]
      %v184 = vld [vmem:[%s166 + $0x24] sm:$0xf]
      %v185 = vld [vmem:[%s166 + $0x28] sm:$0xf]
      %v186 = vld [vmem:[%s166 + $0x2c] sm:$0xf]
      %v187 = vld [vmem:[%s166 + $0x30] sm:$0xf]
      %v188 = vld [vmem:[%s166 + $0x34] sm:$0xf]
      %v189 = vld [vmem:[%s166 + $0x38] sm:$0xf]
      %v190 = vld [vmem:[%s166 + $0x3c] sm:$0xf]
      %v191 = vld [vmem:[%s166 + $0x40] sm:$0xf]
      %v192 = vld [vmem:[%s166 + $0x44] sm:$0xf]
      %v193 = vld [vmem:[%s166 + $0x48] sm:$0xf]
      %v194 = vld [vmem:[%s166 + $0x4c] sm:$0xf]
      %v195 = vld [vmem:[%s166 + $0x50] sm:$0xf]
      %v196 = vld [vmem:[%s166 + $0x54] sm:$0xf]
      %v197 = vld [vmem:[%s166 + $0x58] sm:$0xf]
      %v198 = vld [vmem:[%s166 + $0x5c] sm:$0xf]
      %v199 = vld [vmem:[%s166 + $0x60] sm:$0xf]
      %v200 = vld [vmem:[%s166 + $0x64] sm:$0xf]
      %v201 = vld [vmem:[%s166 + $0x68] sm:$0xf]
      %v202 = vld [vmem:[%s166 + $0x6c] sm:$0xf]
      %v203 = vld [vmem:[%s166 + $0x70] sm:$0xf]
      %v204 = vld [vmem:[%s166 + $0x74] sm:$0xf]
      %v205 = vld [vmem:[%s166 + $0x78] sm:$0xf]
      %v206 = vld [vmem:[%s166 + $0x7c] sm:$0xf]
      %v207 = vld [vmem:[%s166 + $0x80] sm:$0xf]
      %v208 = vld [vmem:[%s166 + $0x84] sm:$0xf]
      %v209 = vld [vmem:[%s166 + $0x88] sm:$0xf]
      %v210 = vld [vmem:[%s166 + $0x8c] sm:$0xf]
      %v211 = vld [vmem:[%s166 + $0x90] sm:$0xf]
      %v212 = vld [vmem:[%s166 + $0x94] sm:$0xf]
      %v213 = vld [vmem:[%s166 + $0x98] sm:$0xf]
      %v214 = vld [vmem:[%s166 + $0x9c] sm:$0xf]
      %v215 = vld [vmem:[%s166 + $0xa0] sm:$0xf]
      %v216 = vld [vmem:[%s166 + $0xa4] sm:$0xf]
      %v217 = vld [vmem:[%s166 + $0xa8] sm:$0xf]
      %v218 = vld [vmem:[%s166 + $0xac] sm:$0xf]
      %v219 = vld [vmem:[%s166 + $0xb0] sm:$0xf]
      %v220 = vld [vmem:[%s166 + $0xb4] sm:$0xf]
      %v221 = vld [vmem:[%s166 + $0xb8] sm:$0xf]
      %v222 = vld [vmem:[%s166 + $0xbc] sm:$0xf]
      %v223 = vld [vmem:[%s166 + $0xc0] sm:$0xf]
      %v224 = vld [vmem:[%s166 + $0xc4] sm:$0xf]
      %v225 = vld [vmem:[%s166 + $0xc8] sm:$0xf]
      %v226 = vld [vmem:[%s166 + $0xcc] sm:$0xf]
      %v227 = vld [vmem:[%s166 + $0xd0] sm:$0xf]
      %v228 = vld [vmem:[%s166 + $0xd4] sm:$0xf]
      %v229 = vld [vmem:[%s166 + $0xd8] sm:$0xf]
      %v230 = vld [vmem:[%s166 + $0xdc] sm:$0xf]
      %v231 = vld [vmem:[%s166 + $0xe0] sm:$0xf]
      %v232 = vld [vmem:[%s166 + $0xe4] sm:$0xf]
      %v233 = vld [vmem:[%s166 + $0xe8] sm:$0xf]
      %v234 = vld [vmem:[%s166 + $0xec] sm:$0xf]
      %v235 = vld [vmem:[%s166 + $0xf0] sm:$0xf]
      %v236 = vld [vmem:[%s166 + $0xf4] sm:$0xf]
      %v237 = vld [vmem:[%s166 + $0xf8] sm:$0xf]
      %v238 = vld [vmem:[%s166 + $0xfc] sm:$0xf]
      %v239 = vld [vmem:[%s166 + $0x100] sm:$0xf]
      %v240 = vld [vmem:[%s166 + $0x104] sm:$0xf]
      %v241 = vld [vmem:[%s166 + $0x108] sm:$0xf]
      %v242 = vld [vmem:[%s166 + $0x10c] sm:$0xf]
      %v243 = vld [vmem:[%s166 + $0x110] sm:$0xf]
      %v244 = vld [vmem:[%s166 + $0x114] sm:$0xf]
      %v245 = vld [vmem:[%s166 + $0x118] sm:$0xf]
      %v246 = vld [vmem:[%s166 + $0x11c] sm:$0xf]
      %v247 = vld [vmem:[%s166 + $0x120] sm:$0xf]
      %v248 = vld [vmem:[%s166 + $0x124] sm:$0xf]
      %v249 = vld [vmem:[%s166 + $0x128] sm:$0xf]
      %v250 = vld [vmem:[%s166 + $0x12c] sm:$0xf]
      %v251 = vld [vmem:[%s166 + $0x130] sm:$0xf]
      %v252 = vld [vmem:[%s166 + $0x134] sm:$0xf]
      %v253 = vld [vmem:[%s166 + $0x138] sm:$0xf]
      %v254 = vld [vmem:[%s166 + $0x13c] sm:$0xf]
      %v255 = vld [vmem:[%s166 + $0x140] sm:$0xf]
      %v256 = vld [vmem:[%s166 + $0x144] sm:$0xf]
      %v257 = vld [vmem:[%s166 + $0x148] sm:$0xf]
      %v258 = vld [vmem:[%s166 + $0x14c] sm:$0xf]
      %v259 = vld [vmem:[%s166 + $0x150] sm:$0xf]
      %v260 = vld [vmem:[%s166 + $0x154] sm:$0xf]
      %v261 = vld [vmem:[%s166 + $0x158] sm:$0xf]
      %v262 = vld [vmem:[%s166 + $0x15c] sm:$0xf]
      %v263 = vld [vmem:[%s166 + $0x160] sm:$0xf]
      %v264 = vld [vmem:[%s166 + $0x164] sm:$0xf]
      %v265 = vld [vmem:[%s166 + $0x168] sm:$0xf]
      %v266 = vld [vmem:[%s166 + $0x16c] sm:$0xf]
      %v267 = vld [vmem:[%s166 + $0x170] sm:$0xf]
      %v268 = vld [vmem:[%s166 + $0x174] sm:$0xf]
      %v269 = vld [vmem:[%s166 + $0x178] sm:$0xf]
      %v270 = vld [vmem:[%s166 + $0x17c] sm:$0xf]
      %v271 = vld [vmem:[%s166 + $0x180] sm:$0xf]
      %v272 = vld [vmem:[%s166 + $0x184] sm:$0xf]
      %v273 = vld [vmem:[%s166 + $0x188] sm:$0xf]
      %v274 = vld [vmem:[%s166 + $0x18c] sm:$0xf]
      %v275 = vld [vmem:[%s166 + $0x190] sm:$0xf]
      %v276 = vld [vmem:[%s166 + $0x194] sm:$0xf]
      %v277 = vld [vmem:[%s166 + $0x198] sm:$0xf]
      %v278 = vld [vmem:[%s166 + $0x19c] sm:$0xf]
      %v279 = vld [vmem:[%s166 + $0x1a0] sm:$0xf]
      %v280 = vld [vmem:[%s166 + $0x1a4] sm:$0xf]
      %v281 = vld [vmem:[%s166 + $0x1a8] sm:$0xf]
      %v282 = vld [vmem:[%s166 + $0x1ac] sm:$0xf]
      %v283 = vld [vmem:[%s166 + $0x1b0] sm:$0xf]
      %v284 = vld [vmem:[%s166 + $0x1b4] sm:$0xf]
      %v285 = vld [vmem:[%s166 + $0x1b8] sm:$0xf]
      %v286 = vld [vmem:[%s166 + $0x1bc] sm:$0xf]
      %v287 = vld [vmem:[%s166 + $0x1c0] sm:$0xf]
      %v288 = vld [vmem:[%s166 + $0x1c4] sm:$0xf]
      %v289 = vld [vmem:[%s166 + $0x1c8] sm:$0xf]
      %v290 = vld [vmem:[%s166 + $0x1cc] sm:$0xf]
      %v291 = vld [vmem:[%s166 + $0x1d0] sm:$0xf]
      %v292 = vld [vmem:[%s166 + $0x1d4] sm:$0xf]
      %v293 = vld [vmem:[%s166 + $0x1d8] sm:$0xf]
      %v294 = vld [vmem:[%s166 + $0x1dc] sm:$0xf]
      %v295 = vld [vmem:[%s166 + $0x1e0] sm:$0xf]
      %v296 = vld [vmem:[%s166 + $0x1e4] sm:$0xf]
      %v297 = vld [vmem:[%s166 + $0x1e8] sm:$0xf]
      %v298 = vld [vmem:[%s166 + $0x1ec] sm:$0xf]
      %v299 = vld [vmem:[%s166 + $0x1f0] sm:$0xf]
      %v300 = vld [vmem:[%s166 + $0x1f4] sm:$0xf]
      %v301 = vld [vmem:[%s166 + $0x1f8] sm:$0xf]
      %v302 = vld [vmem:[%s166 + $0x1fc] sm:$0xf]
      %v303 = vld [vmem:[%s1] sm:$0xf]
      %v304 = vld [vmem:[%s1 + $0x4] sm:$0xf]
      %v305 = vld [vmem:[%s1 + $0x8] sm:$0xf]
      %v306 = vld [vmem:[%s1 + $0xc] sm:$0xf]
      %v307 = vld [vmem:[%s2] sm:$0x1]
      %v309 = vlaneseq
      %v310 = vshrl.u32 %v309, 7
      %v311 = vsub.s32 0, %v310
      %v312 = vrot.slane %v307, %v311
      %v442 = vunpack.c.l.b16 %v175
      %v443 = vunpack.c.l.b16 %v176
      %v444 = vunpack.c.l.b16 %v177
      %v445 = vunpack.c.l.b16 %v178
      %v446 = vunpack.c.l.b16 %v179
      %v447 = vunpack.c.l.b16 %v180
      %v448 = vunpack.c.l.b16 %v181
      %v449 = vunpack.c.l.b16 %v182
      %v450 = vunpack.c.l.b16 %v183
      %v451 = vunpack.c.l.b16 %v184
      %v452 = vunpack.c.l.b16 %v185
      %v453 = vunpack.c.l.b16 %v186
      %v454 = vunpack.c.l.b16 %v187
      %v455 = vunpack.c.l.b16 %v188
      %v456 = vunpack.c.l.b16 %v189
      %v457 = vunpack.c.l.b16 %v190
      %v458 = vunpack.c.l.b16 %v191
      %v459 = vunpack.c.l.b16 %v192
      %v460 = vunpack.c.l.b16 %v193
      %v461 = vunpack.c.l.b16 %v194
      %v462 = vunpack.c.l.b16 %v195
      %v463 = vunpack.c.l.b16 %v196
      %v464 = vunpack.c.l.b16 %v197
      %v465 = vunpack.c.l.b16 %v198
      %v466 = vunpack.c.l.b16 %v199
      %v467 = vunpack.c.l.b16 %v200
      %v468 = vunpack.c.l.b16 %v201
      %v469 = vunpack.c.l.b16 %v202
      %v470 = vunpack.c.l.b16 %v203
      %v471 = vunpack.c.l.b16 %v204
      %v472 = vunpack.c.l.b16 %v205
      %v473 = vunpack.c.l.b16 %v206
      %v474 = vunpack.c.l.b16 %v207
      %v475 = vunpack.c.l.b16 %v208
      %v476 = vunpack.c.l.b16 %v209
      %v477 = vunpack.c.l.b16 %v210
      %v478 = vunpack.c.l.b16 %v211
      %v479 = vunpack.c.l.b16 %v212
      %v480 = vunpack.c.l.b16 %v213
      %v481 = vunpack.c.l.b16 %v214
      %v482 = vunpack.c.l.b16 %v215
      %v483 = vunpack.c.l.b16 %v216
      %v484 = vunpack.c.l.b16 %v217
      %v485 = vunpack.c.l.b16 %v218
      %v486 = vunpack.c.l.b16 %v219
      %v487 = vunpack.c.l.b16 %v220
      %v488 = vunpack.c.l.b16 %v221
      %v489 = vunpack.c.l.b16 %v222
      %v490 = vunpack.c.l.b16 %v223
      %v491 = vunpack.c.l.b16 %v224
      %v492 = vunpack.c.l.b16 %v225
      %v493 = vunpack.c.l.b16 %v226
      %v494 = vunpack.c.l.b16 %v227
      %v495 = vunpack.c.l.b16 %v228
      %v496 = vunpack.c.l.b16 %v229
      %v497 = vunpack.c.l.b16 %v230
      %v498 = vunpack.c.l.b16 %v231
      %v499 = vunpack.c.l.b16 %v232
      %v500 = vunpack.c.l.b16 %v233
      %v501 = vunpack.c.l.b16 %v234
      %v502 = vunpack.c.l.b16 %v235
      %v503 = vunpack.c.l.b16 %v236
      %v504 = vunpack.c.l.b16 %v237
      %v505 = vunpack.c.l.b16 %v238
      %v506 = vunpack.c.l.b16 %v239
      %v507 = vunpack.c.l.b16 %v240
      %v508 = vunpack.c.l.b16 %v241
      %v509 = vunpack.c.l.b16 %v242
      %v510 = vunpack.c.l.b16 %v243
      %v511 = vunpack.c.l.b16 %v244
      %v512 = vunpack.c.l.b16 %v245
      %v513 = vunpack.c.l.b16 %v246
      %v514 = vunpack.c.l.b16 %v247
      %v515 = vunpack.c.l.b16 %v248
      %v516 = vunpack.c.l.b16 %v249
      %v517 = vunpack.c.l.b16 %v250
      %v518 = vunpack.c.l.b16 %v251
      %v519 = vunpack.c.l.b16 %v252
      %v520 = vunpack.c.l.b16 %v253
      %v521 = vunpack.c.l.b16 %v254
      %v522 = vunpack.c.l.b16 %v255
      %v523 = vunpack.c.l.b16 %v256
      %v524 = vunpack.c.l.b16 %v257
      %v525 = vunpack.c.l.b16 %v258
      %v526 = vunpack.c.l.b16 %v259
      %v527 = vunpack.c.l.b16 %v260
      %v528 = vunpack.c.l.b16 %v261
      %v529 = vunpack.c.l.b16 %v262
      %v530 = vunpack.c.l.b16 %v263
      %v531 = vunpack.c.l.b16 %v264
      %v532 = vunpack.c.l.b16 %v265
      %v533 = vunpack.c.l.b16 %v266
      %v534 = vunpack.c.l.b16 %v267
      %v535 = vunpack.c.l.b16 %v268
      %v536 = vunpack.c.l.b16 %v269
      %v537 = vunpack.c.l.b16 %v270
      %v538 = vunpack.c.l.b16 %v271
      %v539 = vunpack.c.l.b16 %v272
      %v540 = vunpack.c.l.b16 %v273
      %v541 = vunpack.c.l.b16 %v274
      %v542 = vunpack.c.l.b16 %v275
      %v543 = vunpack.c.l.b16 %v276
      %v544 = vunpack.c.l.b16 %v277
      %v545 = vunpack.c.l.b16 %v278
      %v546 = vunpack.c.l.b16 %v279
      %v547 = vunpack.c.l.b16 %v280
      %v548 = vunpack.c.l.b16 %v281
      %v549 = vunpack.c.l.b16 %v282
      %v550 = vunpack.c.l.b16 %v283
      %v551 = vunpack.c.l.b16 %v284
      %v552 = vunpack.c.l.b16 %v285
      %v553 = vunpack.c.l.b16 %v286
      %v554 = vunpack.c.l.b16 %v287
      %v555 = vunpack.c.l.b16 %v288
      %v556 = vunpack.c.l.b16 %v289
      %v557 = vunpack.c.l.b16 %v290
      %v558 = vunpack.c.l.b16 %v291
      %v559 = vunpack.c.l.b16 %v292
      %v560 = vunpack.c.l.b16 %v293
      %v561 = vunpack.c.l.b16 %v294
      %v562 = vunpack.c.l.b16 %v295
      %v563 = vunpack.c.l.b16 %v296
      %v564 = vunpack.c.l.b16 %v297
      %v565 = vunpack.c.l.b16 %v298
      %v566 = vunpack.c.l.b16 %v299
      %v567 = vunpack.c.l.b16 %v300
      %v568 = vunpack.c.l.b16 %v301
      %v569 = vunpack.c.l.b16 %v302
      %v570 = vpack.c.b16 %v443, %v442
      %v571 = vpack.c.b16 %v445, %v444
      %v572 = vpack.c.b16 %v447, %v446
      %v573 = vpack.c.b16 %v449, %v448
      %v574 = vpack.c.b16 %v451, %v450
      %v575 = vpack.c.b16 %v453, %v452
      %v576 = vpack.c.b16 %v455, %v454
      %v577 = vpack.c.b16 %v457, %v456
      %v578 = vpack.c.b16 %v459, %v458
      %v579 = vpack.c.b16 %v461, %v460
      %v580 = vpack.c.b16 %v463, %v462
      %v581 = vpack.c.b16 %v465, %v464
      %v582 = vpack.c.b16 %v467, %v466
      %v583 = vpack.c.b16 %v469, %v468
      %v584 = vpack.c.b16 %v471, %v470
      %v585 = vpack.c.b16 %v473, %v472
      %v586 = vpack.c.b16 %v475, %v474
      %v587 = vpack.c.b16 %v477, %v476
      %v588 = vpack.c.b16 %v479, %v478
      %v589 = vpack.c.b16 %v481, %v480
      %v590 = vpack.c.b16 %v483, %v482
      %v591 = vpack.c.b16 %v485, %v484
      %v592 = vpack.c.b16 %v487, %v486
      %v593 = vpack.c.b16 %v489, %v488
      %v594 = vpack.c.b16 %v491, %v490
      %v595 = vpack.c.b16 %v493, %v492
      %v596 = vpack.c.b16 %v495, %v494
      %v597 = vpack.c.b16 %v497, %v496
      %v598 = vpack.c.b16 %v499, %v498
      %v599 = vpack.c.b16 %v501, %v500
      %v600 = vpack.c.b16 %v503, %v502
      %v601 = vpack.c.b16 %v505, %v504
      %v602 = vpack.c.b16 %v507, %v506
      %v603 = vpack.c.b16 %v509, %v508
      %v604 = vpack.c.b16 %v511, %v510
      %v605 = vpack.c.b16 %v513, %v512
      %v606 = vpack.c.b16 %v515, %v514
      %v607 = vpack.c.b16 %v517, %v516
      %v608 = vpack.c.b16 %v519, %v518
      %v609 = vpack.c.b16 %v521, %v520
      %v610 = vpack.c.b16 %v523, %v522
      %v611 = vpack.c.b16 %v525, %v524
      %v612 = vpack.c.b16 %v527, %v526
      %v613 = vpack.c.b16 %v529, %v528
      %v614 = vpack.c.b16 %v531, %v530
      %v615 = vpack.c.b16 %v533, %v532
      %v616 = vpack.c.b16 %v535, %v534
      %v617 = vpack.c.b16 %v537, %v536
      %v618 = vpack.c.b16 %v539, %v538
      %v619 = vpack.c.b16 %v541, %v540
      %v620 = vpack.c.b16 %v543, %v542
      %v621 = vpack.c.b16 %v545, %v544
      %v622 = vpack.c.b16 %v547, %v546
      %v623 = vpack.c.b16 %v549, %v548
      %v624 = vpack.c.b16 %v551, %v550
      %v625 = vpack.c.b16 %v553, %v552
      %v626 = vpack.c.b16 %v555, %v554
      %v627 = vpack.c.b16 %v557, %v556
      %v628 = vpack.c.b16 %v559, %v558
      %v629 = vpack.c.b16 %v561, %v560
      %v630 = vpack.c.b16 %v563, %v562
      %v631 = vpack.c.b16 %v565, %v564
      %v632 = vpack.c.b16 %v567, %v566
      %v633 = vpack.c.b16 %v569, %v568
      %v638 = vunpack.c.l.b16 %v303
      %v639 = vunpack.c.l.b16 %v304
      %v640 = vunpack.c.l.b16 %v305
      %v641 = vunpack.c.l.b16 %v306
      %v642 = vpack.c.b16 %v639, %v638
      %v643 = vpack.c.b16 %v641, %v640
      %vm646 = vcmask 261120
      %v648 = vsel %vm646, %v570, 0
      %v651 = vsel %vm646, %v571, 0
      %v654 = vsel %vm646, %v572, 0
      %v657 = vsel %vm646, %v573, 0
      %v660 = vsel %vm646, %v574, 0
      %v663 = vsel %vm646, %v575, 0
      %v666 = vsel %vm646, %v576, 0
      %v669 = vsel %vm646, %v577, 0
      %v672 = vsel %vm646, %v578, 0
      %v675 = vsel %vm646, %v579, 0
      %v678 = vsel %vm646, %v580, 0
      %v681 = vsel %vm646, %v581, 0
      %v684 = vsel %vm646, %v582, 0
      %v687 = vsel %vm646, %v583, 0
      %v690 = vsel %vm646, %v584, 0
      %v693 = vsel %vm646, %v585, 0
      %v696 = vsel %vm646, %v586, 0
      %v699 = vsel %vm646, %v587, 0
      %v702 = vsel %vm646, %v588, 0
      %v705 = vsel %vm646, %v589, 0
      %v708 = vsel %vm646, %v590, 0
      %v711 = vsel %vm646, %v591, 0
      %v714 = vsel %vm646, %v592, 0
      %v717 = vsel %vm646, %v593, 0
      %v720 = vsel %vm646, %v594, 0
      %v723 = vsel %vm646, %v595, 0
      %v726 = vsel %vm646, %v596, 0
      %v729 = vsel %vm646, %v597, 0
      %v732 = vsel %vm646, %v598, 0
      %v735 = vsel %vm646, %v599, 0
      %v738 = vsel %vm646, %v600, 0
      %v741 = vsel %vm646, %v601, 0
      %v744 = vsel %vm646, %v602, 0
      %v747 = vsel %vm646, %v603, 0
      %v750 = vsel %vm646, %v604, 0
      %v753 = vsel %vm646, %v605, 0
      %v756 = vsel %vm646, %v606, 0
      %v759 = vsel %vm646, %v607, 0
      %v762 = vsel %vm646, %v608, 0
      %v765 = vsel %vm646, %v609, 0
      %v768 = vsel %vm646, %v610, 0
      %v771 = vsel %vm646, %v611, 0
      %v774 = vsel %vm646, %v612, 0
      %v777 = vsel %vm646, %v613, 0
      %v780 = vsel %vm646, %v614, 0
      %v783 = vsel %vm646, %v615, 0
      %v786 = vsel %vm646, %v616, 0
      %v789 = vsel %vm646, %v617, 0
      %v792 = vsel %vm646, %v618, 0
      %v795 = vsel %vm646, %v619, 0
      %v798 = vsel %vm646, %v620, 0
      %v801 = vsel %vm646, %v621, 0
      %v804 = vsel %vm646, %v622, 0
      %v807 = vsel %vm646, %v623, 0
      %v810 = vsel %vm646, %v624, 0
      %v813 = vsel %vm646, %v625, 0
      %v816 = vsel %vm646, %v626, 0
      %v819 = vsel %vm646, %v627, 0
      %v822 = vsel %vm646, %v628, 0
      %v825 = vsel %vm646, %v629, 0
      %v828 = vsel %vm646, %v630, 0
      %v831 = vsel %vm646, %v631, 0
      %v834 = vsel %vm646, %v632, 0
      %v837 = vsel %vm646, %v633, 0
      %839 = vmatprep.subr.bf16.mxu0 0
      %840 = vmatpush1.bf16.msra.mxu0 %v642
      %841 = vmatprep.subr.bf16.mxu0 0
      %842 = vmatpush1.bf16.msra.mxu0 %v643
      %843 = vmatprep.subr.bf16.mxu0 0
      %844 = vmatpush1.bf16.msra.mxu0 0
      %845 = vmatprep.subr.bf16.mxu0 0
      %846 = vmatpush1.bf16.msra.mxu0 0
      %847 = vmatprep.subr.bf16.mxu0 0
      %848 = vmatpush1.bf16.msra.mxu0 0
      %849 = vmatprep.subr.bf16.mxu0 0
      %850 = vmatpush1.bf16.msra.mxu0 0
      %851 = vmatprep.subr.bf16.mxu0 0
      %852 = vmatpush1.bf16.msra.mxu0 0
      %853 = vmatprep.subr.bf16.mxu0 0
      %854 = vmatpush1.bf16.msra.mxu0 0
      %855 = vmatprep.subr.bf16.mxu0 0
      %856 = vmatpush1.bf16.msra.mxu0 0
      %857 = vmatprep.subr.bf16.mxu0 0
      %858 = vmatpush1.bf16.msra.mxu0 0
      %859 = vmatprep.subr.bf16.mxu0 0
      %860 = vmatpush1.bf16.msra.mxu0 0
      %861 = vmatprep.subr.bf16.mxu0 0
      %862 = vmatpush1.bf16.msra.mxu0 0
      %863 = vmatprep.subr.bf16.mxu0 0
      %864 = vmatpush1.bf16.msra.mxu0 0
      %865 = vmatprep.subr.bf16.mxu0 0
      %866 = vmatpush1.bf16.msra.mxu0 0
      %867 = vmatprep.subr.bf16.mxu0 0
      %868 = vmatpush1.bf16.msra.mxu0 0
      %869 = vmatprep.subr.bf16.mxu0 0
      %870 = vmatpush1.bf16.msra.mxu0 0
      %871 = vmatprep.mubr.bf16.mxu0 0
      %872 = vmatmul.mubr.bf16.gmra.mrb[0].mxu0 %v648
      %v873 = vpop.f32.mrb[0].mxu0
      %v874 = vadd.f32 %v312, %v873
      %v875 = vpop.f32.mrb[0].mxu0
      %v876 = vpop.f32.mrb[0].mxu0
      %v877 = vadd.f32 %v312, %v876
      %v878 = vpop.f32.mrb[0].mxu0
      %879 = vmatprep.mubr.bf16.mxu0 0
      %880 = vmatmul.mubr.bf16.gmra.mrb[0].mxu0 %v651
      %v881 = vpop.f32.mrb[0].mxu0
      %v882 = vadd.f32 %v312, %v881
      %v883 = vpop.f32.mrb[0].mxu0
      %v884 = vpop.f32.mrb[0].mxu0
      %v885 = vadd.f32 %v312, %v884
      %v886 = vpop.f32.mrb[0].mxu0
      %887 = vmatprep.mubr.bf16.mxu0 0
      %888 = vmatmul.mubr.bf16.gmra.mrb[0].mxu0 %v654
      %v889 = vpop.f32.mrb[0].mxu0
      %v890 = vadd.f32 %v312, %v889
      %v891 = vpop.f32.mrb[0].mxu0
      %v892 = vpop.f32.mrb[0].mxu0
      %v893 = vadd.f32 %v312, %v892
      %v894 = vpop.f32.mrb[0].mxu0
      %895 = vmatprep.mubr.bf16.mxu0 0
      %896 = vmatmul.mubr.bf16.gmra.mrb[0].mxu0 %v657
      %v897 = vpop.f32.mrb[0].mxu0
      %v898 = vadd.f32 %v312, %v897
      %v899 = vpop.f32.mrb[0].mxu0
      %v900 = vpop.f32.mrb[0].mxu0
      %v901 = vadd.f32 %v312, %v900
      %v902 = vpop.f32.mrb[0].mxu0
      %903 = vmatprep.mubr.bf16.mxu0 0
      %904 = vmatmul.mubr.bf16.gmra.mrb[0].mxu0 %v660
      %v905 = vpop.f32.mrb[0].mxu0
      %v906 = vadd.f32 %v312, %v905
      %v907 = vpop.f32.mrb[0].mxu0
      %v908 = vpop.f32.mrb[0].mxu0
      %v909 = vadd.f32 %v312, %v908
      %v910 = vpop.f32.mrb[0].mxu0
      %911 = vmatprep.mubr.bf16.mxu0 0
      %912 = vmatmul.mubr.bf16.gmra.mrb[0].mxu0 %v663
      %v913 = vpop.f32.mrb[0].mxu0
      %v914 = vadd.f32 %v312, %v913
      %v915 = vpop.f32.mrb[0].mxu0
      %v916 = vpop.f32.mrb[0].mxu0
      %v917 = vadd.f32 %v312, %v916
      %v918 = vpop.f32.mrb[0].mxu0
      %919 = vmatprep.mubr.bf16.mxu0 0
      %920 = vmatmul.mubr.bf16.gmra.mrb[0].mxu0 %v666
      %v921 = vpop.f32.mrb[0].mxu0
      %v922 = vadd.f32 %v312, %v921
      %v923 = vpop.f32.mrb[0].mxu0
      %v924 = vpop.f32.mrb[0].mxu0
      %v925 = vadd.f32 %v312, %v924
      %v926 = vpop.f32.mrb[0].mxu0
      %927 = vmatprep.mubr.bf16.mxu0 0
      %928 = vmatmul.mubr.bf16.gmra.mrb[0].mxu0 %v669
      %v929 = vpop.f32.mrb[0].mxu0
      %v930 = vadd.f32 %v312, %v929
      %v931 = vpop.f32.mrb[0].mxu0
      %v932 = vpop.f32.mrb[0].mxu0
      %v933 = vadd.f32 %v312, %v932
      %v934 = vpop.f32.mrb[0].mxu0
      %935 = vmatprep.mubr.bf16.mxu0 0
      %936 = vmatmul.mubr.bf16.gmra.mrb[0].mxu0 %v672
      %v937 = vpop.f32.mrb[0].mxu0
      %v938 = vadd.f32 %v312, %v937
      %v939 = vpop.f32.mrb[0].mxu0
      %v940 = vpop.f32.mrb[0].mxu0
      %v941 = vadd.f32 %v312, %v940
      %v942 = vpop.f32.mrb[0].mxu0
      %943 = vmatprep.mubr.bf16.mxu0 0
      %944 = vmatmul.mubr.bf16.gmra.mrb[0].mxu0 %v675
      %v945 = vpop.f32.mrb[0].mxu0
      %v946 = vadd.f32 %v312, %v945
      %v947 = vpop.f32.mrb[0].mxu0
      %v948 = vpop.f32.mrb[0].mxu0
      %v949 = vadd.f32 %v312, %v948
      %v950 = vpop.f32.mrb[0].mxu0
      %951 = vmatprep.mubr.bf16.mxu0 0
      %952 = vmatmul.mubr.bf16.gmra.mrb[0].mxu0 %v678
      %v953 = vpop.f32.mrb[0].mxu0
      %v954 = vadd.f32 %v312, %v953
      %v955 = vpop.f32.mrb[0].mxu0
      %v956 = vpop.f32.mrb[0].mxu0
      %v957 = vadd.f32 %v312, %v956
      %v958 = vpop.f32.mrb[0].mxu0
      %959 = vmatprep.mubr.bf16.mxu0 0
      %960 = vmatmul.mubr.bf16.gmra.mrb[0].mxu0 %v681
      %v961 = vpop.f32.mrb[0].mxu0
      %v962 = vadd.f32 %v312, %v961
      %v963 = vpop.f32.mrb[0].mxu0
      %v964 = vpop.f32.mrb[0].mxu0
      %v965 = vadd.f32 %v312, %v964
      %v966 = vpop.f32.mrb[0].mxu0
      %967 = vmatprep.mubr.bf16.mxu0 0
      %968 = vmatmul.mubr.bf16.gmra.mrb[0].mxu0 %v684
      %v969 = vpop.f32.mrb[0].mxu0
      %v970 = vadd.f32 %v312, %v969
      %v971 = vpop.f32.mrb[0].mxu0
      %v972 = vpop.f32.mrb[0].mxu0
      %v973 = vadd.f32 %v312, %v972
      %v974 = vpop.f32.mrb[0].mxu0
      %975 = vmatprep.mubr.bf16.mxu0 0
      %976 = vmatmul.mubr.bf16.gmra.mrb[0].mxu0 %v687
      %v977 = vpop.f32.mrb[0].mxu0
      %v978 = vadd.f32 %v312, %v977
      %v979 = vpop.f32.mrb[0].mxu0
      %v980 = vpop.f32.mrb[0].mxu0
      %v981 = vadd.f32 %v312, %v980
      %v982 = vpop.f32.mrb[0].mxu0
      %983 = vmatprep.mubr.bf16.mxu0 0
      %984 = vmatmul.mubr.bf16.gmra.mrb[0].mxu0 %v690
      %v985 = vpop.f32.mrb[0].mxu0
      %v986 = vadd.f32 %v312, %v985
      %v987 = vpop.f32.mrb[0].mxu0
      %v988 = vpop.f32.mrb[0].mxu0
      %v989 = vadd.f32 %v312, %v988
      %v990 = vpop.f32.mrb[0].mxu0
      %991 = vmatprep.mubr.bf16.mxu0 0
      %992 = vmatmul.mubr.bf16.gmra.mrb[0].mxu0 %v693
      %v993 = vpop.f32.mrb[0].mxu0
      %v994 = vadd.f32 %v312, %v993
      %v995 = vpop.f32.mrb[0].mxu0
      %v996 = vpop.f32.mrb[0].mxu0
      %v997 = vadd.f32 %v312, %v996
      %v998 = vpop.f32.mrb[0].mxu0
      %999 = vmatprep.mubr.bf16.mxu0 0
      %1000 = vmatmul.mubr.bf16.gmra.mrb[0].mxu0 %v696
      %v1001 = vpop.f32.mrb[0].mxu0
      %v1002 = vadd.f32 %v312, %v1001
      %v1003 = vpop.f32.mrb[0].mxu0
      %v1004 = vpop.f32.mrb[0].mxu0
      %v1005 = vadd.f32 %v312, %v1004
      %v1006 = vpop.f32.mrb[0].mxu0
      %1007 = vmatprep.mubr.bf16.mxu0 0
      %1008 = vmatmul.mubr.bf16.gmra.mrb[0].mxu0 %v699
      %v1009 = vpop.f32.mrb[0].mxu0
      %v1010 = vadd.f32 %v312, %v1009
      %v1011 = vpop.f32.mrb[0].mxu0
      %v1012 = vpop.f32.mrb[0].mxu0
      %v1013 = vadd.f32 %v312, %v1012
      %v1014 = vpop.f32.mrb[0].mxu0
      %1015 = vmatprep.mubr.bf16.mxu0 0
      %1016 = vmatmul.mubr.bf16.gmra.mrb[0].mxu0 %v702
      %v1017 = vpop.f32.mrb[0].mxu0
      %v1018 = vadd.f32 %v312, %v1017
      %v1019 = vpop.f32.mrb[0].mxu0
      %v1020 = vpop.f32.mrb[0].mxu0
      %v1021 = vadd.f32 %v312, %v1020
      %v1022 = vpop.f32.mrb[0].mxu0
      %1023 = vmatprep.mubr.bf16.mxu0 0
      %1024 = vmatmul.mubr.bf16.gmra.mrb[0].mxu0 %v705
      %v1025 = vpop.f32.mrb[0].mxu0
      %v1026 = vadd.f32 %v312, %v1025
      %v1027 = vpop.f32.mrb[0].mxu0
      %v1028 = vpop.f32.mrb[0].mxu0
      %v1029 = vadd.f32 %v312, %v1028
      %v1030 = vpop.f32.mrb[0].mxu0
      %1031 = vmatprep.mubr.bf16.mxu0 0
      %1032 = vmatmul.mubr.bf16.gmra.mrb[0].mxu0 %v708
      %v1033 = vpop.f32.mrb[0].mxu0
      %v1034 = vadd.f32 %v312, %v1033
      %v1035 = vpop.f32.mrb[0].mxu0
      %v1036 = vpop.f32.mrb[0].mxu0
      %v1037 = vadd.f32 %v312, %v1036
      %v1038 = vpop.f32.mrb[0].mxu0
      %1039 = vmatprep.mubr.bf16.mxu0 0
      %1040 = vmatmul.mubr.bf16.gmra.mrb[0].mxu0 %v711
      %v1041 = vpop.f32.mrb[0].mxu0
      %v1042 = vadd.f32 %v312, %v1041
      %v1043 = vpop.f32.mrb[0].mxu0
      %v1044 = vpop.f32.mrb[0].mxu0
      %v1045 = vadd.f32 %v312, %v1044
      %v1046 = vpop.f32.mrb[0].mxu0
      %1047 = vmatprep.mubr.bf16.mxu0 0
      %1048 = vmatmul.mubr.bf16.gmra.mrb[0].mxu0 %v714
      %v1049 = vpop.f32.mrb[0].mxu0
      %v1050 = vadd.f32 %v312, %v1049
      %v1051 = vpop.f32.mrb[0].mxu0
      %v1052 = vpop.f32.mrb[0].mxu0
      %v1053 = vadd.f32 %v312, %v1052
      %v1054 = vpop.f32.mrb[0].mxu0
      %1055 = vmatprep.mubr.bf16.mxu0 0
      %1056 = vmatmul.mubr.bf16.gmra.mrb[0].mxu0 %v717
      %v1057 = vpop.f32.mrb[0].mxu0
      %v1058 = vadd.f32 %v312, %v1057
      %v1059 = vpop.f32.mrb[0].mxu0
      %v1060 = vpop.f32.mrb[0].mxu0
      %v1061 = vadd.f32 %v312, %v1060
      %v1062 = vpop.f32.mrb[0].mxu0
      %1063 = vmatprep.mubr.bf16.mxu0 0
      %1064 = vmatmul.mubr.bf16.gmra.mrb[0].mxu0 %v720
      %v1065 = vpop.f32.mrb[0].mxu0
      %v1066 = vadd.f32 %v312, %v1065
      %v1067 = vpop.f32.mrb[0].mxu0
      %v1068 = vpop.f32.mrb[0].mxu0
      %v1069 = vadd.f32 %v312, %v1068
      %v1070 = vpop.f32.mrb[0].mxu0
      %1071 = vmatprep.mubr.bf16.mxu0 0
      %1072 = vmatmul.mubr.bf16.gmra.mrb[0].mxu0 %v723
      %v1073 = vpop.f32.mrb[0].mxu0
      %v1074 = vadd.f32 %v312, %v1073
      %v1075 = vpop.f32.mrb[0].mxu0
      %v1076 = vpop.f32.mrb[0].mxu0
      %v1077 = vadd.f32 %v312, %v1076
      %v1078 = vpop.f32.mrb[0].mxu0
      %1079 = vmatprep.mubr.bf16.mxu0 0
      %1080 = vmatmul.mubr.bf16.gmra.mrb[0].mxu0 %v726
      %v1081 = vpop.f32.mrb[0].mxu0
      %v1082 = vadd.f32 %v312, %v1081
      %v1083 = vpop.f32.mrb[0].mxu0
      %v1084 = vpop.f32.mrb[0].mxu0
      %v1085 = vadd.f32 %v312, %v1084
      %v1086 = vpop.f32.mrb[0].mxu0
      %1087 = vmatprep.mubr.bf16.mxu0 0
      %1088 = vmatmul.mubr.bf16.gmra.mrb[0].mxu0 %v729
      %v1089 = vpop.f32.mrb[0].mxu0
      %v1090 = vadd.f32 %v312, %v1089
      %v1091 = vpop.f32.mrb[0].mxu0
      %v1092 = vpop.f32.mrb[0].mxu0
      %v1093 = vadd.f32 %v312, %v1092
      %v1094 = vpop.f32.mrb[0].mxu0
      %1095 = vmatprep.mubr.bf16.mxu0 0
      %1096 = vmatmul.mubr.bf16.gmra.mrb[0].mxu0 %v732
      %v1097 = vpop.f32.mrb[0].mxu0
      %v1098 = vadd.f32 %v312, %v1097
      %v1099 = vpop.f32.mrb[0].mxu0
      %v1100 = vpop.f32.mrb[0].mxu0
      %v1101 = vadd.f32 %v312, %v1100
      %v1102 = vpop.f32.mrb[0].mxu0
      %1103 = vmatprep.mubr.bf16.mxu0 0
      %1104 = vmatmul.mubr.bf16.gmra.mrb[0].mxu0 %v735
      %v1105 = vpop.f32.mrb[0].mxu0
      %v1106 = vadd.f32 %v312, %v1105
      %v1107 = vpop.f32.mrb[0].mxu0
      %v1108 = vpop.f32.mrb[0].mxu0
      %v1109 = vadd.f32 %v312, %v1108
      %v1110 = vpop.f32.mrb[0].mxu0
      %1111 = vmatprep.mubr.bf16.mxu0 0
      %1112 = vmatmul.mubr.bf16.gmra.mrb[0].mxu0 %v738
      %v1113 = vpop.f32.mrb[0].mxu0
      %v1114 = vadd.f32 %v312, %v1113
      %v1115 = vpop.f32.mrb[0].mxu0
      %v1116 = vpop.f32.mrb[0].mxu0
      %v1117 = vadd.f32 %v312, %v1116
      %v1118 = vpop.f32.mrb[0].mxu0
      %1119 = vmatprep.mubr.bf16.mxu0 0
      %1120 = vmatmul.mubr.bf16.gmra.mrb[0].mxu0 %v741
      %v1121 = vpop.f32.mrb[0].mxu0
      %v1122 = vadd.f32 %v312, %v1121
      %v1123 = vpop.f32.mrb[0].mxu0
      %v1124 = vpop.f32.mrb[0].mxu0
      %v1125 = vadd.f32 %v312, %v1124
      %v1126 = vpop.f32.mrb[0].mxu0
      %1127 = vmatprep.mubr.bf16.mxu0 0
      %1128 = vmatmul.mubr.bf16.gmra.mrb[0].mxu0 %v744
      %v1129 = vpop.f32.mrb[0].mxu0
      %v1130 = vadd.f32 %v312, %v1129
      %v1131 = vpop.f32.mrb[0].mxu0
      %v1132 = vpop.f32.mrb[0].mxu0
      %v1133 = vadd.f32 %v312, %v1132
      %v1134 = vpop.f32.mrb[0].mxu0
      %1135 = vmatprep.mubr.bf16.mxu0 0
      %1136 = vmatmul.mubr.bf16.gmra.mrb[0].mxu0 %v747
      %v1137 = vpop.f32.mrb[0].mxu0
      %v1138 = vadd.f32 %v312, %v1137
      %v1139 = vpop.f32.mrb[0].mxu0
      %v1140 = vpop.f32.mrb[0].mxu0
      %v1141 = vadd.f32 %v312, %v1140
      %v1142 = vpop.f32.mrb[0].mxu0
      %1143 = vmatprep.mubr.bf16.mxu0 0
      %1144 = vmatmul.mubr.bf16.gmra.mrb[0].mxu0 %v750
      %v1145 = vpop.f32.mrb[0].mxu0
      %v1146 = vadd.f32 %v312, %v1145
      %v1147 = vpop.f32.mrb[0].mxu0
      %v1148 = vpop.f32.mrb[0].mxu0
      %v1149 = vadd.f32 %v312, %v1148
      %v1150 = vpop.f32.mrb[0].mxu0
      %1151 = vmatprep.mubr.bf16.mxu0 0
      %1152 = vmatmul.mubr.bf16.gmra.mrb[0].mxu0 %v753
      %v1153 = vpop.f32.mrb[0].mxu0
      %v1154 = vadd.f32 %v312, %v1153
      %v1155 = vpop.f32.mrb[0].mxu0
      %v1156 = vpop.f32.mrb[0].mxu0
      %v1157 = vadd.f32 %v312, %v1156
      %v1158 = vpop.f32.mrb[0].mxu0
      %1159 = vmatprep.mubr.bf16.mxu0 0
      %1160 = vmatmul.mubr.bf16.gmra.mrb[0].mxu0 %v756
      %v1161 = vpop.f32.mrb[0].mxu0
      %v1162 = vadd.f32 %v312, %v1161
      %v1163 = vpop.f32.mrb[0].mxu0
      %v1164 = vpop.f32.mrb[0].mxu0
      %v1165 = vadd.f32 %v312, %v1164
      %v1166 = vpop.f32.mrb[0].mxu0
      %1167 = vmatprep.mubr.bf16.mxu0 0
      %1168 = vmatmul.mubr.bf16.gmra.mrb[0].mxu0 %v759
      %v1169 = vpop.f32.mrb[0].mxu0
      %v1170 = vadd.f32 %v312, %v1169
      %v1171 = vpop.f32.mrb[0].mxu0
      %v1172 = vpop.f32.mrb[0].mxu0
      %v1173 = vadd.f32 %v312, %v1172
      %v1174 = vpop.f32.mrb[0].mxu0
      %1175 = vmatprep.mubr.bf16.mxu0 0
      %1176 = vmatmul.mubr.bf16.gmra.mrb[0].mxu0 %v762
      %v1177 = vpop.f32.mrb[0].mxu0
      %v1178 = vadd.f32 %v312, %v1177
      %v1179 = vpop.f32.mrb[0].mxu0
      %v1180 = vpop.f32.mrb[0].mxu0
      %v1181 = vadd.f32 %v312, %v1180
      %v1182 = vpop.f32.mrb[0].mxu0
      %1183 = vmatprep.mubr.bf16.mxu0 0
      %1184 = vmatmul.mubr.bf16.gmra.mrb[0].mxu0 %v765
      %v1185 = vpop.f32.mrb[0].mxu0
      %v1186 = vadd.f32 %v312, %v1185
      %v1187 = vpop.f32.mrb[0].mxu0
      %v1188 = vpop.f32.mrb[0].mxu0
      %v1189 = vadd.f32 %v312, %v1188
      %v1190 = vpop.f32.mrb[0].mxu0
      %1191 = vmatprep.mubr.bf16.mxu0 0
      %1192 = vmatmul.mubr.bf16.gmra.mrb[0].mxu0 %v768
      %v1193 = vpop.f32.mrb[0].mxu0
      %v1194 = vadd.f32 %v312, %v1193
      %v1195 = vpop.f32.mrb[0].mxu0
      %v1196 = vpop.f32.mrb[0].mxu0
      %v1197 = vadd.f32 %v312, %v1196
      %v1198 = vpop.f32.mrb[0].mxu0
      %1199 = vmatprep.mubr.bf16.mxu0 0
      %1200 = vmatmul.mubr.bf16.gmra.mrb[0].mxu0 %v771
      %v1201 = vpop.f32.mrb[0].mxu0
      %v1202 = vadd.f32 %v312, %v1201
      %v1203 = vpop.f32.mrb[0].mxu0
      %v1204 = vpop.f32.mrb[0].mxu0
      %v1205 = vadd.f32 %v312, %v1204
      %v1206 = vpop.f32.mrb[0].mxu0
      %1207 = vmatprep.mubr.bf16.mxu0 0
      %1208 = vmatmul.mubr.bf16.gmra.mrb[0].mxu0 %v774
      %v1209 = vpop.f32.mrb[0].mxu0
      %v1210 = vadd.f32 %v312, %v1209
      %v1211 = vpop.f32.mrb[0].mxu0
      %v1212 = vpop.f32.mrb[0].mxu0
      %v1213 = vadd.f32 %v312, %v1212
      %v1214 = vpop.f32.mrb[0].mxu0
      %1215 = vmatprep.mubr.bf16.mxu0 0
      %1216 = vmatmul.mubr.bf16.gmra.mrb[0].mxu0 %v777
      %v1217 = vpop.f32.mrb[0].mxu0
      %v1218 = vadd.f32 %v312, %v1217
      %v1219 = vpop.f32.mrb[0].mxu0
      %v1220 = vpop.f32.mrb[0].mxu0
      %v1221 = vadd.f32 %v312, %v1220
      %v1222 = vpop.f32.mrb[0].mxu0
      %1223 = vmatprep.mubr.bf16.mxu0 0
      %1224 = vmatmul.mubr.bf16.gmra.mrb[0].mxu0 %v780
      %v1225 = vpop.f32.mrb[0].mxu0
      %v1226 = vadd.f32 %v312, %v1225
      %v1227 = vpop.f32.mrb[0].mxu0
      %v1228 = vpop.f32.mrb[0].mxu0
      %v1229 = vadd.f32 %v312, %v1228
      %v1230 = vpop.f32.mrb[0].mxu0
      %1231 = vmatprep.mubr.bf16.mxu0 0
      %1232 = vmatmul.mubr.bf16.gmra.mrb[0].mxu0 %v783
      %v1233 = vpop.f32.mrb[0].mxu0
      %v1234 = vadd.f32 %v312, %v1233
      %v1235 = vpop.f32.mrb[0].mxu0
      %v1236 = vpop.f32.mrb[0].mxu0
      %v1237 = vadd.f32 %v312, %v1236
      %v1238 = vpop.f32.mrb[0].mxu0
      %1239 = vmatprep.mubr.bf16.mxu0 0
      %1240 = vmatmul.mubr.bf16.gmra.mrb[0].mxu0 %v786
      %v1241 = vpop.f32.mrb[0].mxu0
      %v1242 = vadd.f32 %v312, %v1241
      %v1243 = vpop.f32.mrb[0].mxu0
      %v1244 = vpop.f32.mrb[0].mxu0
      %v1245 = vadd.f32 %v312, %v1244
      %v1246 = vpop.f32.mrb[0].mxu0
      %1247 = vmatprep.mubr.bf16.mxu0 0
      %1248 = vmatmul.mubr.bf16.gmra.mrb[0].mxu0 %v789
      %v1249 = vpop.f32.mrb[0].mxu0
      %v1250 = vadd.f32 %v312, %v1249
      %v1251 = vpop.f32.mrb[0].mxu0
      %v1252 = vpop.f32.mrb[0].mxu0
      %v1253 = vadd.f32 %v312, %v1252
      %v1254 = vpop.f32.mrb[0].mxu0
      %1255 = vmatprep.mubr.bf16.mxu0 0
      %1256 = vmatmul.mubr.bf16.gmra.mrb[0].mxu0 %v792
      %v1257 = vpop.f32.mrb[0].mxu0
      %v1258 = vadd.f32 %v312, %v1257
      %v1259 = vpop.f32.mrb[0].mxu0
      %v1260 = vpop.f32.mrb[0].mxu0
      %v1261 = vadd.f32 %v312, %v1260
      %v1262 = vpop.f32.mrb[0].mxu0
      %1263 = vmatprep.mubr.bf16.mxu0 0
      %1264 = vmatmul.mubr.bf16.gmra.mrb[0].mxu0 %v795
      %v1265 = vpop.f32.mrb[0].mxu0
      %v1266 = vadd.f32 %v312, %v1265
      %v1267 = vpop.f32.mrb[0].mxu0
      %v1268 = vpop.f32.mrb[0].mxu0
      %v1269 = vadd.f32 %v312, %v1268
      %v1270 = vpop.f32.mrb[0].mxu0
      %1271 = vmatprep.mubr.bf16.mxu0 0
      %1272 = vmatmul.mubr.bf16.gmra.mrb[0].mxu0 %v798
      %v1273 = vpop.f32.mrb[0].mxu0
      %v1274 = vadd.f32 %v312, %v1273
      %v1275 = vpop.f32.mrb[0].mxu0
      %v1276 = vpop.f32.mrb[0].mxu0
      %v1277 = vadd.f32 %v312, %v1276
      %v1278 = vpop.f32.mrb[0].mxu0
      %1279 = vmatprep.mubr.bf16.mxu0 0
      %1280 = vmatmul.mubr.bf16.gmra.mrb[0].mxu0 %v801
      %v1281 = vpop.f32.mrb[0].mxu0
      %v1282 = vadd.f32 %v312, %v1281
      %v1283 = vpop.f32.mrb[0].mxu0
      %v1284 = vpop.f32.mrb[0].mxu0
      %v1285 = vadd.f32 %v312, %v1284
      %v1286 = vpop.f32.mrb[0].mxu0
      %1287 = vmatprep.mubr.bf16.mxu0 0
      %1288 = vmatmul.mubr.bf16.gmra.mrb[0].mxu0 %v804
      %v1289 = vpop.f32.mrb[0].mxu0
      %v1290 = vadd.f32 %v312, %v1289
      %v1291 = vpop.f32.mrb[0].mxu0
      %v1292 = vpop.f32.mrb[0].mxu0
      %v1293 = vadd.f32 %v312, %v1292
      %v1294 = vpop.f32.mrb[0].mxu0
      %1295 = vmatprep.mubr.bf16.mxu0 0
      %1296 = vmatmul.mubr.bf16.gmra.mrb[0].mxu0 %v807
      %v1297 = vpop.f32.mrb[0].mxu0
      %v1298 = vadd.f32 %v312, %v1297
      %v1299 = vpop.f32.mrb[0].mxu0
      %v1300 = vpop.f32.mrb[0].mxu0
      %v1301 = vadd.f32 %v312, %v1300
      %v1302 = vpop.f32.mrb[0].mxu0
      %1303 = vmatprep.mubr.bf16.mxu0 0
      %1304 = vmatmul.mubr.bf16.gmra.mrb[0].mxu0 %v810
      %v1305 = vpop.f32.mrb[0].mxu0
      %v1306 = vadd.f32 %v312, %v1305
      %v1307 = vpop.f32.mrb[0].mxu0
      %v1308 = vpop.f32.mrb[0].mxu0
      %v1309 = vadd.f32 %v312, %v1308
      %v1310 = vpop.f32.mrb[0].mxu0
      %1311 = vmatprep.mubr.bf16.mxu0 0
      %1312 = vmatmul.mubr.bf16.gmra.mrb[0].mxu0 %v813
      %v1313 = vpop.f32.mrb[0].mxu0
      %v1314 = vadd.f32 %v312, %v1313
      %v1315 = vpop.f32.mrb[0].mxu0
      %v1316 = vpop.f32.mrb[0].mxu0
      %v1317 = vadd.f32 %v312, %v1316
      %v1318 = vpop.f32.mrb[0].mxu0
      %1319 = vmatprep.mubr.bf16.mxu0 0
      %1320 = vmatmul.mubr.bf16.gmra.mrb[0].mxu0 %v816
      %v1321 = vpop.f32.mrb[0].mxu0
      %v1322 = vadd.f32 %v312, %v1321
      %v1323 = vpop.f32.mrb[0].mxu0
      %v1324 = vpop.f32.mrb[0].mxu0
      %v1325 = vadd.f32 %v312, %v1324
      %v1326 = vpop.f32.mrb[0].mxu0
      %1327 = vmatprep.mubr.bf16.mxu0 0
      %1328 = vmatmul.mubr.bf16.gmra.mrb[0].mxu0 %v819
      %v1329 = vpop.f32.mrb[0].mxu0
      %v1330 = vadd.f32 %v312, %v1329
      %v1331 = vpop.f32.mrb[0].mxu0
      %v1332 = vpop.f32.mrb[0].mxu0
      %v1333 = vadd.f32 %v312, %v1332
      %v1334 = vpop.f32.mrb[0].mxu0
      %1335 = vmatprep.mubr.bf16.mxu0 0
      %1336 = vmatmul.mubr.bf16.gmra.mrb[0].mxu0 %v822
      %v1337 = vpop.f32.mrb[0].mxu0
      %v1338 = vadd.f32 %v312, %v1337
      %v1339 = vpop.f32.mrb[0].mxu0
      %v1340 = vpop.f32.mrb[0].mxu0
      %v1341 = vadd.f32 %v312, %v1340
      %v1342 = vpop.f32.mrb[0].mxu0
      %1343 = vmatprep.mubr.bf16.mxu0 0
      %1344 = vmatmul.mubr.bf16.gmra.mrb[0].mxu0 %v825
      %v1345 = vpop.f32.mrb[0].mxu0
      %v1346 = vadd.f32 %v312, %v1345
      %v1347 = vpop.f32.mrb[0].mxu0
      %v1348 = vpop.f32.mrb[0].mxu0
      %v1349 = vadd.f32 %v312, %v1348
      %v1350 = vpop.f32.mrb[0].mxu0
      %1351 = vmatprep.mubr.bf16.mxu0 0
      %1352 = vmatmul.mubr.bf16.gmra.mrb[0].mxu0 %v828
      %v1353 = vpop.f32.mrb[0].mxu0
      %v1354 = vadd.f32 %v312, %v1353
      %v1355 = vpop.f32.mrb[0].mxu0
      %v1356 = vpop.f32.mrb[0].mxu0
      %v1357 = vadd.f32 %v312, %v1356
      %v1358 = vpop.f32.mrb[0].mxu0
      %1359 = vmatprep.mubr.bf16.mxu0 0
      %1360 = vmatmul.mubr.bf16.gmra.mrb[0].mxu0 %v831
      %v1361 = vpop.f32.mrb[0].mxu0
      %v1362 = vadd.f32 %v312, %v1361
      %v1363 = vpop.f32.mrb[0].mxu0
      %v1364 = vpop.f32.mrb[0].mxu0
      %v1365 = vadd.f32 %v312, %v1364
      %v1366 = vpop.f32.mrb[0].mxu0
      %1367 = vmatprep.mubr.bf16.mxu0 0
      %1368 = vmatmul.mubr.bf16.gmra.mrb[0].mxu0 %v834
      %v1369 = vpop.f32.mrb[0].mxu0
      %v1370 = vadd.f32 %v312, %v1369
      %v1371 = vpop.f32.mrb[0].mxu0
      %v1372 = vpop.f32.mrb[0].mxu0
      %v1373 = vadd.f32 %v312, %v1372
      %v1374 = vpop.f32.mrb[0].mxu0
      %1375 = vmatprep.mubr.bf16.mxu0 0
      %1376 = vmatmul.mubr.bf16.gmra.mrb[0].mxu0 %v837
      %v1377 = vpop.f32.mrb[0].mxu0
      %v1378 = vadd.f32 %v312, %v1377
      %v1379 = vpop.f32.mrb[0].mxu0
      %v1380 = vpop.f32.mrb[0].mxu0
      %v1381 = vadd.f32 %v312, %v1380
      %v1382 = vpop.f32.mrb[0].mxu0
      %1383 = vdwg.mxu0
      %v1384 = vmax.f32 %v874, 0.0
      %v1385 = vmax.f32 %v877, 0.0
      %v1386 = vmax.f32 %v882, 0.0
      %v1387 = vmax.f32 %v885, 0.0
      %v1388 = vmax.f32 %v890, 0.0
      %v1389 = vmax.f32 %v893, 0.0
      %v1390 = vmax.f32 %v898, 0.0
      %v1391 = vmax.f32 %v901, 0.0
      %v1392 = vmax.f32 %v906, 0.0
      %v1393 = vmax.f32 %v909, 0.0
      %v1394 = vmax.f32 %v914, 0.0
      %v1395 = vmax.f32 %v917, 0.0
      %v1396 = vmax.f32 %v922, 0.0
      %v1397 = vmax.f32 %v925, 0.0
      %v1398 = vmax.f32 %v930, 0.0
      %v1399 = vmax.f32 %v933, 0.0
      %v1400 = vmax.f32 %v938, 0.0
      %v1401 = vmax.f32 %v941, 0.0
      %v1402 = vmax.f32 %v946, 0.0
      %v1403 = vmax.f32 %v949, 0.0
      %v1404 = vmax.f32 %v954, 0.0
      %v1405 = vmax.f32 %v957, 0.0
      %v1406 = vmax.f32 %v962, 0.0
      %v1407 = vmax.f32 %v965, 0.0
      %v1408 = vmax.f32 %v970, 0.0
      %v1409 = vmax.f32 %v973, 0.0
      %v1410 = vmax.f32 %v978, 0.0
      %v1411 = vmax.f32 %v981, 0.0
      %v1412 = vmax.f32 %v986, 0.0
      %v1413 = vmax.f32 %v989, 0.0
      %v1414 = vmax.f32 %v994, 0.0
      %v1415 = vmax.f32 %v997, 0.0
      %v1416 = vmax.f32 %v1002, 0.0
      %v1417 = vmax.f32 %v1005, 0.0
      %v1418 = vmax.f32 %v1010, 0.0
      %v1419 = vmax.f32 %v1013, 0.0
      %v1420 = vmax.f32 %v1018, 0.0
      %v1421 = vmax.f32 %v1021, 0.0
      %v1422 = vmax.f32 %v1026, 0.0
      %v1423 = vmax.f32 %v1029, 0.0
      %v1424 = vmax.f32 %v1034, 0.0
      %v1425 = vmax.f32 %v1037, 0.0
      %v1426 = vmax.f32 %v1042, 0.0
      %v1427 = vmax.f32 %v1045, 0.0
      %v1428 = vmax.f32 %v1050, 0.0
      %v1429 = vmax.f32 %v1053, 0.0
      %v1430 = vmax.f32 %v1058, 0.0
      %v1431 = vmax.f32 %v1061, 0.0
      %v1432 = vmax.f32 %v1066, 0.0
      %v1433 = vmax.f32 %v1069, 0.0
      %v1434 = vmax.f32 %v1074, 0.0
      %v1435 = vmax.f32 %v1077, 0.0
      %v1436 = vmax.f32 %v1082, 0.0
      %v1437 = vmax.f32 %v1085, 0.0
      %v1438 = vmax.f32 %v1090, 0.0
      %v1439 = vmax.f32 %v1093, 0.0
      %v1440 = vmax.f32 %v1098, 0.0
      %v1441 = vmax.f32 %v1101, 0.0
      %v1442 = vmax.f32 %v1106, 0.0
      %v1443 = vmax.f32 %v1109, 0.0
      %v1444 = vmax.f32 %v1114, 0.0
      %v1445 = vmax.f32 %v1117, 0.0
      %v1446 = vmax.f32 %v1122, 0.0
      %v1447 = vmax.f32 %v1125, 0.0
      %v1448 = vmax.f32 %v1130, 0.0
      %v1449 = vmax.f32 %v1133, 0.0
      %v1450 = vmax.f32 %v1138, 0.0
      %v1451 = vmax.f32 %v1141, 0.0
      %v1452 = vmax.f32 %v1146, 0.0
      %v1453 = vmax.f32 %v1149, 0.0
      %v1454 = vmax.f32 %v1154, 0.0
      %v1455 = vmax.f32 %v1157, 0.0
      %v1456 = vmax.f32 %v1162, 0.0
      %v1457 = vmax.f32 %v1165, 0.0
      %v1458 = vmax.f32 %v1170, 0.0
      %v1459 = vmax.f32 %v1173, 0.0
      %v1460 = vmax.f32 %v1178, 0.0
      %v1461 = vmax.f32 %v1181, 0.0
      %v1462 = vmax.f32 %v1186, 0.0
      %v1463 = vmax.f32 %v1189, 0.0
      %v1464 = vmax.f32 %v1194, 0.0
      %v1465 = vmax.f32 %v1197, 0.0
      %v1466 = vmax.f32 %v1202, 0.0
      %v1467 = vmax.f32 %v1205, 0.0
      %v1468 = vmax.f32 %v1210, 0.0
      %v1469 = vmax.f32 %v1213, 0.0
      %v1470 = vmax.f32 %v1218, 0.0
      %v1471 = vmax.f32 %v1221, 0.0
      %v1472 = vmax.f32 %v1226, 0.0
      %v1473 = vmax.f32 %v1229, 0.0
      %v1474 = vmax.f32 %v1234, 0.0
      %v1475 = vmax.f32 %v1237, 0.0
      %v1476 = vmax.f32 %v1242, 0.0
      %v1477 = vmax.f32 %v1245, 0.0
      %v1478 = vmax.f32 %v1250, 0.0
      %v1479 = vmax.f32 %v1253, 0.0
      %v1480 = vmax.f32 %v1258, 0.0
      %v1481 = vmax.f32 %v1261, 0.0
      %v1482 = vmax.f32 %v1266, 0.0
      %v1483 = vmax.f32 %v1269, 0.0
      %v1484 = vmax.f32 %v1274, 0.0
      %v1485 = vmax.f32 %v1277, 0.0
      %v1486 = vmax.f32 %v1282, 0.0
      %v1487 = vmax.f32 %v1285, 0.0
      %v1488 = vmax.f32 %v1290, 0.0
      %v1489 = vmax.f32 %v1293, 0.0
      %v1490 = vmax.f32 %v1298, 0.0
      %v1491 = vmax.f32 %v1301, 0.0
      %v1492 = vmax.f32 %v1306, 0.0
      %v1493 = vmax.f32 %v1309, 0.0
      %v1494 = vmax.f32 %v1314, 0.0
      %v1495 = vmax.f32 %v1317, 0.0
      %v1496 = vmax.f32 %v1322, 0.0
      %v1497 = vmax.f32 %v1325, 0.0
      %v1498 = vmax.f32 %v1330, 0.0
      %v1499 = vmax.f32 %v1333, 0.0
      %v1500 = vmax.f32 %v1338, 0.0
      %v1501 = vmax.f32 %v1341, 0.0
      %v1502 = vmax.f32 %v1346, 0.0
      %v1503 = vmax.f32 %v1349, 0.0
      %v1504 = vmax.f32 %v1354, 0.0
      %v1505 = vmax.f32 %v1357, 0.0
      %v1506 = vmax.f32 %v1362, 0.0
      %v1507 = vmax.f32 %v1365, 0.0
      %v1508 = vmax.f32 %v1370, 0.0
      %v1509 = vmax.f32 %v1373, 0.0
      %v1510 = vmax.f32 %v1378, 0.0
      %v1511 = vmax.f32 %v1381, 0.0
      %v1512 = vpack.c.bf16 %v1385, %v1384
      %v1513 = vpack.c.bf16 %v1387, %v1386
      %v1514 = vpack.c.bf16 %v1389, %v1388
      %v1515 = vpack.c.bf16 %v1391, %v1390
      %v1516 = vpack.c.bf16 %v1393, %v1392
      %v1517 = vpack.c.bf16 %v1395, %v1394
      %v1518 = vpack.c.bf16 %v1397, %v1396
      %v1519 = vpack.c.bf16 %v1399, %v1398
      %v1520 = vpack.c.bf16 %v1401, %v1400
      %v1521 = vpack.c.bf16 %v1403, %v1402
      %v1522 = vpack.c.bf16 %v1405, %v1404
      %v1523 = vpack.c.bf16 %v1407, %v1406
      %v1524 = vpack.c.bf16 %v1409, %v1408
      %v1525 = vpack.c.bf16 %v1411, %v1410
      %v1526 = vpack.c.bf16 %v1413, %v1412
      %v1527 = vpack.c.bf16 %v1415, %v1414
      %v1528 = vpack.c.bf16 %v1417, %v1416
      %v1529 = vpack.c.bf16 %v1419, %v1418
      %v1530 = vpack.c.bf16 %v1421, %v1420
      %v1531 = vpack.c.bf16 %v1423, %v1422
      %v1532 = vpack.c.bf16 %v1425, %v1424
      %v1533 = vpack.c.bf16 %v1427, %v1426
      %v1534 = vpack.c.bf16 %v1429, %v1428
      %v1535 = vpack.c.bf16 %v1431, %v1430
      %v1536 = vpack.c.bf16 %v1433, %v1432
      %v1537 = vpack.c.bf16 %v1435, %v1434
      %v1538 = vpack.c.bf16 %v1437, %v1436
      %v1539 = vpack.c.bf16 %v1439, %v1438
      %v1540 = vpack.c.bf16 %v1441, %v1440
      %v1541 = vpack.c.bf16 %v1443, %v1442
      %v1542 = vpack.c.bf16 %v1445, %v1444
      %v1543 = vpack.c.bf16 %v1447, %v1446
      %v1544 = vpack.c.bf16 %v1449, %v1448
      %v1545 = vpack.c.bf16 %v1451, %v1450
      %v1546 = vpack.c.bf16 %v1453, %v1452
      %v1547 = vpack.c.bf16 %v1455, %v1454
      %v1548 = vpack.c.bf16 %v1457, %v1456
      %v1549 = vpack.c.bf16 %v1459, %v1458
      %v1550 = vpack.c.bf16 %v1461, %v1460
      %v1551 = vpack.c.bf16 %v1463, %v1462
      %v1552 = vpack.c.bf16 %v1465, %v1464
      %v1553 = vpack.c.bf16 %v1467, %v1466
      %v1554 = vpack.c.bf16 %v1469, %v1468
      %v1555 = vpack.c.bf16 %v1471, %v1470
      %v1556 = vpack.c.bf16 %v1473, %v1472
      %v1557 = vpack.c.bf16 %v1475, %v1474
      %v1558 = vpack.c.bf16 %v1477, %v1476
      %v1559 = vpack.c.bf16 %v1479, %v1478
      %v1560 = vpack.c.bf16 %v1481, %v1480
      %v1561 = vpack.c.bf16 %v1483, %v1482
      %v1562 = vpack.c.bf16 %v1485, %v1484
      %v1563 = vpack.c.bf16 %v1487, %v1486
      %v1564 = vpack.c.bf16 %v1489, %v1488
      %v1565 = vpack.c.bf16 %v1491, %v1490
      %v1566 = vpack.c.bf16 %v1493, %v1492
      %v1567 = vpack.c.bf16 %v1495, %v1494
      %v1568 = vpack.c.bf16 %v1497, %v1496
      %v1569 = vpack.c.bf16 %v1499, %v1498
      %v1570 = vpack.c.bf16 %v1501, %v1500
      %v1571 = vpack.c.bf16 %v1503, %v1502
      %v1572 = vpack.c.bf16 %v1505, %v1504
      %v1573 = vpack.c.bf16 %v1507, %v1506
      %v1574 = vpack.c.bf16 %v1509, %v1508
      %v1575 = vpack.c.bf16 %v1511, %v1510
      %1576 = vrot.lane.b32.xlu0 %v642, 96
      %v1577 = vpop.permute.xlu0 %1576
      %1578 = vrot.lane.b32.xlu0 %v643, 96
      %v1579 = vpop.permute.xlu0 %1578
      %1582 = vrot.lane.b32.xlu0 %v312, 96
      %v1583 = vpop.permute.xlu0 %1582
      %v1586 = vsel %vm646, %v1512, 0
      %v1589 = vsel %vm646, %v1513, 0
      %v1592 = vsel %vm646, %v1514, 0
      %v1595 = vsel %vm646, %v1515, 0
      %v1598 = vsel %vm646, %v1516, 0
      %v1601 = vsel %vm646, %v1517, 0
      %v1604 = vsel %vm646, %v1518, 0
      %v1607 = vsel %vm646, %v1519, 0
      %v1610 = vsel %vm646, %v1520, 0
      %v1613 = vsel %vm646, %v1521, 0
      %v1616 = vsel %vm646, %v1522, 0
      %v1619 = vsel %vm646, %v1523, 0
      %v1622 = vsel %vm646, %v1524, 0
      %v1625 = vsel %vm646, %v1525, 0
      %v1628 = vsel %vm646, %v1526, 0
      %v1631 = vsel %vm646, %v1527, 0
      %v1634 = vsel %vm646, %v1528, 0
      %v1637 = vsel %vm646, %v1529, 0
      %v1640 = vsel %vm646, %v1530, 0
      %v1643 = vsel %vm646, %v1531, 0
      %v1646 = vsel %vm646, %v1532, 0
      %v1649 = vsel %vm646, %v1533, 0
      %v1652 = vsel %vm646, %v1534, 0
      %v1655 = vsel %vm646, %v1535, 0
      %v1658 = vsel %vm646, %v1536, 0
      %v1661 = vsel %vm646, %v1537, 0
      %v1664 = vsel %vm646, %v1538, 0
      %v1667 = vsel %vm646, %v1539, 0
      %v1670 = vsel %vm646, %v1540, 0
      %v1673 = vsel %vm646, %v1541, 0
      %v1676 = vsel %vm646, %v1542, 0
      %v1679 = vsel %vm646, %v1543, 0
      %v1682 = vsel %vm646, %v1544, 0
      %v1685 = vsel %vm646, %v1545, 0
      %v1688 = vsel %vm646, %v1546, 0
      %v1691 = vsel %vm646, %v1547, 0
      %v1694 = vsel %vm646, %v1548, 0
      %v1697 = vsel %vm646, %v1549, 0
      %v1700 = vsel %vm646, %v1550, 0
      %v1703 = vsel %vm646, %v1551, 0
      %v1706 = vsel %vm646, %v1552, 0
      %v1709 = vsel %vm646, %v1553, 0
      %v1712 = vsel %vm646, %v1554, 0
      %v1715 = vsel %vm646, %v1555, 0
      %v1718 = vsel %vm646, %v1556, 0
      %v1721 = vsel %vm646, %v1557, 0
      %v1724 = vsel %vm646, %v1558, 0
      %v1727 = vsel %vm646, %v1559, 0
      %v1730 = vsel %vm646, %v1560, 0
      %v1733 = vsel %vm646, %v1561, 0
      %v1736 = vsel %vm646, %v1562, 0
      %v1739 = vsel %vm646, %v1563, 0
      %v1742 = vsel %vm646, %v1564, 0
      %v1745 = vsel %vm646, %v1565, 0
      %v1748 = vsel %vm646, %v1566, 0
      %v1751 = vsel %vm646, %v1567, 0
      %v1754 = vsel %vm646, %v1568, 0
      %v1757 = vsel %vm646, %v1569, 0
      %v1760 = vsel %vm646, %v1570, 0
      %v1763 = vsel %vm646, %v1571, 0
      %v1766 = vsel %vm646, %v1572, 0
      %v1769 = vsel %vm646, %v1573, 0
      %v1772 = vsel %vm646, %v1574, 0
      %v1775 = vsel %vm646, %v1575, 0
      %1777 = vmatprep.subr.bf16.mxu0 0
      %1778 = vmatpush1.bf16.msra.mxu0 %v1577
      %1779 = vmatprep.subr.bf16.mxu0 0
      %1780 = vmatpush1.bf16.msra.mxu0 %v1579
      %1781 = vmatprep.subr.bf16.mxu0 0
      %1782 = vmatpush1.bf16.msra.mxu0 0
      %1783 = vmatprep.subr.bf16.mxu0 0
      %1784 = vmatpush1.bf16.msra.mxu0 0
      %1785 = vmatprep.subr.bf16.mxu0 0
      %1786 = vmatpush1.bf16.msra.mxu0 0
      %1787 = vmatprep.subr.bf16.mxu0 0
      %1788 = vmatpush1.bf16.msra.mxu0 0
      %1789 = vmatprep.subr.bf16.mxu0 0
      %1790 = vmatpush1.bf16.msra.mxu0 0
      %1791 = vmatprep.subr.bf16.mxu0 0
      %1792 = vmatpush1.bf16.msra.mxu0 0
      %1793 = vmatprep.subr.bf16.mxu0 0
      %1794 = vmatpush1.bf16.msra.mxu0 0
      %1795 = vmatprep.subr.bf16.mxu0 0
      %1796 = vmatpush1.bf16.msra.mxu0 0
      %1797 = vmatprep.subr.bf16.mxu0 0
      %1798 = vmatpush1.bf16.msra.mxu0 0
      %1799 = vmatprep.subr.bf16.mxu0 0
      %1800 = vmatpush1.bf16.msra.mxu0 0
      %1801 = vmatprep.subr.bf16.mxu0 0
      %1802 = vmatpush1.bf16.msra.mxu0 0
      %1803 = vmatprep.subr.bf16.mxu0 0
      %1804 = vmatpush1.bf16.msra.mxu0 0
      %1805 = vmatprep.subr.bf16.mxu0 0
      %1806 = vmatpush1.bf16.msra.mxu0 0
      %1807 = vmatprep.subr.bf16.mxu0 0
      %1808 = vmatpush1.bf16.msra.mxu0 0
      %1809 = vmatprep.mubr.bf16.mxu0 0
      %1810 = vmatmul.mubr.bf16.gmra.mrb[0].mxu0 %v1586
      %v1811 = vpop.f32.mrb[0].mxu0
      %v1812 = vadd.f32 %v1583, %v1811
      %v1813 = vpop.f32.mrb[0].mxu0
      %v1814 = vpop.f32.mrb[0].mxu0
      %v1815 = vadd.f32 %v1583, %v1814
      %v1816 = vpop.f32.mrb[0].mxu0
      %1817 = vmatprep.mubr.bf16.mxu0 0
      %1818 = vmatmul.mubr.bf16.gmra.mrb[0].mxu0 %v1589
      %v1819 = vpop.f32.mrb[0].mxu0
      %v1820 = vadd.f32 %v1583, %v1819
      %v1821 = vpop.f32.mrb[0].mxu0
      %v1822 = vpop.f32.mrb[0].mxu0
      %v1823 = vadd.f32 %v1583, %v1822
      %v1824 = vpop.f32.mrb[0].mxu0
      %1825 = vmatprep.mubr.bf16.mxu0 0
      %1826 = vmatmul.mubr.bf16.gmra.mrb[0].mxu0 %v1592
      %v1827 = vpop.f32.mrb[0].mxu0
      %v1828 = vadd.f32 %v1583, %v1827
      %v1829 = vpop.f32.mrb[0].mxu0
      %v1830 = vpop.f32.mrb[0].mxu0
      %v1831 = vadd.f32 %v1583, %v1830
      %v1832 = vpop.f32.mrb[0].mxu0
      %1833 = vmatprep.mubr.bf16.mxu0 0
      %1834 = vmatmul.mubr.bf16.gmra.mrb[0].mxu0 %v1595
      %v1835 = vpop.f32.mrb[0].mxu0
      %v1836 = vadd.f32 %v1583, %v1835
      %v1837 = vpop.f32.mrb[0].mxu0
      %v1838 = vpop.f32.mrb[0].mxu0
      %v1839 = vadd.f32 %v1583, %v1838
      %v1840 = vpop.f32.mrb[0].mxu0
      %1841 = vmatprep.mubr.bf16.mxu0 0
      %1842 = vmatmul.mubr.bf16.gmra.mrb[0].mxu0 %v1598
      %v1843 = vpop.f32.mrb[0].mxu0
      %v1844 = vadd.f32 %v1583, %v1843
      %v1845 = vpop.f32.mrb[0].mxu0
      %v1846 = vpop.f32.mrb[0].mxu0
      %v1847 = vadd.f32 %v1583, %v1846
      %v1848 = vpop.f32.mrb[0].mxu0
      %1849 = vmatprep.mubr.bf16.mxu0 0
      %1850 = vmatmul.mubr.bf16.gmra.mrb[0].mxu0 %v1601
      %v1851 = vpop.f32.mrb[0].mxu0
      %v1852 = vadd.f32 %v1583, %v1851
      %v1853 = vpop.f32.mrb[0].mxu0
      %v1854 = vpop.f32.mrb[0].mxu0
      %v1855 = vadd.f32 %v1583, %v1854
      %v1856 = vpop.f32.mrb[0].mxu0
      %1857 = vmatprep.mubr.bf16.mxu0 0
      %1858 = vmatmul.mubr.bf16.gmra.mrb[0].mxu0 %v1604
      %v1859 = vpop.f32.mrb[0].mxu0
      %v1860 = vadd.f32 %v1583, %v1859
      %v1861 = vpop.f32.mrb[0].mxu0
      %v1862 = vpop.f32.mrb[0].mxu0
      %v1863 = vadd.f32 %v1583, %v1862
      %v1864 = vpop.f32.mrb[0].mxu0
      %1865 = vmatprep.mubr.bf16.mxu0 0
      %1866 = vmatmul.mubr.bf16.gmra.mrb[0].mxu0 %v1607
      %v1867 = vpop.f32.mrb[0].mxu0
      %v1868 = vadd.f32 %v1583, %v1867
      %v1869 = vpop.f32.mrb[0].mxu0
      %v1870 = vpop.f32.mrb[0].mxu0
      %v1871 = vadd.f32 %v1583, %v1870
      %v1872 = vpop.f32.mrb[0].mxu0
      %1873 = vmatprep.mubr.bf16.mxu0 0
      %1874 = vmatmul.mubr.bf16.gmra.mrb[0].mxu0 %v1610
      %v1875 = vpop.f32.mrb[0].mxu0
      %v1876 = vadd.f32 %v1583, %v1875
      %v1877 = vpop.f32.mrb[0].mxu0
      %v1878 = vpop.f32.mrb[0].mxu0
      %v1879 = vadd.f32 %v1583, %v1878
      %v1880 = vpop.f32.mrb[0].mxu0
      %1881 = vmatprep.mubr.bf16.mxu0 0
      %1882 = vmatmul.mubr.bf16.gmra.mrb[0].mxu0 %v1613
      %v1883 = vpop.f32.mrb[0].mxu0
      %v1884 = vadd.f32 %v1583, %v1883
      %v1885 = vpop.f32.mrb[0].mxu0
      %v1886 = vpop.f32.mrb[0].mxu0
      %v1887 = vadd.f32 %v1583, %v1886
      %v1888 = vpop.f32.mrb[0].mxu0
      %1889 = vmatprep.mubr.bf16.mxu0 0
      %1890 = vmatmul.mubr.bf16.gmra.mrb[0].mxu0 %v1616
      %v1891 = vpop.f32.mrb[0].mxu0
      %v1892 = vadd.f32 %v1583, %v1891
      %v1893 = vpop.f32.mrb[0].mxu0
      %v1894 = vpop.f32.mrb[0].mxu0
      %v1895 = vadd.f32 %v1583, %v1894
      %v1896 = vpop.f32.mrb[0].mxu0
      %1897 = vmatprep.mubr.bf16.mxu0 0
      %1898 = vmatmul.mubr.bf16.gmra.mrb[0].mxu0 %v1619
      %v1899 = vpop.f32.mrb[0].mxu0
      %v1900 = vadd.f32 %v1583, %v1899
      %v1901 = vpop.f32.mrb[0].mxu0
      %v1902 = vpop.f32.mrb[0].mxu0
      %v1903 = vadd.f32 %v1583, %v1902
      %v1904 = vpop.f32.mrb[0].mxu0
      %1905 = vmatprep.mubr.bf16.mxu0 0
      %1906 = vmatmul.mubr.bf16.gmra.mrb[0].mxu0 %v1622
      %v1907 = vpop.f32.mrb[0].mxu0
      %v1908 = vadd.f32 %v1583, %v1907
      %v1909 = vpop.f32.mrb[0].mxu0
      %v1910 = vpop.f32.mrb[0].mxu0
      %v1911 = vadd.f32 %v1583, %v1910
      %v1912 = vpop.f32.mrb[0].mxu0
      %1913 = vmatprep.mubr.bf16.mxu0 0
      %1914 = vmatmul.mubr.bf16.gmra.mrb[0].mxu0 %v1625
      %v1915 = vpop.f32.mrb[0].mxu0
      %v1916 = vadd.f32 %v1583, %v1915
      %v1917 = vpop.f32.mrb[0].mxu0
      %v1918 = vpop.f32.mrb[0].mxu0
      %v1919 = vadd.f32 %v1583, %v1918
      %v1920 = vpop.f32.mrb[0].mxu0
      %1921 = vmatprep.mubr.bf16.mxu0 0
      %1922 = vmatmul.mubr.bf16.gmra.mrb[0].mxu0 %v1628
      %v1923 = vpop.f32.mrb[0].mxu0
      %v1924 = vadd.f32 %v1583, %v1923
      %v1925 = vpop.f32.mrb[0].mxu0
      %v1926 = vpop.f32.mrb[0].mxu0
      %v1927 = vadd.f32 %v1583, %v1926
      %v1928 = vpop.f32.mrb[0].mxu0
      %1929 = vmatprep.mubr.bf16.mxu0 0
      %1930 = vmatmul.mubr.bf16.gmra.mrb[0].mxu0 %v1631
      %v1931 = vpop.f32.mrb[0].mxu0
      %v1932 = vadd.f32 %v1583, %v1931
      %v1933 = vpop.f32.mrb[0].mxu0
      %v1934 = vpop.f32.mrb[0].mxu0
      %v1935 = vadd.f32 %v1583, %v1934
      %v1936 = vpop.f32.mrb[0].mxu0
      %1937 = vmatprep.mubr.bf16.mxu0 0
      %1938 = vmatmul.mubr.bf16.gmra.mrb[0].mxu0 %v1634
      %v1939 = vpop.f32.mrb[0].mxu0
      %v1940 = vadd.f32 %v1583, %v1939
      %v1941 = vpop.f32.mrb[0].mxu0
      %v1942 = vpop.f32.mrb[0].mxu0
      %v1943 = vadd.f32 %v1583, %v1942
      %v1944 = vpop.f32.mrb[0].mxu0
      %1945 = vmatprep.mubr.bf16.mxu0 0
      %1946 = vmatmul.mubr.bf16.gmra.mrb[0].mxu0 %v1637
      %v1947 = vpop.f32.mrb[0].mxu0
      %v1948 = vadd.f32 %v1583, %v1947
      %v1949 = vpop.f32.mrb[0].mxu0
      %v1950 = vpop.f32.mrb[0].mxu0
      %v1951 = vadd.f32 %v1583, %v1950
      %v1952 = vpop.f32.mrb[0].mxu0
      %1953 = vmatprep.mubr.bf16.mxu0 0
      %1954 = vmatmul.mubr.bf16.gmra.mrb[0].mxu0 %v1640
      %v1955 = vpop.f32.mrb[0].mxu0
      %v1956 = vadd.f32 %v1583, %v1955
      %v1957 = vpop.f32.mrb[0].mxu0
      %v1958 = vpop.f32.mrb[0].mxu0
      %v1959 = vadd.f32 %v1583, %v1958
      %v1960 = vpop.f32.mrb[0].mxu0
      %1961 = vmatprep.mubr.bf16.mxu0 0
      %1962 = vmatmul.mubr.bf16.gmra.mrb[0].mxu0 %v1643
      %v1963 = vpop.f32.mrb[0].mxu0
      %v1964 = vadd.f32 %v1583, %v1963
      %v1965 = vpop.f32.mrb[0].mxu0
      %v1966 = vpop.f32.mrb[0].mxu0
      %v1967 = vadd.f32 %v1583, %v1966
      %v1968 = vpop.f32.mrb[0].mxu0
      %1969 = vmatprep.mubr.bf16.mxu0 0
      %1970 = vmatmul.mubr.bf16.gmra.mrb[0].mxu0 %v1646
      %v1971 = vpop.f32.mrb[0].mxu0
      %v1972 = vadd.f32 %v1583, %v1971
      %v1973 = vpop.f32.mrb[0].mxu0
      %v1974 = vpop.f32.mrb[0].mxu0
      %v1975 = vadd.f32 %v1583, %v1974
      %v1976 = vpop.f32.mrb[0].mxu0
      %1977 = vmatprep.mubr.bf16.mxu0 0
      %1978 = vmatmul.mubr.bf16.gmra.mrb[0].mxu0 %v1649
      %v1979 = vpop.f32.mrb[0].mxu0
      %v1980 = vadd.f32 %v1583, %v1979
      %v1981 = vpop.f32.mrb[0].mxu0
      %v1982 = vpop.f32.mrb[0].mxu0
      %v1983 = vadd.f32 %v1583, %v1982
      %v1984 = vpop.f32.mrb[0].mxu0
      %1985 = vmatprep.mubr.bf16.mxu0 0
      %1986 = vmatmul.mubr.bf16.gmra.mrb[0].mxu0 %v1652
      %v1987 = vpop.f32.mrb[0].mxu0
      %v1988 = vadd.f32 %v1583, %v1987
      %v1989 = vpop.f32.mrb[0].mxu0
      %v1990 = vpop.f32.mrb[0].mxu0
      %v1991 = vadd.f32 %v1583, %v1990
      %v1992 = vpop.f32.mrb[0].mxu0
      %1993 = vmatprep.mubr.bf16.mxu0 0
      %1994 = vmatmul.mubr.bf16.gmra.mrb[0].mxu0 %v1655
      %v1995 = vpop.f32.mrb[0].mxu0
      %v1996 = vadd.f32 %v1583, %v1995
      %v1997 = vpop.f32.mrb[0].mxu0
      %v1998 = vpop.f32.mrb[0].mxu0
      %v1999 = vadd.f32 %v1583, %v1998
      %v2000 = vpop.f32.mrb[0].mxu0
      %2001 = vmatprep.mubr.bf16.mxu0 0
      %2002 = vmatmul.mubr.bf16.gmra.mrb[0].mxu0 %v1658
      %v2003 = vpop.f32.mrb[0].mxu0
      %v2004 = vadd.f32 %v1583, %v2003
      %v2005 = vpop.f32.mrb[0].mxu0
      %v2006 = vpop.f32.mrb[0].mxu0
      %v2007 = vadd.f32 %v1583, %v2006
      %v2008 = vpop.f32.mrb[0].mxu0
      %2009 = vmatprep.mubr.bf16.mxu0 0
      %2010 = vmatmul.mubr.bf16.gmra.mrb[0].mxu0 %v1661
      %v2011 = vpop.f32.mrb[0].mxu0
      %v2012 = vadd.f32 %v1583, %v2011
      %v2013 = vpop.f32.mrb[0].mxu0
      %v2014 = vpop.f32.mrb[0].mxu0
      %v2015 = vadd.f32 %v1583, %v2014
      %v2016 = vpop.f32.mrb[0].mxu0
      %2017 = vmatprep.mubr.bf16.mxu0 0
      %2018 = vmatmul.mubr.bf16.gmra.mrb[0].mxu0 %v1664
      %v2019 = vpop.f32.mrb[0].mxu0
      %v2020 = vadd.f32 %v1583, %v2019
      %v2021 = vpop.f32.mrb[0].mxu0
      %v2022 = vpop.f32.mrb[0].mxu0
      %v2023 = vadd.f32 %v1583, %v2022
      %v2024 = vpop.f32.mrb[0].mxu0
      %2025 = vmatprep.mubr.bf16.mxu0 0
      %2026 = vmatmul.mubr.bf16.gmra.mrb[0].mxu0 %v1667
      %v2027 = vpop.f32.mrb[0].mxu0
      %v2028 = vadd.f32 %v1583, %v2027
      %v2029 = vpop.f32.mrb[0].mxu0
      %v2030 = vpop.f32.mrb[0].mxu0
      %v2031 = vadd.f32 %v1583, %v2030
      %v2032 = vpop.f32.mrb[0].mxu0
      %2033 = vmatprep.mubr.bf16.mxu0 0
      %2034 = vmatmul.mubr.bf16.gmra.mrb[0].mxu0 %v1670
      %v2035 = vpop.f32.mrb[0].mxu0
      %v2036 = vadd.f32 %v1583, %v2035
      %v2037 = vpop.f32.mrb[0].mxu0
      %v2038 = vpop.f32.mrb[0].mxu0
      %v2039 = vadd.f32 %v1583, %v2038
      %v2040 = vpop.f32.mrb[0].mxu0
      %2041 = vmatprep.mubr.bf16.mxu0 0
      %2042 = vmatmul.mubr.bf16.gmra.mrb[0].mxu0 %v1673
      %v2043 = vpop.f32.mrb[0].mxu0
      %v2044 = vadd.f32 %v1583, %v2043
      %v2045 = vpop.f32.mrb[0].mxu0
      %v2046 = vpop.f32.mrb[0].mxu0
      %v2047 = vadd.f32 %v1583, %v2046
      %v2048 = vpop.f32.mrb[0].mxu0
      %2049 = vmatprep.mubr.bf16.mxu0 0
      %2050 = vmatmul.mubr.bf16.gmra.mrb[0].mxu0 %v1676
      %v2051 = vpop.f32.mrb[0].mxu0
      %v2052 = vadd.f32 %v1583, %v2051
      %v2053 = vpop.f32.mrb[0].mxu0
      %v2054 = vpop.f32.mrb[0].mxu0
      %v2055 = vadd.f32 %v1583, %v2054
      %v2056 = vpop.f32.mrb[0].mxu0
      %2057 = vmatprep.mubr.bf16.mxu0 0
      %2058 = vmatmul.mubr.bf16.gmra.mrb[0].mxu0 %v1679
      %v2059 = vpop.f32.mrb[0].mxu0
      %v2060 = vadd.f32 %v1583, %v2059
      %v2061 = vpop.f32.mrb[0].mxu0
      %v2062 = vpop.f32.mrb[0].mxu0
      %v2063 = vadd.f32 %v1583, %v2062
      %v2064 = vpop.f32.mrb[0].mxu0
      %2065 = vmatprep.mubr.bf16.mxu0 0
      %2066 = vmatmul.mubr.bf16.gmra.mrb[0].mxu0 %v1682
      %v2067 = vpop.f32.mrb[0].mxu0
      %v2068 = vadd.f32 %v1583, %v2067
      %v2069 = vpop.f32.mrb[0].mxu0
      %v2070 = vpop.f32.mrb[0].mxu0
      %v2071 = vadd.f32 %v1583, %v2070
      %v2072 = vpop.f32.mrb[0].mxu0
      %2073 = vmatprep.mubr.bf16.mxu0 0
      %2074 = vmatmul.mubr.bf16.gmra.mrb[0].mxu0 %v1685
      %v2075 = vpop.f32.mrb[0].mxu0
      %v2076 = vadd.f32 %v1583, %v2075
      %v2077 = vpop.f32.mrb[0].mxu0
      %v2078 = vpop.f32.mrb[0].mxu0
      %v2079 = vadd.f32 %v1583, %v2078
      %v2080 = vpop.f32.mrb[0].mxu0
      %2081 = vmatprep.mubr.bf16.mxu0 0
      %2082 = vmatmul.mubr.bf16.gmra.mrb[0].mxu0 %v1688
      %v2083 = vpop.f32.mrb[0].mxu0
      %v2084 = vadd.f32 %v1583, %v2083
      %v2085 = vpop.f32.mrb[0].mxu0
      %v2086 = vpop.f32.mrb[0].mxu0
      %v2087 = vadd.f32 %v1583, %v2086
      %v2088 = vpop.f32.mrb[0].mxu0
      %2089 = vmatprep.mubr.bf16.mxu0 0
      %2090 = vmatmul.mubr.bf16.gmra.mrb[0].mxu0 %v1691
      %v2091 = vpop.f32.mrb[0].mxu0
      %v2092 = vadd.f32 %v1583, %v2091
      %v2093 = vpop.f32.mrb[0].mxu0
      %v2094 = vpop.f32.mrb[0].mxu0
      %v2095 = vadd.f32 %v1583, %v2094
      %v2096 = vpop.f32.mrb[0].mxu0
      %2097 = vmatprep.mubr.bf16.mxu0 0
      %2098 = vmatmul.mubr.bf16.gmra.mrb[0].mxu0 %v1694
      %v2099 = vpop.f32.mrb[0].mxu0
      %v2100 = vadd.f32 %v1583, %v2099
      %v2101 = vpop.f32.mrb[0].mxu0
      %v2102 = vpop.f32.mrb[0].mxu0
      %v2103 = vadd.f32 %v1583, %v2102
      %v2104 = vpop.f32.mrb[0].mxu0
      %2105 = vmatprep.mubr.bf16.mxu0 0
      %2106 = vmatmul.mubr.bf16.gmra.mrb[0].mxu0 %v1697
      %v2107 = vpop.f32.mrb[0].mxu0
      %v2108 = vadd.f32 %v1583, %v2107
      %v2109 = vpop.f32.mrb[0].mxu0
      %v2110 = vpop.f32.mrb[0].mxu0
      %v2111 = vadd.f32 %v1583, %v2110
      %v2112 = vpop.f32.mrb[0].mxu0
      %2113 = vmatprep.mubr.bf16.mxu0 0
      %2114 = vmatmul.mubr.bf16.gmra.mrb[0].mxu0 %v1700
      %v2115 = vpop.f32.mrb[0].mxu0
      %v2116 = vadd.f32 %v1583, %v2115
      %v2117 = vpop.f32.mrb[0].mxu0
      %v2118 = vpop.f32.mrb[0].mxu0
      %v2119 = vadd.f32 %v1583, %v2118
      %v2120 = vpop.f32.mrb[0].mxu0
      %2121 = vmatprep.mubr.bf16.mxu0 0
      %2122 = vmatmul.mubr.bf16.gmra.mrb[0].mxu0 %v1703
      %v2123 = vpop.f32.mrb[0].mxu0
      %v2124 = vadd.f32 %v1583, %v2123
      %v2125 = vpop.f32.mrb[0].mxu0
      %v2126 = vpop.f32.mrb[0].mxu0
      %v2127 = vadd.f32 %v1583, %v2126
      %v2128 = vpop.f32.mrb[0].mxu0
      %2129 = vmatprep.mubr.bf16.mxu0 0
      %2130 = vmatmul.mubr.bf16.gmra.mrb[0].mxu0 %v1706
      %v2131 = vpop.f32.mrb[0].mxu0
      %v2132 = vadd.f32 %v1583, %v2131
      %v2133 = vpop.f32.mrb[0].mxu0
      %v2134 = vpop.f32.mrb[0].mxu0
      %v2135 = vadd.f32 %v1583, %v2134
      %v2136 = vpop.f32.mrb[0].mxu0
      %2137 = vmatprep.mubr.bf16.mxu0 0
      %2138 = vmatmul.mubr.bf16.gmra.mrb[0].mxu0 %v1709
      %v2139 = vpop.f32.mrb[0].mxu0
      %v2140 = vadd.f32 %v1583, %v2139
      %v2141 = vpop.f32.mrb[0].mxu0
      %v2142 = vpop.f32.mrb[0].mxu0
      %v2143 = vadd.f32 %v1583, %v2142
      %v2144 = vpop.f32.mrb[0].mxu0
      %2145 = vmatprep.mubr.bf16.mxu0 0
      %2146 = vmatmul.mubr.bf16.gmra.mrb[0].mxu0 %v1712
      %v2147 = vpop.f32.mrb[0].mxu0
      %v2148 = vadd.f32 %v1583, %v2147
      %v2149 = vpop.f32.mrb[0].mxu0
      %v2150 = vpop.f32.mrb[0].mxu0
      %v2151 = vadd.f32 %v1583, %v2150
      %v2152 = vpop.f32.mrb[0].mxu0
      %2153 = vmatprep.mubr.bf16.mxu0 0
      %2154 = vmatmul.mubr.bf16.gmra.mrb[0].mxu0 %v1715
      %v2155 = vpop.f32.mrb[0].mxu0
      %v2156 = vadd.f32 %v1583, %v2155
      %v2157 = vpop.f32.mrb[0].mxu0
      %v2158 = vpop.f32.mrb[0].mxu0
      %v2159 = vadd.f32 %v1583, %v2158
      %v2160 = vpop.f32.mrb[0].mxu0
      %2161 = vmatprep.mubr.bf16.mxu0 0
      %2162 = vmatmul.mubr.bf16.gmra.mrb[0].mxu0 %v1718
      %v2163 = vpop.f32.mrb[0].mxu0
      %v2164 = vadd.f32 %v1583, %v2163
      %v2165 = vpop.f32.mrb[0].mxu0
      %v2166 = vpop.f32.mrb[0].mxu0
      %v2167 = vadd.f32 %v1583, %v2166
      %v2168 = vpop.f32.mrb[0].mxu0
      %2169 = vmatprep.mubr.bf16.mxu0 0
      %2170 = vmatmul.mubr.bf16.gmra.mrb[0].mxu0 %v1721
      %v2171 = vpop.f32.mrb[0].mxu0
      %v2172 = vadd.f32 %v1583, %v2171
      %v2173 = vpop.f32.mrb[0].mxu0
      %v2174 = vpop.f32.mrb[0].mxu0
      %v2175 = vadd.f32 %v1583, %v2174
      %v2176 = vpop.f32.mrb[0].mxu0
      %2177 = vmatprep.mubr.bf16.mxu0 0
      %2178 = vmatmul.mubr.bf16.gmra.mrb[0].mxu0 %v1724
      %v2179 = vpop.f32.mrb[0].mxu0
      %v2180 = vadd.f32 %v1583, %v2179
      %v2181 = vpop.f32.mrb[0].mxu0
      %v2182 = vpop.f32.mrb[0].mxu0
      %v2183 = vadd.f32 %v1583, %v2182
      %v2184 = vpop.f32.mrb[0].mxu0
      %2185 = vmatprep.mubr.bf16.mxu0 0
      %2186 = vmatmul.mubr.bf16.gmra.mrb[0].mxu0 %v1727
      %v2187 = vpop.f32.mrb[0].mxu0
      %v2188 = vadd.f32 %v1583, %v2187
      %v2189 = vpop.f32.mrb[0].mxu0
      %v2190 = vpop.f32.mrb[0].mxu0
      %v2191 = vadd.f32 %v1583, %v2190
      %v2192 = vpop.f32.mrb[0].mxu0
      %2193 = vmatprep.mubr.bf16.mxu0 0
      %2194 = vmatmul.mubr.bf16.gmra.mrb[0].mxu0 %v1730
      %v2195 = vpop.f32.mrb[0].mxu0
      %v2196 = vadd.f32 %v1583, %v2195
      %v2197 = vpop.f32.mrb[0].mxu0
      %v2198 = vpop.f32.mrb[0].mxu0
      %v2199 = vadd.f32 %v1583, %v2198
      %v2200 = vpop.f32.mrb[0].mxu0
      %2201 = vmatprep.mubr.bf16.mxu0 0
      %2202 = vmatmul.mubr.bf16.gmra.mrb[0].mxu0 %v1733
      %v2203 = vpop.f32.mrb[0].mxu0
      %v2204 = vadd.f32 %v1583, %v2203
      %v2205 = vpop.f32.mrb[0].mxu0
      %v2206 = vpop.f32.mrb[0].mxu0
      %v2207 = vadd.f32 %v1583, %v2206
      %v2208 = vpop.f32.mrb[0].mxu0
      %2209 = vmatprep.mubr.bf16.mxu0 0
      %2210 = vmatmul.mubr.bf16.gmra.mrb[0].mxu0 %v1736
      %v2211 = vpop.f32.mrb[0].mxu0
      %v2212 = vadd.f32 %v1583, %v2211
      %v2213 = vpop.f32.mrb[0].mxu0
      %v2214 = vpop.f32.mrb[0].mxu0
      %v2215 = vadd.f32 %v1583, %v2214
      %v2216 = vpop.f32.mrb[0].mxu0
      %2217 = vmatprep.mubr.bf16.mxu0 0
      %2218 = vmatmul.mubr.bf16.gmra.mrb[0].mxu0 %v1739
      %v2219 = vpop.f32.mrb[0].mxu0
      %v2220 = vadd.f32 %v1583, %v2219
      %v2221 = vpop.f32.mrb[0].mxu0
      %v2222 = vpop.f32.mrb[0].mxu0
      %v2223 = vadd.f32 %v1583, %v2222
      %v2224 = vpop.f32.mrb[0].mxu0
      %2225 = vmatprep.mubr.bf16.mxu0 0
      %2226 = vmatmul.mubr.bf16.gmra.mrb[0].mxu0 %v1742
      %v2227 = vpop.f32.mrb[0].mxu0
      %v2228 = vadd.f32 %v1583, %v2227
      %v2229 = vpop.f32.mrb[0].mxu0
      %v2230 = vpop.f32.mrb[0].mxu0
      %v2231 = vadd.f32 %v1583, %v2230
      %v2232 = vpop.f32.mrb[0].mxu0
      %2233 = vmatprep.mubr.bf16.mxu0 0
      %2234 = vmatmul.mubr.bf16.gmra.mrb[0].mxu0 %v1745
      %v2235 = vpop.f32.mrb[0].mxu0
      %v2236 = vadd.f32 %v1583, %v2235
      %v2237 = vpop.f32.mrb[0].mxu0
      %v2238 = vpop.f32.mrb[0].mxu0
      %v2239 = vadd.f32 %v1583, %v2238
      %v2240 = vpop.f32.mrb[0].mxu0
      %2241 = vmatprep.mubr.bf16.mxu0 0
      %2242 = vmatmul.mubr.bf16.gmra.mrb[0].mxu0 %v1748
      %v2243 = vpop.f32.mrb[0].mxu0
      %v2244 = vadd.f32 %v1583, %v2243
      %v2245 = vpop.f32.mrb[0].mxu0
      %v2246 = vpop.f32.mrb[0].mxu0
      %v2247 = vadd.f32 %v1583, %v2246
      %v2248 = vpop.f32.mrb[0].mxu0
      %2249 = vmatprep.mubr.bf16.mxu0 0
      %2250 = vmatmul.mubr.bf16.gmra.mrb[0].mxu0 %v1751
      %v2251 = vpop.f32.mrb[0].mxu0
      %v2252 = vadd.f32 %v1583, %v2251
      %v2253 = vpop.f32.mrb[0].mxu0
      %v2254 = vpop.f32.mrb[0].mxu0
      %v2255 = vadd.f32 %v1583, %v2254
      %v2256 = vpop.f32.mrb[0].mxu0
      %2257 = vmatprep.mubr.bf16.mxu0 0
      %2258 = vmatmul.mubr.bf16.gmra.mrb[0].mxu0 %v1754
      %v2259 = vpop.f32.mrb[0].mxu0
      %v2260 = vadd.f32 %v1583, %v2259
      %v2261 = vpop.f32.mrb[0].mxu0
      %v2262 = vpop.f32.mrb[0].mxu0
      %v2263 = vadd.f32 %v1583, %v2262
      %v2264 = vpop.f32.mrb[0].mxu0
      %2265 = vmatprep.mubr.bf16.mxu0 0
      %2266 = vmatmul.mubr.bf16.gmra.mrb[0].mxu0 %v1757
      %v2267 = vpop.f32.mrb[0].mxu0
      %v2268 = vadd.f32 %v1583, %v2267
      %v2269 = vpop.f32.mrb[0].mxu0
      %v2270 = vpop.f32.mrb[0].mxu0
      %v2271 = vadd.f32 %v1583, %v2270
      %v2272 = vpop.f32.mrb[0].mxu0
      %2273 = vmatprep.mubr.bf16.mxu0 0
      %2274 = vmatmul.mubr.bf16.gmra.mrb[0].mxu0 %v1760
      %v2275 = vpop.f32.mrb[0].mxu0
      %v2276 = vadd.f32 %v1583, %v2275
      %v2277 = vpop.f32.mrb[0].mxu0
      %v2278 = vpop.f32.mrb[0].mxu0
      %v2279 = vadd.f32 %v1583, %v2278
      %v2280 = vpop.f32.mrb[0].mxu0
      %2281 = vmatprep.mubr.bf16.mxu0 0
      %2282 = vmatmul.mubr.bf16.gmra.mrb[0].mxu0 %v1763
      %v2283 = vpop.f32.mrb[0].mxu0
      %v2284 = vadd.f32 %v1583, %v2283
      %v2285 = vpop.f32.mrb[0].mxu0
      %v2286 = vpop.f32.mrb[0].mxu0
      %v2287 = vadd.f32 %v1583, %v2286
      %v2288 = vpop.f32.mrb[0].mxu0
      %2289 = vmatprep.mubr.bf16.mxu0 0
      %2290 = vmatmul.mubr.bf16.gmra.mrb[0].mxu0 %v1766
      %v2291 = vpop.f32.mrb[0].mxu0
      %v2292 = vadd.f32 %v1583, %v2291
      %v2293 = vpop.f32.mrb[0].mxu0
      %v2294 = vpop.f32.mrb[0].mxu0
      %v2295 = vadd.f32 %v1583, %v2294
      %v2296 = vpop.f32.mrb[0].mxu0
      %2297 = vmatprep.mubr.bf16.mxu0 0
      %2298 = vmatmul.mubr.bf16.gmra.mrb[0].mxu0 %v1769
      %v2299 = vpop.f32.mrb[0].mxu0
      %v2300 = vadd.f32 %v1583, %v2299
      %v2301 = vpop.f32.mrb[0].mxu0
      %v2302 = vpop.f32.mrb[0].mxu0
      %v2303 = vadd.f32 %v1583, %v2302
      %v2304 = vpop.f32.mrb[0].mxu0
      %2305 = vmatprep.mubr.bf16.mxu0 0
      %2306 = vmatmul.mubr.bf16.gmra.mrb[0].mxu0 %v1772
      %v2307 = vpop.f32.mrb[0].mxu0
      %v2308 = vadd.f32 %v1583, %v2307
      %v2309 = vpop.f32.mrb[0].mxu0
      %v2310 = vpop.f32.mrb[0].mxu0
      %v2311 = vadd.f32 %v1583, %v2310
      %v2312 = vpop.f32.mrb[0].mxu0
      %2313 = vmatprep.mubr.bf16.mxu0 0
      %2314 = vmatmul.mubr.bf16.gmra.mrb[0].mxu0 %v1775
      %v2315 = vpop.f32.mrb[0].mxu0
      %v2316 = vadd.f32 %v1583, %v2315
      %v2317 = vpop.f32.mrb[0].mxu0
      %v2318 = vpop.f32.mrb[0].mxu0
      %v2319 = vadd.f32 %v1583, %v2318
      %v2320 = vpop.f32.mrb[0].mxu0
      %2321 = vdwg.mxu0
      %v2322 = vmax.f32 %v1812, 0.0
      %v2323 = vmax.f32 %v1815, 0.0
      %v2324 = vmax.f32 %v1820, 0.0
      %v2325 = vmax.f32 %v1823, 0.0
      %v2326 = vmax.f32 %v1828, 0.0
      %v2327 = vmax.f32 %v1831, 0.0
      %v2328 = vmax.f32 %v1836, 0.0
      %v2329 = vmax.f32 %v1839, 0.0
      %v2330 = vmax.f32 %v1844, 0.0
      %v2331 = vmax.f32 %v1847, 0.0
      %v2332 = vmax.f32 %v1852, 0.0
      %v2333 = vmax.f32 %v1855, 0.0
      %v2334 = vmax.f32 %v1860, 0.0
      %v2335 = vmax.f32 %v1863, 0.0
      %v2336 = vmax.f32 %v1868, 0.0
      %v2337 = vmax.f32 %v1871, 0.0
      %v2338 = vmax.f32 %v1876, 0.0
      %v2339 = vmax.f32 %v1879, 0.0
      %v2340 = vmax.f32 %v1884, 0.0
      %v2341 = vmax.f32 %v1887, 0.0
      %v2342 = vmax.f32 %v1892, 0.0
      %v2343 = vmax.f32 %v1895, 0.0
      %v2344 = vmax.f32 %v1900, 0.0
      %v2345 = vmax.f32 %v1903, 0.0
      %v2346 = vmax.f32 %v1908, 0.0
      %v2347 = vmax.f32 %v1911, 0.0
      %v2348 = vmax.f32 %v1916, 0.0
      %v2349 = vmax.f32 %v1919, 0.0
      %v2350 = vmax.f32 %v1924, 0.0
      %v2351 = vmax.f32 %v1927, 0.0
      %v2352 = vmax.f32 %v1932, 0.0
      %v2353 = vmax.f32 %v1935, 0.0
      %v2354 = vmax.f32 %v1940, 0.0
      %v2355 = vmax.f32 %v1943, 0.0
      %v2356 = vmax.f32 %v1948, 0.0
      %v2357 = vmax.f32 %v1951, 0.0
      %v2358 = vmax.f32 %v1956, 0.0
      %v2359 = vmax.f32 %v1959, 0.0
      %v2360 = vmax.f32 %v1964, 0.0
      %v2361 = vmax.f32 %v1967, 0.0
      %v2362 = vmax.f32 %v1972, 0.0
      %v2363 = vmax.f32 %v1975, 0.0
      %v2364 = vmax.f32 %v1980, 0.0
      %v2365 = vmax.f32 %v1983, 0.0
      %v2366 = vmax.f32 %v1988, 0.0
      %v2367 = vmax.f32 %v1991, 0.0
      %v2368 = vmax.f32 %v1996, 0.0
      %v2369 = vmax.f32 %v1999, 0.0
      %v2370 = vmax.f32 %v2004, 0.0
      %v2371 = vmax.f32 %v2007, 0.0
      %v2372 = vmax.f32 %v2012, 0.0
      %v2373 = vmax.f32 %v2015, 0.0
      %v2374 = vmax.f32 %v2020, 0.0
      %v2375 = vmax.f32 %v2023, 0.0
      %v2376 = vmax.f32 %v2028, 0.0
      %v2377 = vmax.f32 %v2031, 0.0
      %v2378 = vmax.f32 %v2036, 0.0
      %v2379 = vmax.f32 %v2039, 0.0
      %v2380 = vmax.f32 %v2044, 0.0
      %v2381 = vmax.f32 %v2047, 0.0
      %v2382 = vmax.f32 %v2052, 0.0
      %v2383 = vmax.f32 %v2055, 0.0
      %v2384 = vmax.f32 %v2060, 0.0
      %v2385 = vmax.f32 %v2063, 0.0
      %v2386 = vmax.f32 %v2068, 0.0
      %v2387 = vmax.f32 %v2071, 0.0
      %v2388 = vmax.f32 %v2076, 0.0
      %v2389 = vmax.f32 %v2079, 0.0
      %v2390 = vmax.f32 %v2084, 0.0
      %v2391 = vmax.f32 %v2087, 0.0
      %v2392 = vmax.f32 %v2092, 0.0
      %v2393 = vmax.f32 %v2095, 0.0
      %v2394 = vmax.f32 %v2100, 0.0
      %v2395 = vmax.f32 %v2103, 0.0
      %v2396 = vmax.f32 %v2108, 0.0
      %v2397 = vmax.f32 %v2111, 0.0
      %v2398 = vmax.f32 %v2116, 0.0
      %v2399 = vmax.f32 %v2119, 0.0
      %v2400 = vmax.f32 %v2124, 0.0
      %v2401 = vmax.f32 %v2127, 0.0
      %v2402 = vmax.f32 %v2132, 0.0
      %v2403 = vmax.f32 %v2135, 0.0
      %v2404 = vmax.f32 %v2140, 0.0
      %v2405 = vmax.f32 %v2143, 0.0
      %v2406 = vmax.f32 %v2148, 0.0
      %v2407 = vmax.f32 %v2151, 0.0
      %v2408 = vmax.f32 %v2156, 0.0
      %v2409 = vmax.f32 %v2159, 0.0
      %v2410 = vmax.f32 %v2164, 0.0
      %v2411 = vmax.f32 %v2167, 0.0
      %v2412 = vmax.f32 %v2172, 0.0
      %v2413 = vmax.f32 %v2175, 0.0
      %v2414 = vmax.f32 %v2180, 0.0
      %v2415 = vmax.f32 %v2183, 0.0
      %v2416 = vmax.f32 %v2188, 0.0
      %v2417 = vmax.f32 %v2191, 0.0
      %v2418 = vmax.f32 %v2196, 0.0
      %v2419 = vmax.f32 %v2199, 0.0
      %v2420 = vmax.f32 %v2204, 0.0
      %v2421 = vmax.f32 %v2207, 0.0
      %v2422 = vmax.f32 %v2212, 0.0
      %v2423 = vmax.f32 %v2215, 0.0
      %v2424 = vmax.f32 %v2220, 0.0
      %v2425 = vmax.f32 %v2223, 0.0
      %v2426 = vmax.f32 %v2228, 0.0
      %v2427 = vmax.f32 %v2231, 0.0
      %v2428 = vmax.f32 %v2236, 0.0
      %v2429 = vmax.f32 %v2239, 0.0
      %v2430 = vmax.f32 %v2244, 0.0
      %v2431 = vmax.f32 %v2247, 0.0
      %v2432 = vmax.f32 %v2252, 0.0
      %v2433 = vmax.f32 %v2255, 0.0
      %v2434 = vmax.f32 %v2260, 0.0
      %v2435 = vmax.f32 %v2263, 0.0
      %v2436 = vmax.f32 %v2268, 0.0
      %v2437 = vmax.f32 %v2271, 0.0
      %v2438 = vmax.f32 %v2276, 0.0
      %v2439 = vmax.f32 %v2279, 0.0
      %v2440 = vmax.f32 %v2284, 0.0
      %v2441 = vmax.f32 %v2287, 0.0
      %v2442 = vmax.f32 %v2292, 0.0
      %v2443 = vmax.f32 %v2295, 0.0
      %v2444 = vmax.f32 %v2300, 0.0
      %v2445 = vmax.f32 %v2303, 0.0
      %v2446 = vmax.f32 %v2308, 0.0
      %v2447 = vmax.f32 %v2311, 0.0
      %v2448 = vmax.f32 %v2316, 0.0
      %v2449 = vmax.f32 %v2319, 0.0
      %v2450 = vpack.c.bf16 %v2323, %v2322
      %v2451 = vpack.c.bf16 %v2325, %v2324
      %v2452 = vpack.c.bf16 %v2327, %v2326
      %v2453 = vpack.c.bf16 %v2329, %v2328
      %v2454 = vpack.c.bf16 %v2331, %v2330
      %v2455 = vpack.c.bf16 %v2333, %v2332
      %v2456 = vpack.c.bf16 %v2335, %v2334
      %v2457 = vpack.c.bf16 %v2337, %v2336
      %v2458 = vpack.c.bf16 %v2339, %v2338
      %v2459 = vpack.c.bf16 %v2341, %v2340
      %v2460 = vpack.c.bf16 %v2343, %v2342
      %v2461 = vpack.c.bf16 %v2345, %v2344
      %v2462 = vpack.c.bf16 %v2347, %v2346
      %v2463 = vpack.c.bf16 %v2349, %v2348
      %v2464 = vpack.c.bf16 %v2351, %v2350
      %v2465 = vpack.c.bf16 %v2353, %v2352
      %v2466 = vpack.c.bf16 %v2355, %v2354
      %v2467 = vpack.c.bf16 %v2357, %v2356
      %v2468 = vpack.c.bf16 %v2359, %v2358
      %v2469 = vpack.c.bf16 %v2361, %v2360
      %v2470 = vpack.c.bf16 %v2363, %v2362
      %v2471 = vpack.c.bf16 %v2365, %v2364
      %v2472 = vpack.c.bf16 %v2367, %v2366
      %v2473 = vpack.c.bf16 %v2369, %v2368
      %v2474 = vpack.c.bf16 %v2371, %v2370
      %v2475 = vpack.c.bf16 %v2373, %v2372
      %v2476 = vpack.c.bf16 %v2375, %v2374
      %v2477 = vpack.c.bf16 %v2377, %v2376
      %v2478 = vpack.c.bf16 %v2379, %v2378
      %v2479 = vpack.c.bf16 %v2381, %v2380
      %v2480 = vpack.c.bf16 %v2383, %v2382
      %v2481 = vpack.c.bf16 %v2385, %v2384
      %v2482 = vpack.c.bf16 %v2387, %v2386
      %v2483 = vpack.c.bf16 %v2389, %v2388
      %v2484 = vpack.c.bf16 %v2391, %v2390
      %v2485 = vpack.c.bf16 %v2393, %v2392
      %v2486 = vpack.c.bf16 %v2395, %v2394
      %v2487 = vpack.c.bf16 %v2397, %v2396
      %v2488 = vpack.c.bf16 %v2399, %v2398
      %v2489 = vpack.c.bf16 %v2401, %v2400
      %v2490 = vpack.c.bf16 %v2403, %v2402
      %v2491 = vpack.c.bf16 %v2405, %v2404
      %v2492 = vpack.c.bf16 %v2407, %v2406
      %v2493 = vpack.c.bf16 %v2409, %v2408
      %v2494 = vpack.c.bf16 %v2411, %v2410
      %v2495 = vpack.c.bf16 %v2413, %v2412
      %v2496 = vpack.c.bf16 %v2415, %v2414
      %v2497 = vpack.c.bf16 %v2417, %v2416
      %v2498 = vpack.c.bf16 %v2419, %v2418
      %v2499 = vpack.c.bf16 %v2421, %v2420
      %v2500 = vpack.c.bf16 %v2423, %v2422
      %v2501 = vpack.c.bf16 %v2425, %v2424
      %v2502 = vpack.c.bf16 %v2427, %v2426
      %v2503 = vpack.c.bf16 %v2429, %v2428
      %v2504 = vpack.c.bf16 %v2431, %v2430
      %v2505 = vpack.c.bf16 %v2433, %v2432
      %v2506 = vpack.c.bf16 %v2435, %v2434
      %v2507 = vpack.c.bf16 %v2437, %v2436
      %v2508 = vpack.c.bf16 %v2439, %v2438
      %v2509 = vpack.c.bf16 %v2441, %v2440
      %v2510 = vpack.c.bf16 %v2443, %v2442
      %v2511 = vpack.c.bf16 %v2445, %v2444
      %v2512 = vpack.c.bf16 %v2447, %v2446
      %v2513 = vpack.c.bf16 %v2449, %v2448
      %2514 = vrot.lane.b32.xlu0 %v642, 64
      %v2515 = vpop.permute.xlu0 %2514
      %2516 = vrot.lane.b32.xlu0 %v643, 64
      %v2517 = vpop.permute.xlu0 %2516
      %2520 = vrot.lane.b32.xlu0 %v312, 64
      %v2521 = vpop.permute.xlu0 %2520
      %v2524 = vsel %vm646, %v2450, 0
      %v2527 = vsel %vm646, %v2451, 0
      %v2530 = vsel %vm646, %v2452, 0
      %v2533 = vsel %vm646, %v2453, 0
      %v2536 = vsel %vm646, %v2454, 0
      %v2539 = vsel %vm646, %v2455, 0
      %v2542 = vsel %vm646, %v2456, 0
      %v2545 = vsel %vm646, %v2457, 0
      %v2548 = vsel %vm646, %v2458, 0
      %v2551 = vsel %vm646, %v2459, 0
      %v2554 = vsel %vm646, %v2460, 0
      %v2557 = vsel %vm646, %v2461, 0
      %v2560 = vsel %vm646, %v2462, 0
      %v2563 = vsel %vm646, %v2463, 0
      %v2566 = vsel %vm646, %v2464, 0
      %v2569 = vsel %vm646, %v2465, 0
      %v2572 = vsel %vm646, %v2466, 0
      %v2575 = vsel %vm646, %v2467, 0
      %v2578 = vsel %vm646, %v2468, 0
      %v2581 = vsel %vm646, %v2469, 0
      %v2584 = vsel %vm646, %v2470, 0
      %v2587 = vsel %vm646, %v2471, 0
      %v2590 = vsel %vm646, %v2472, 0
      %v2593 = vsel %vm646, %v2473, 0
      %v2596 = vsel %vm646, %v2474, 0
      %v2599 = vsel %vm646, %v2475, 0
      %v2602 = vsel %vm646, %v2476, 0
      %v2605 = vsel %vm646, %v2477, 0
      %v2608 = vsel %vm646, %v2478, 0
      %v2611 = vsel %vm646, %v2479, 0
      %v2614 = vsel %vm646, %v2480, 0
      %v2617 = vsel %vm646, %v2481, 0
      %v2620 = vsel %vm646, %v2482, 0
      %v2623 = vsel %vm646, %v2483, 0
      %v2626 = vsel %vm646, %v2484, 0
      %v2629 = vsel %vm646, %v2485, 0
      %v2632 = vsel %vm646, %v2486, 0
      %v2635 = vsel %vm646, %v2487, 0
      %v2638 = vsel %vm646, %v2488, 0
      %v2641 = vsel %vm646, %v2489, 0
      %v2644 = vsel %vm646, %v2490, 0
      %v2647 = vsel %vm646, %v2491, 0
      %v2650 = vsel %vm646, %v2492, 0
      %v2653 = vsel %vm646, %v2493, 0
      %v2656 = vsel %vm646, %v2494, 0
      %v2659 = vsel %vm646, %v2495, 0
      %v2662 = vsel %vm646, %v2496, 0
      %v2665 = vsel %vm646, %v2497, 0
      %v2668 = vsel %vm646, %v2498, 0
      %v2671 = vsel %vm646, %v2499, 0
      %v2674 = vsel %vm646, %v2500, 0
      %v2677 = vsel %vm646, %v2501, 0
      %v2680 = vsel %vm646, %v2502, 0
      %v2683 = vsel %vm646, %v2503, 0
      %v2686 = vsel %vm646, %v2504, 0
      %v2689 = vsel %vm646, %v2505, 0
      %v2692 = vsel %vm646, %v2506, 0
      %v2695 = vsel %vm646, %v2507, 0
      %v2698 = vsel %vm646, %v2508, 0
      %v2701 = vsel %vm646, %v2509, 0
      %v2704 = vsel %vm646, %v2510, 0
      %v2707 = vsel %vm646, %v2511, 0
      %v2710 = vsel %vm646, %v2512, 0
      %v2713 = vsel %vm646, %v2513, 0
      %2715 = vmatprep.subr.bf16.mxu0 0
      %2716 = vmatpush1.bf16.msra.mxu0 %v2515
      %2717 = vmatprep.subr.bf16.mxu0 0
      %2718 = vmatpush1.bf16.msra.mxu0 %v2517
      %2719 = vmatprep.subr.bf16.mxu0 0
      %2720 = vmatpush1.bf16.msra.mxu0 0
      %2721 = vmatprep.subr.bf16.mxu0 0
      %2722 = vmatpush1.bf16.msra.mxu0 0
      %2723 = vmatprep.subr.bf16.mxu0 0
      %2724 = vmatpush1.bf16.msra.mxu0 0
      %2725 = vmatprep.subr.bf16.mxu0 0
      %2726 = vmatpush1.bf16.msra.mxu0 0
      %2727 = vmatprep.subr.bf16.mxu0 0
      %2728 = vmatpush1.bf16.msra.mxu0 0
      %2729 = vmatprep.subr.bf16.mxu0 0
      %2730 = vmatpush1.bf16.msra.mxu0 0
      %2731 = vmatprep.subr.bf16.mxu0 0
      %2732 = vmatpush1.bf16.msra.mxu0 0
      %2733 = vmatprep.subr.bf16.mxu0 0
      %2734 = vmatpush1.bf16.msra.mxu0 0
      %2735 = vmatprep.subr.bf16.mxu0 0
      %2736 = vmatpush1.bf16.msra.mxu0 0
      %2737 = vmatprep.subr.bf16.mxu0 0
      %2738 = vmatpush1.bf16.msra.mxu0 0
      %2739 = vmatprep.subr.bf16.mxu0 0
      %2740 = vmatpush1.bf16.msra.mxu0 0
      %2741 = vmatprep.subr.bf16.mxu0 0
      %2742 = vmatpush1.bf16.msra.mxu0 0
      %2743 = vmatprep.subr.bf16.mxu0 0
      %2744 = vmatpush1.bf16.msra.mxu0 0
      %2745 = vmatprep.subr.bf16.mxu0 0
      %2746 = vmatpush1.bf16.msra.mxu0 0
      %2747 = vmatprep.mubr.bf16.mxu0 0
      %2748 = vmatmul.mubr.bf16.gmra.mrb[0].mxu0 %v2524
      %v2749 = vpop.f32.mrb[0].mxu0
      %v2750 = vadd.f32 %v2521, %v2749
      %v2751 = vpop.f32.mrb[0].mxu0
      %v2752 = vpop.f32.mrb[0].mxu0
      %v2753 = vadd.f32 %v2521, %v2752
      %v2754 = vpop.f32.mrb[0].mxu0
      %2755 = vmatprep.mubr.bf16.mxu0 0
      %2756 = vmatmul.mubr.bf16.gmra.mrb[0].mxu0 %v2527
      %v2757 = vpop.f32.mrb[0].mxu0
      %v2758 = vadd.f32 %v2521, %v2757
      %v2759 = vpop.f32.mrb[0].mxu0
      %v2760 = vpop.f32.mrb[0].mxu0
      %v2761 = vadd.f32 %v2521, %v2760
      %v2762 = vpop.f32.mrb[0].mxu0
      %2763 = vmatprep.mubr.bf16.mxu0 0
      %2764 = vmatmul.mubr.bf16.gmra.mrb[0].mxu0 %v2530
      %v2765 = vpop.f32.mrb[0].mxu0
      %v2766 = vadd.f32 %v2521, %v2765
      %v2767 = vpop.f32.mrb[0].mxu0
      %v2768 = vpop.f32.mrb[0].mxu0
      %v2769 = vadd.f32 %v2521, %v2768
      %v2770 = vpop.f32.mrb[0].mxu0
      %2771 = vmatprep.mubr.bf16.mxu0 0
      %2772 = vmatmul.mubr.bf16.gmra.mrb[0].mxu0 %v2533
      %v2773 = vpop.f32.mrb[0].mxu0
      %v2774 = vadd.f32 %v2521, %v2773
      %v2775 = vpop.f32.mrb[0].mxu0
      %v2776 = vpop.f32.mrb[0].mxu0
      %v2777 = vadd.f32 %v2521, %v2776
      %v2778 = vpop.f32.mrb[0].mxu0
      %2779 = vmatprep.mubr.bf16.mxu0 0
      %2780 = vmatmul.mubr.bf16.gmra.mrb[0].mxu0 %v2536
      %v2781 = vpop.f32.mrb[0].mxu0
      %v2782 = vadd.f32 %v2521, %v2781
      %v2783 = vpop.f32.mrb[0].mxu0
      %v2784 = vpop.f32.mrb[0].mxu0
      %v2785 = vadd.f32 %v2521, %v2784
      %v2786 = vpop.f32.mrb[0].mxu0
      %2787 = vmatprep.mubr.bf16.mxu0 0
      %2788 = vmatmul.mubr.bf16.gmra.mrb[0].mxu0 %v2539
      %v2789 = vpop.f32.mrb[0].mxu0
      %v2790 = vadd.f32 %v2521, %v2789
      %v2791 = vpop.f32.mrb[0].mxu0
      %v2792 = vpop.f32.mrb[0].mxu0
      %v2793 = vadd.f32 %v2521, %v2792
      %v2794 = vpop.f32.mrb[0].mxu0
      %2795 = vmatprep.mubr.bf16.mxu0 0
      %2796 = vmatmul.mubr.bf16.gmra.mrb[0].mxu0 %v2542
      %v2797 = vpop.f32.mrb[0].mxu0
      %v2798 = vadd.f32 %v2521, %v2797
      %v2799 = vpop.f32.mrb[0].mxu0
      %v2800 = vpop.f32.mrb[0].mxu0
      %v2801 = vadd.f32 %v2521, %v2800
      %v2802 = vpop.f32.mrb[0].mxu0
      %2803 = vmatprep.mubr.bf16.mxu0 0
      %2804 = vmatmul.mubr.bf16.gmra.mrb[0].mxu0 %v2545
      %v2805 = vpop.f32.mrb[0].mxu0
      %v2806 = vadd.f32 %v2521, %v2805
      %v2807 = vpop.f32.mrb[0].mxu0
      %v2808 = vpop.f32.mrb[0].mxu0
      %v2809 = vadd.f32 %v2521, %v2808
      %v2810 = vpop.f32.mrb[0].mxu0
      %2811 = vmatprep.mubr.bf16.mxu0 0
      %2812 = vmatmul.mubr.bf16.gmra.mrb[0].mxu0 %v2548
      %v2813 = vpop.f32.mrb[0].mxu0
      %v2814 = vadd.f32 %v2521, %v2813
      %v2815 = vpop.f32.mrb[0].mxu0
      %v2816 = vpop.f32.mrb[0].mxu0
      %v2817 = vadd.f32 %v2521, %v2816
      %v2818 = vpop.f32.mrb[0].mxu0
      %2819 = vmatprep.mubr.bf16.mxu0 0
      %2820 = vmatmul.mubr.bf16.gmra.mrb[0].mxu0 %v2551
      %v2821 = vpop.f32.mrb[0].mxu0
      %v2822 = vadd.f32 %v2521, %v2821
      %v2823 = vpop.f32.mrb[0].mxu0
      %v2824 = vpop.f32.mrb[0].mxu0
      %v2825 = vadd.f32 %v2521, %v2824
      %v2826 = vpop.f32.mrb[0].mxu0
      %2827 = vmatprep.mubr.bf16.mxu0 0
      %2828 = vmatmul.mubr.bf16.gmra.mrb[0].mxu0 %v2554
      %v2829 = vpop.f32.mrb[0].mxu0
      %v2830 = vadd.f32 %v2521, %v2829
      %v2831 = vpop.f32.mrb[0].mxu0
      %v2832 = vpop.f32.mrb[0].mxu0
      %v2833 = vadd.f32 %v2521, %v2832
      %v2834 = vpop.f32.mrb[0].mxu0
      %2835 = vmatprep.mubr.bf16.mxu0 0
      %2836 = vmatmul.mubr.bf16.gmra.mrb[0].mxu0 %v2557
      %v2837 = vpop.f32.mrb[0].mxu0
      %v2838 = vadd.f32 %v2521, %v2837
      %v2839 = vpop.f32.mrb[0].mxu0
      %v2840 = vpop.f32.mrb[0].mxu0
      %v2841 = vadd.f32 %v2521, %v2840
      %v2842 = vpop.f32.mrb[0].mxu0
      %2843 = vmatprep.mubr.bf16.mxu0 0
      %2844 = vmatmul.mubr.bf16.gmra.mrb[0].mxu0 %v2560
      %v2845 = vpop.f32.mrb[0].mxu0
      %v2846 = vadd.f32 %v2521, %v2845
      %v2847 = vpop.f32.mrb[0].mxu0
      %v2848 = vpop.f32.mrb[0].mxu0
      %v2849 = vadd.f32 %v2521, %v2848
      %v2850 = vpop.f32.mrb[0].mxu0
      %2851 = vmatprep.mubr.bf16.mxu0 0
      %2852 = vmatmul.mubr.bf16.gmra.mrb[0].mxu0 %v2563
      %v2853 = vpop.f32.mrb[0].mxu0
      %v2854 = vadd.f32 %v2521, %v2853
      %v2855 = vpop.f32.mrb[0].mxu0
      %v2856 = vpop.f32.mrb[0].mxu0
      %v2857 = vadd.f32 %v2521, %v2856
      %v2858 = vpop.f32.mrb[0].mxu0
      %2859 = vmatprep.mubr.bf16.mxu0 0
      %2860 = vmatmul.mubr.bf16.gmra.mrb[0].mxu0 %v2566
      %v2861 = vpop.f32.mrb[0].mxu0
      %v2862 = vadd.f32 %v2521, %v2861
      %v2863 = vpop.f32.mrb[0].mxu0
      %v2864 = vpop.f32.mrb[0].mxu0
      %v2865 = vadd.f32 %v2521, %v2864
      %v2866 = vpop.f32.mrb[0].mxu0
      %2867 = vmatprep.mubr.bf16.mxu0 0
      %2868 = vmatmul.mubr.bf16.gmra.mrb[0].mxu0 %v2569
      %v2869 = vpop.f32.mrb[0].mxu0
      %v2870 = vadd.f32 %v2521, %v2869
      %v2871 = vpop.f32.mrb[0].mxu0
      %v2872 = vpop.f32.mrb[0].mxu0
      %v2873 = vadd.f32 %v2521, %v2872
      %v2874 = vpop.f32.mrb[0].mxu0
      %2875 = vmatprep.mubr.bf16.mxu0 0
      %2876 = vmatmul.mubr.bf16.gmra.mrb[0].mxu0 %v2572
      %v2877 = vpop.f32.mrb[0].mxu0
      %v2878 = vadd.f32 %v2521, %v2877
      %v2879 = vpop.f32.mrb[0].mxu0
      %v2880 = vpop.f32.mrb[0].mxu0
      %v2881 = vadd.f32 %v2521, %v2880
      %v2882 = vpop.f32.mrb[0].mxu0
      %2883 = vmatprep.mubr.bf16.mxu0 0
      %2884 = vmatmul.mubr.bf16.gmra.mrb[0].mxu0 %v2575
      %v2885 = vpop.f32.mrb[0].mxu0
      %v2886 = vadd.f32 %v2521, %v2885
      %v2887 = vpop.f32.mrb[0].mxu0
      %v2888 = vpop.f32.mrb[0].mxu0
      %v2889 = vadd.f32 %v2521, %v2888
      %v2890 = vpop.f32.mrb[0].mxu0
      %2891 = vmatprep.mubr.bf16.mxu0 0
      %2892 = vmatmul.mubr.bf16.gmra.mrb[0].mxu0 %v2578
      %v2893 = vpop.f32.mrb[0].mxu0
      %v2894 = vadd.f32 %v2521, %v2893
      %v2895 = vpop.f32.mrb[0].mxu0
      %v2896 = vpop.f32.mrb[0].mxu0
      %v2897 = vadd.f32 %v2521, %v2896
      %v2898 = vpop.f32.mrb[0].mxu0
      %2899 = vmatprep.mubr.bf16.mxu0 0
      %2900 = vmatmul.mubr.bf16.gmra.mrb[0].mxu0 %v2581
      %v2901 = vpop.f32.mrb[0].mxu0
      %v2902 = vadd.f32 %v2521, %v2901
      %v2903 = vpop.f32.mrb[0].mxu0
      %v2904 = vpop.f32.mrb[0].mxu0
      %v2905 = vadd.f32 %v2521, %v2904
      %v2906 = vpop.f32.mrb[0].mxu0
      %2907 = vmatprep.mubr.bf16.mxu0 0
      %2908 = vmatmul.mubr.bf16.gmra.mrb[0].mxu0 %v2584
      %v2909 = vpop.f32.mrb[0].mxu0
      %v2910 = vadd.f32 %v2521, %v2909
      %v2911 = vpop.f32.mrb[0].mxu0
      %v2912 = vpop.f32.mrb[0].mxu0
      %v2913 = vadd.f32 %v2521, %v2912
      %v2914 = vpop.f32.mrb[0].mxu0
      %2915 = vmatprep.mubr.bf16.mxu0 0
      %2916 = vmatmul.mubr.bf16.gmra.mrb[0].mxu0 %v2587
      %v2917 = vpop.f32.mrb[0].mxu0
      %v2918 = vadd.f32 %v2521, %v2917
      %v2919 = vpop.f32.mrb[0].mxu0
      %v2920 = vpop.f32.mrb[0].mxu0
      %v2921 = vadd.f32 %v2521, %v2920
      %v2922 = vpop.f32.mrb[0].mxu0
      %2923 = vmatprep.mubr.bf16.mxu0 0
      %2924 = vmatmul.mubr.bf16.gmra.mrb[0].mxu0 %v2590
      %v2925 = vpop.f32.mrb[0].mxu0
      %v2926 = vadd.f32 %v2521, %v2925
      %v2927 = vpop.f32.mrb[0].mxu0
      %v2928 = vpop.f32.mrb[0].mxu0
      %v2929 = vadd.f32 %v2521, %v2928
      %v2930 = vpop.f32.mrb[0].mxu0
      %2931 = vmatprep.mubr.bf16.mxu0 0
      %2932 = vmatmul.mubr.bf16.gmra.mrb[0].mxu0 %v2593
      %v2933 = vpop.f32.mrb[0].mxu0
      %v2934 = vadd.f32 %v2521, %v2933
      %v2935 = vpop.f32.mrb[0].mxu0
      %v2936 = vpop.f32.mrb[0].mxu0
      %v2937 = vadd.f32 %v2521, %v2936
      %v2938 = vpop.f32.mrb[0].mxu0
      %2939 = vmatprep.mubr.bf16.mxu0 0
      %2940 = vmatmul.mubr.bf16.gmra.mrb[0].mxu0 %v2596
      %v2941 = vpop.f32.mrb[0].mxu0
      %v2942 = vadd.f32 %v2521, %v2941
      %v2943 = vpop.f32.mrb[0].mxu0
      %v2944 = vpop.f32.mrb[0].mxu0
      %v2945 = vadd.f32 %v2521, %v2944
      %v2946 = vpop.f32.mrb[0].mxu0
      %2947 = vmatprep.mubr.bf16.mxu0 0
      %2948 = vmatmul.mubr.bf16.gmra.mrb[0].mxu0 %v2599
      %v2949 = vpop.f32.mrb[0].mxu0
      %v2950 = vadd.f32 %v2521, %v2949
      %v2951 = vpop.f32.mrb[0].mxu0
      %v2952 = vpop.f32.mrb[0].mxu0
      %v2953 = vadd.f32 %v2521, %v2952
      %v2954 = vpop.f32.mrb[0].mxu0
      %2955 = vmatprep.mubr.bf16.mxu0 0
      %2956 = vmatmul.mubr.bf16.gmra.mrb[0].mxu0 %v2602
      %v2957 = vpop.f32.mrb[0].mxu0
      %v2958 = vadd.f32 %v2521, %v2957
      %v2959 = vpop.f32.mrb[0].mxu0
      %v2960 = vpop.f32.mrb[0].mxu0
      %v2961 = vadd.f32 %v2521, %v2960
      %v2962 = vpop.f32.mrb[0].mxu0
      %2963 = vmatprep.mubr.bf16.mxu0 0
      %2964 = vmatmul.mubr.bf16.gmra.mrb[0].mxu0 %v2605
      %v2965 = vpop.f32.mrb[0].mxu0
      %v2966 = vadd.f32 %v2521, %v2965
      %v2967 = vpop.f32.mrb[0].mxu0
      %v2968 = vpop.f32.mrb[0].mxu0
      %v2969 = vadd.f32 %v2521, %v2968
      %v2970 = vpop.f32.mrb[0].mxu0
      %2971 = vmatprep.mubr.bf16.mxu0 0
      %2972 = vmatmul.mubr.bf16.gmra.mrb[0].mxu0 %v2608
      %v2973 = vpop.f32.mrb[0].mxu0
      %v2974 = vadd.f32 %v2521, %v2973
      %v2975 = vpop.f32.mrb[0].mxu0
      %v2976 = vpop.f32.mrb[0].mxu0
      %v2977 = vadd.f32 %v2521, %v2976
      %v2978 = vpop.f32.mrb[0].mxu0
      %2979 = vmatprep.mubr.bf16.mxu0 0
      %2980 = vmatmul.mubr.bf16.gmra.mrb[0].mxu0 %v2611
      %v2981 = vpop.f32.mrb[0].mxu0
      %v2982 = vadd.f32 %v2521, %v2981
      %v2983 = vpop.f32.mrb[0].mxu0
      %v2984 = vpop.f32.mrb[0].mxu0
      %v2985 = vadd.f32 %v2521, %v2984
      %v2986 = vpop.f32.mrb[0].mxu0
      %2987 = vmatprep.mubr.bf16.mxu0 0
      %2988 = vmatmul.mubr.bf16.gmra.mrb[0].mxu0 %v2614
      %v2989 = vpop.f32.mrb[0].mxu0
      %v2990 = vadd.f32 %v2521, %v2989
      %v2991 = vpop.f32.mrb[0].mxu0
      %v2992 = vpop.f32.mrb[0].mxu0
      %v2993 = vadd.f32 %v2521, %v2992
      %v2994 = vpop.f32.mrb[0].mxu0
      %2995 = vmatprep.mubr.bf16.mxu0 0
      %2996 = vmatmul.mubr.bf16.gmra.mrb[0].mxu0 %v2617
      %v2997 = vpop.f32.mrb[0].mxu0
      %v2998 = vadd.f32 %v2521, %v2997
      %v2999 = vpop.f32.mrb[0].mxu0
      %v3000 = vpop.f32.mrb[0].mxu0
      %v3001 = vadd.f32 %v2521, %v3000
      %v3002 = vpop.f32.mrb[0].mxu0
      %3003 = vmatprep.mubr.bf16.mxu0 0
      %3004 = vmatmul.mubr.bf16.gmra.mrb[0].mxu0 %v2620
      %v3005 = vpop.f32.mrb[0].mxu0
      %v3006 = vadd.f32 %v2521, %v3005
      %v3007 = vpop.f32.mrb[0].mxu0
      %v3008 = vpop.f32.mrb[0].mxu0
      %v3009 = vadd.f32 %v2521, %v3008
      %v3010 = vpop.f32.mrb[0].mxu0
      %3011 = vmatprep.mubr.bf16.mxu0 0
      %3012 = vmatmul.mubr.bf16.gmra.mrb[0].mxu0 %v2623
      %v3013 = vpop.f32.mrb[0].mxu0
      %v3014 = vadd.f32 %v2521, %v3013
      %v3015 = vpop.f32.mrb[0].mxu0
      %v3016 = vpop.f32.mrb[0].mxu0
      %v3017 = vadd.f32 %v2521, %v3016
      %v3018 = vpop.f32.mrb[0].mxu0
      %3019 = vmatprep.mubr.bf16.mxu0 0
      %3020 = vmatmul.mubr.bf16.gmra.mrb[0].mxu0 %v2626
      %v3021 = vpop.f32.mrb[0].mxu0
      %v3022 = vadd.f32 %v2521, %v3021
      %v3023 = vpop.f32.mrb[0].mxu0
      %v3024 = vpop.f32.mrb[0].mxu0
      %v3025 = vadd.f32 %v2521, %v3024
      %v3026 = vpop.f32.mrb[0].mxu0
      %3027 = vmatprep.mubr.bf16.mxu0 0
      %3028 = vmatmul.mubr.bf16.gmra.mrb[0].mxu0 %v2629
      %v3029 = vpop.f32.mrb[0].mxu0
      %v3030 = vadd.f32 %v2521, %v3029
      %v3031 = vpop.f32.mrb[0].mxu0
      %v3032 = vpop.f32.mrb[0].mxu0
      %v3033 = vadd.f32 %v2521, %v3032
      %v3034 = vpop.f32.mrb[0].mxu0
      %3035 = vmatprep.mubr.bf16.mxu0 0
      %3036 = vmatmul.mubr.bf16.gmra.mrb[0].mxu0 %v2632
      %v3037 = vpop.f32.mrb[0].mxu0
      %v3038 = vadd.f32 %v2521, %v3037
      %v3039 = vpop.f32.mrb[0].mxu0
      %v3040 = vpop.f32.mrb[0].mxu0
      %v3041 = vadd.f32 %v2521, %v3040
      %v3042 = vpop.f32.mrb[0].mxu0
      %3043 = vmatprep.mubr.bf16.mxu0 0
      %3044 = vmatmul.mubr.bf16.gmra.mrb[0].mxu0 %v2635
      %v3045 = vpop.f32.mrb[0].mxu0
      %v3046 = vadd.f32 %v2521, %v3045
      %v3047 = vpop.f32.mrb[0].mxu0
      %v3048 = vpop.f32.mrb[0].mxu0
      %v3049 = vadd.f32 %v2521, %v3048
      %v3050 = vpop.f32.mrb[0].mxu0
      %3051 = vmatprep.mubr.bf16.mxu0 0
      %3052 = vmatmul.mubr.bf16.gmra.mrb[0].mxu0 %v2638
      %v3053 = vpop.f32.mrb[0].mxu0
      %v3054 = vadd.f32 %v2521, %v3053
      %v3055 = vpop.f32.mrb[0].mxu0
      %v3056 = vpop.f32.mrb[0].mxu0
      %v3057 = vadd.f32 %v2521, %v3056
      %v3058 = vpop.f32.mrb[0].mxu0
      %3059 = vmatprep.mubr.bf16.mxu0 0
      %3060 = vmatmul.mubr.bf16.gmra.mrb[0].mxu0 %v2641
      %v3061 = vpop.f32.mrb[0].mxu0
      %v3062 = vadd.f32 %v2521, %v3061
      %v3063 = vpop.f32.mrb[0].mxu0
      %v3064 = vpop.f32.mrb[0].mxu0
      %v3065 = vadd.f32 %v2521, %v3064
      %v3066 = vpop.f32.mrb[0].mxu0
      %3067 = vmatprep.mubr.bf16.mxu0 0
      %3068 = vmatmul.mubr.bf16.gmra.mrb[0].mxu0 %v2644
      %v3069 = vpop.f32.mrb[0].mxu0
      %v3070 = vadd.f32 %v2521, %v3069
      %v3071 = vpop.f32.mrb[0].mxu0
      %v3072 = vpop.f32.mrb[0].mxu0
      %v3073 = vadd.f32 %v2521, %v3072
      %v3074 = vpop.f32.mrb[0].mxu0
      %3075 = vmatprep.mubr.bf16.mxu0 0
      %3076 = vmatmul.mubr.bf16.gmra.mrb[0].mxu0 %v2647
      %v3077 = vpop.f32.mrb[0].mxu0
      %v3078 = vadd.f32 %v2521, %v3077
      %v3079 = vpop.f32.mrb[0].mxu0
      %v3080 = vpop.f32.mrb[0].mxu0
      %v3081 = vadd.f32 %v2521, %v3080
      %v3082 = vpop.f32.mrb[0].mxu0
      %3083 = vmatprep.mubr.bf16.mxu0 0
      %3084 = vmatmul.mubr.bf16.gmra.mrb[0].mxu0 %v2650
      %v3085 = vpop.f32.mrb[0].mxu0
      %v3086 = vadd.f32 %v2521, %v3085
      %v3087 = vpop.f32.mrb[0].mxu0
      %v3088 = vpop.f32.mrb[0].mxu0
      %v3089 = vadd.f32 %v2521, %v3088
      %v3090 = vpop.f32.mrb[0].mxu0
      %3091 = vmatprep.mubr.bf16.mxu0 0
      %3092 = vmatmul.mubr.bf16.gmra.mrb[0].mxu0 %v2653
      %v3093 = vpop.f32.mrb[0].mxu0
      %v3094 = vadd.f32 %v2521, %v3093
      %v3095 = vpop.f32.mrb[0].mxu0
      %v3096 = vpop.f32.mrb[0].mxu0
      %v3097 = vadd.f32 %v2521, %v3096
      %v3098 = vpop.f32.mrb[0].mxu0
      %3099 = vmatprep.mubr.bf16.mxu0 0
      %3100 = vmatmul.mubr.bf16.gmra.mrb[0].mxu0 %v2656
      %v3101 = vpop.f32.mrb[0].mxu0
      %v3102 = vadd.f32 %v2521, %v3101
      %v3103 = vpop.f32.mrb[0].mxu0
      %v3104 = vpop.f32.mrb[0].mxu0
      %v3105 = vadd.f32 %v2521, %v3104
      %v3106 = vpop.f32.mrb[0].mxu0
      %3107 = vmatprep.mubr.bf16.mxu0 0
      %3108 = vmatmul.mubr.bf16.gmra.mrb[0].mxu0 %v2659
      %v3109 = vpop.f32.mrb[0].mxu0
      %v3110 = vadd.f32 %v2521, %v3109
      %v3111 = vpop.f32.mrb[0].mxu0
      %v3112 = vpop.f32.mrb[0].mxu0
      %v3113 = vadd.f32 %v2521, %v3112
      %v3114 = vpop.f32.mrb[0].mxu0
      %3115 = vmatprep.mubr.bf16.mxu0 0
      %3116 = vmatmul.mubr.bf16.gmra.mrb[0].mxu0 %v2662
      %v3117 = vpop.f32.mrb[0].mxu0
      %v3118 = vadd.f32 %v2521, %v3117
      %v3119 = vpop.f32.mrb[0].mxu0
      %v3120 = vpop.f32.mrb[0].mxu0
      %v3121 = vadd.f32 %v2521, %v3120
      %v3122 = vpop.f32.mrb[0].mxu0
      %3123 = vmatprep.mubr.bf16.mxu0 0
      %3124 = vmatmul.mubr.bf16.gmra.mrb[0].mxu0 %v2665
      %v3125 = vpop.f32.mrb[0].mxu0
      %v3126 = vadd.f32 %v2521, %v3125
      %v3127 = vpop.f32.mrb[0].mxu0
      %v3128 = vpop.f32.mrb[0].mxu0
      %v3129 = vadd.f32 %v2521, %v3128
      %v3130 = vpop.f32.mrb[0].mxu0
      %3131 = vmatprep.mubr.bf16.mxu0 0
      %3132 = vmatmul.mubr.bf16.gmra.mrb[0].mxu0 %v2668
      %v3133 = vpop.f32.mrb[0].mxu0
      %v3134 = vadd.f32 %v2521, %v3133
      %v3135 = vpop.f32.mrb[0].mxu0
      %v3136 = vpop.f32.mrb[0].mxu0
      %v3137 = vadd.f32 %v2521, %v3136
      %v3138 = vpop.f32.mrb[0].mxu0
      %3139 = vmatprep.mubr.bf16.mxu0 0
      %3140 = vmatmul.mubr.bf16.gmra.mrb[0].mxu0 %v2671
      %v3141 = vpop.f32.mrb[0].mxu0
      %v3142 = vadd.f32 %v2521, %v3141
      %v3143 = vpop.f32.mrb[0].mxu0
      %v3144 = vpop.f32.mrb[0].mxu0
      %v3145 = vadd.f32 %v2521, %v3144
      %v3146 = vpop.f32.mrb[0].mxu0
      %3147 = vmatprep.mubr.bf16.mxu0 0
      %3148 = vmatmul.mubr.bf16.gmra.mrb[0].mxu0 %v2674
      %v3149 = vpop.f32.mrb[0].mxu0
      %v3150 = vadd.f32 %v2521, %v3149
      %v3151 = vpop.f32.mrb[0].mxu0
      %v3152 = vpop.f32.mrb[0].mxu0
      %v3153 = vadd.f32 %v2521, %v3152
      %v3154 = vpop.f32.mrb[0].mxu0
      %3155 = vmatprep.mubr.bf16.mxu0 0
      %3156 = vmatmul.mubr.bf16.gmra.mrb[0].mxu0 %v2677
      %v3157 = vpop.f32.mrb[0].mxu0
      %v3158 = vadd.f32 %v2521, %v3157
      %v3159 = vpop.f32.mrb[0].mxu0
      %v3160 = vpop.f32.mrb[0].mxu0
      %v3161 = vadd.f32 %v2521, %v3160
      %v3162 = vpop.f32.mrb[0].mxu0
      %3163 = vmatprep.mubr.bf16.mxu0 0
      %3164 = vmatmul.mubr.bf16.gmra.mrb[0].mxu0 %v2680
      %v3165 = vpop.f32.mrb[0].mxu0
      %v3166 = vadd.f32 %v2521, %v3165
      %v3167 = vpop.f32.mrb[0].mxu0
      %v3168 = vpop.f32.mrb[0].mxu0
      %v3169 = vadd.f32 %v2521, %v3168
      %v3170 = vpop.f32.mrb[0].mxu0
      %3171 = vmatprep.mubr.bf16.mxu0 0
      %3172 = vmatmul.mubr.bf16.gmra.mrb[0].mxu0 %v2683
      %v3173 = vpop.f32.mrb[0].mxu0
      %v3174 = vadd.f32 %v2521, %v3173
      %v3175 = vpop.f32.mrb[0].mxu0
      %v3176 = vpop.f32.mrb[0].mxu0
      %v3177 = vadd.f32 %v2521, %v3176
      %v3178 = vpop.f32.mrb[0].mxu0
      %3179 = vmatprep.mubr.bf16.mxu0 0
      %3180 = vmatmul.mubr.bf16.gmra.mrb[0].mxu0 %v2686
      %v3181 = vpop.f32.mrb[0].mxu0
      %v3182 = vadd.f32 %v2521, %v3181
      %v3183 = vpop.f32.mrb[0].mxu0
      %v3184 = vpop.f32.mrb[0].mxu0
      %v3185 = vadd.f32 %v2521, %v3184
      %v3186 = vpop.f32.mrb[0].mxu0
      %3187 = vmatprep.mubr.bf16.mxu0 0
      %3188 = vmatmul.mubr.bf16.gmra.mrb[0].mxu0 %v2689
      %v3189 = vpop.f32.mrb[0].mxu0
      %v3190 = vadd.f32 %v2521, %v3189
      %v3191 = vpop.f32.mrb[0].mxu0
      %v3192 = vpop.f32.mrb[0].mxu0
      %v3193 = vadd.f32 %v2521, %v3192
      %v3194 = vpop.f32.mrb[0].mxu0
      %3195 = vmatprep.mubr.bf16.mxu0 0
      %3196 = vmatmul.mubr.bf16.gmra.mrb[0].mxu0 %v2692
      %v3197 = vpop.f32.mrb[0].mxu0
      %v3198 = vadd.f32 %v2521, %v3197
      %v3199 = vpop.f32.mrb[0].mxu0
      %v3200 = vpop.f32.mrb[0].mxu0
      %v3201 = vadd.f32 %v2521, %v3200
      %v3202 = vpop.f32.mrb[0].mxu0
      %3203 = vmatprep.mubr.bf16.mxu0 0
      %3204 = vmatmul.mubr.bf16.gmra.mrb[0].mxu0 %v2695
      %v3205 = vpop.f32.mrb[0].mxu0
      %v3206 = vadd.f32 %v2521, %v3205
      %v3207 = vpop.f32.mrb[0].mxu0
      %v3208 = vpop.f32.mrb[0].mxu0
      %v3209 = vadd.f32 %v2521, %v3208
      %v3210 = vpop.f32.mrb[0].mxu0
      %3211 = vmatprep.mubr.bf16.mxu0 0
      %3212 = vmatmul.mubr.bf16.gmra.mrb[0].mxu0 %v2698
      %v3213 = vpop.f32.mrb[0].mxu0
      %v3214 = vadd.f32 %v2521, %v3213
      %v3215 = vpop.f32.mrb[0].mxu0
      %v3216 = vpop.f32.mrb[0].mxu0
      %v3217 = vadd.f32 %v2521, %v3216
      %v3218 = vpop.f32.mrb[0].mxu0
      %3219 = vmatprep.mubr.bf16.mxu0 0
      %3220 = vmatmul.mubr.bf16.gmra.mrb[0].mxu0 %v2701
      %v3221 = vpop.f32.mrb[0].mxu0
      %v3222 = vadd.f32 %v2521, %v3221
      %v3223 = vpop.f32.mrb[0].mxu0
      %v3224 = vpop.f32.mrb[0].mxu0
      %v3225 = vadd.f32 %v2521, %v3224
      %v3226 = vpop.f32.mrb[0].mxu0
      %3227 = vmatprep.mubr.bf16.mxu0 0
      %3228 = vmatmul.mubr.bf16.gmra.mrb[0].mxu0 %v2704
      %v3229 = vpop.f32.mrb[0].mxu0
      %v3230 = vadd.f32 %v2521, %v3229
      %v3231 = vpop.f32.mrb[0].mxu0
      %v3232 = vpop.f32.mrb[0].mxu0
      %v3233 = vadd.f32 %v2521, %v3232
      %v3234 = vpop.f32.mrb[0].mxu0
      %3235 = vmatprep.mubr.bf16.mxu0 0
      %3236 = vmatmul.mubr.bf16.gmra.mrb[0].mxu0 %v2707
      %v3237 = vpop.f32.mrb[0].mxu0
      %v3238 = vadd.f32 %v2521, %v3237
      %v3239 = vpop.f32.mrb[0].mxu0
      %v3240 = vpop.f32.mrb[0].mxu0
      %v3241 = vadd.f32 %v2521, %v3240
      %v3242 = vpop.f32.mrb[0].mxu0
      %3243 = vmatprep.mubr.bf16.mxu0 0
      %3244 = vmatmul.mubr.bf16.gmra.mrb[0].mxu0 %v2710
      %v3245 = vpop.f32.mrb[0].mxu0
      %v3246 = vadd.f32 %v2521, %v3245
      %v3247 = vpop.f32.mrb[0].mxu0
      %v3248 = vpop.f32.mrb[0].mxu0
      %v3249 = vadd.f32 %v2521, %v3248
      %v3250 = vpop.f32.mrb[0].mxu0
      %3251 = vmatprep.mubr.bf16.mxu0 0
      %3252 = vmatmul.mubr.bf16.gmra.mrb[0].mxu0 %v2713
      %v3253 = vpop.f32.mrb[0].mxu0
      %v3254 = vadd.f32 %v2521, %v3253
      %v3255 = vpop.f32.mrb[0].mxu0
      %v3256 = vpop.f32.mrb[0].mxu0
      %v3257 = vadd.f32 %v2521, %v3256
      %v3258 = vpop.f32.mrb[0].mxu0
      %3259 = vdwg.mxu0
      %v3260 = vmax.f32 %v2750, 0.0
      %v3261 = vmax.f32 %v2753, 0.0
      %v3262 = vmax.f32 %v2758, 0.0
      %v3263 = vmax.f32 %v2761, 0.0
      %v3264 = vmax.f32 %v2766, 0.0
      %v3265 = vmax.f32 %v2769, 0.0
      %v3266 = vmax.f32 %v2774, 0.0
      %v3267 = vmax.f32 %v2777, 0.0
      %v3268 = vmax.f32 %v2782, 0.0
      %v3269 = vmax.f32 %v2785, 0.0
      %v3270 = vmax.f32 %v2790, 0.0
      %v3271 = vmax.f32 %v2793, 0.0
      %v3272 = vmax.f32 %v2798, 0.0
      %v3273 = vmax.f32 %v2801, 0.0
      %v3274 = vmax.f32 %v2806, 0.0
      %v3275 = vmax.f32 %v2809, 0.0
      %v3276 = vmax.f32 %v2814, 0.0
      %v3277 = vmax.f32 %v2817, 0.0
      %v3278 = vmax.f32 %v2822, 0.0
      %v3279 = vmax.f32 %v2825, 0.0
      %v3280 = vmax.f32 %v2830, 0.0
      %v3281 = vmax.f32 %v2833, 0.0
      %v3282 = vmax.f32 %v2838, 0.0
      %v3283 = vmax.f32 %v2841, 0.0
      %v3284 = vmax.f32 %v2846, 0.0
      %v3285 = vmax.f32 %v2849, 0.0
      %v3286 = vmax.f32 %v2854, 0.0
      %v3287 = vmax.f32 %v2857, 0.0
      %v3288 = vmax.f32 %v2862, 0.0
      %v3289 = vmax.f32 %v2865, 0.0
      %v3290 = vmax.f32 %v2870, 0.0
      %v3291 = vmax.f32 %v2873, 0.0
      %v3292 = vmax.f32 %v2878, 0.0
      %v3293 = vmax.f32 %v2881, 0.0
      %v3294 = vmax.f32 %v2886, 0.0
      %v3295 = vmax.f32 %v2889, 0.0
      %v3296 = vmax.f32 %v2894, 0.0
      %v3297 = vmax.f32 %v2897, 0.0
      %v3298 = vmax.f32 %v2902, 0.0
      %v3299 = vmax.f32 %v2905, 0.0
      %v3300 = vmax.f32 %v2910, 0.0
      %v3301 = vmax.f32 %v2913, 0.0
      %v3302 = vmax.f32 %v2918, 0.0
      %v3303 = vmax.f32 %v2921, 0.0
      %v3304 = vmax.f32 %v2926, 0.0
      %v3305 = vmax.f32 %v2929, 0.0
      %v3306 = vmax.f32 %v2934, 0.0
      %v3307 = vmax.f32 %v2937, 0.0
      %v3308 = vmax.f32 %v2942, 0.0
      %v3309 = vmax.f32 %v2945, 0.0
      %v3310 = vmax.f32 %v2950, 0.0
      %v3311 = vmax.f32 %v2953, 0.0
      %v3312 = vmax.f32 %v2958, 0.0
      %v3313 = vmax.f32 %v2961, 0.0
      %v3314 = vmax.f32 %v2966, 0.0
      %v3315 = vmax.f32 %v2969, 0.0
      %v3316 = vmax.f32 %v2974, 0.0
      %v3317 = vmax.f32 %v2977, 0.0
      %v3318 = vmax.f32 %v2982, 0.0
      %v3319 = vmax.f32 %v2985, 0.0
      %v3320 = vmax.f32 %v2990, 0.0
      %v3321 = vmax.f32 %v2993, 0.0
      %v3322 = vmax.f32 %v2998, 0.0
      %v3323 = vmax.f32 %v3001, 0.0
      %v3324 = vmax.f32 %v3006, 0.0
      %v3325 = vmax.f32 %v3009, 0.0
      %v3326 = vmax.f32 %v3014, 0.0
      %v3327 = vmax.f32 %v3017, 0.0
      %v3328 = vmax.f32 %v3022, 0.0
      %v3329 = vmax.f32 %v3025, 0.0
      %v3330 = vmax.f32 %v3030, 0.0
      %v3331 = vmax.f32 %v3033, 0.0
      %v3332 = vmax.f32 %v3038, 0.0
      %v3333 = vmax.f32 %v3041, 0.0
      %v3334 = vmax.f32 %v3046, 0.0
      %v3335 = vmax.f32 %v3049, 0.0
      %v3336 = vmax.f32 %v3054, 0.0
      %v3337 = vmax.f32 %v3057, 0.0
      %v3338 = vmax.f32 %v3062, 0.0
      %v3339 = vmax.f32 %v3065, 0.0
      %v3340 = vmax.f32 %v3070, 0.0
      %v3341 = vmax.f32 %v3073, 0.0
      %v3342 = vmax.f32 %v3078, 0.0
      %v3343 = vmax.f32 %v3081, 0.0
      %v3344 = vmax.f32 %v3086, 0.0
      %v3345 = vmax.f32 %v3089, 0.0
      %v3346 = vmax.f32 %v3094, 0.0
      %v3347 = vmax.f32 %v3097, 0.0
      %v3348 = vmax.f32 %v3102, 0.0
      %v3349 = vmax.f32 %v3105, 0.0
      %v3350 = vmax.f32 %v3110, 0.0
      %v3351 = vmax.f32 %v3113, 0.0
      %v3352 = vmax.f32 %v3118, 0.0
      %v3353 = vmax.f32 %v3121, 0.0
      %v3354 = vmax.f32 %v3126, 0.0
      %v3355 = vmax.f32 %v3129, 0.0
      %v3356 = vmax.f32 %v3134, 0.0
      %v3357 = vmax.f32 %v3137, 0.0
      %v3358 = vmax.f32 %v3142, 0.0
      %v3359 = vmax.f32 %v3145, 0.0
      %v3360 = vmax.f32 %v3150, 0.0
      %v3361 = vmax.f32 %v3153, 0.0
      %v3362 = vmax.f32 %v3158, 0.0
      %v3363 = vmax.f32 %v3161, 0.0
      %v3364 = vmax.f32 %v3166, 0.0
      %v3365 = vmax.f32 %v3169, 0.0
      %v3366 = vmax.f32 %v3174, 0.0
      %v3367 = vmax.f32 %v3177, 0.0
      %v3368 = vmax.f32 %v3182, 0.0
      %v3369 = vmax.f32 %v3185, 0.0
      %v3370 = vmax.f32 %v3190, 0.0
      %v3371 = vmax.f32 %v3193, 0.0
      %v3372 = vmax.f32 %v3198, 0.0
      %v3373 = vmax.f32 %v3201, 0.0
      %v3374 = vmax.f32 %v3206, 0.0
      %v3375 = vmax.f32 %v3209, 0.0
      %v3376 = vmax.f32 %v3214, 0.0
      %v3377 = vmax.f32 %v3217, 0.0
      %v3378 = vmax.f32 %v3222, 0.0
      %v3379 = vmax.f32 %v3225, 0.0
      %v3380 = vmax.f32 %v3230, 0.0
      %v3381 = vmax.f32 %v3233, 0.0
      %v3382 = vmax.f32 %v3238, 0.0
      %v3383 = vmax.f32 %v3241, 0.0
      %v3384 = vmax.f32 %v3246, 0.0
      %v3385 = vmax.f32 %v3249, 0.0
      %v3386 = vmax.f32 %v3254, 0.0
      %v3387 = vmax.f32 %v3257, 0.0
      %v3388 = vpack.c.bf16 %v3261, %v3260
      %v3389 = vpack.c.bf16 %v3263, %v3262
      %v3390 = vpack.c.bf16 %v3265, %v3264
      %v3391 = vpack.c.bf16 %v3267, %v3266
      %v3392 = vpack.c.bf16 %v3269, %v3268
      %v3393 = vpack.c.bf16 %v3271, %v3270
      %v3394 = vpack.c.bf16 %v3273, %v3272
      %v3395 = vpack.c.bf16 %v3275, %v3274
      %v3396 = vpack.c.bf16 %v3277, %v3276
      %v3397 = vpack.c.bf16 %v3279, %v3278
      %v3398 = vpack.c.bf16 %v3281, %v3280
      %v3399 = vpack.c.bf16 %v3283, %v3282
      %v3400 = vpack.c.bf16 %v3285, %v3284
      %v3401 = vpack.c.bf16 %v3287, %v3286
      %v3402 = vpack.c.bf16 %v3289, %v3288
      %v3403 = vpack.c.bf16 %v3291, %v3290
      %v3404 = vpack.c.bf16 %v3293, %v3292
      %v3405 = vpack.c.bf16 %v3295, %v3294
      %v3406 = vpack.c.bf16 %v3297, %v3296
      %v3407 = vpack.c.bf16 %v3299, %v3298
      %v3408 = vpack.c.bf16 %v3301, %v3300
      %v3409 = vpack.c.bf16 %v3303, %v3302
      %v3410 = vpack.c.bf16 %v3305, %v3304
      %v3411 = vpack.c.bf16 %v3307, %v3306
      %v3412 = vpack.c.bf16 %v3309, %v3308
      %v3413 = vpack.c.bf16 %v3311, %v3310
      %v3414 = vpack.c.bf16 %v3313, %v3312
      %v3415 = vpack.c.bf16 %v3315, %v3314
      %v3416 = vpack.c.bf16 %v3317, %v3316
      %v3417 = vpack.c.bf16 %v3319, %v3318
      %v3418 = vpack.c.bf16 %v3321, %v3320
      %v3419 = vpack.c.bf16 %v3323, %v3322
      %v3420 = vpack.c.bf16 %v3325, %v3324
      %v3421 = vpack.c.bf16 %v3327, %v3326
      %v3422 = vpack.c.bf16 %v3329, %v3328
      %v3423 = vpack.c.bf16 %v3331, %v3330
      %v3424 = vpack.c.bf16 %v3333, %v3332
      %v3425 = vpack.c.bf16 %v3335, %v3334
      %v3426 = vpack.c.bf16 %v3337, %v3336
      %v3427 = vpack.c.bf16 %v3339, %v3338
      %v3428 = vpack.c.bf16 %v3341, %v3340
      %v3429 = vpack.c.bf16 %v3343, %v3342
      %v3430 = vpack.c.bf16 %v3345, %v3344
      %v3431 = vpack.c.bf16 %v3347, %v3346
      %v3432 = vpack.c.bf16 %v3349, %v3348
      %v3433 = vpack.c.bf16 %v3351, %v3350
      %v3434 = vpack.c.bf16 %v3353, %v3352
      %v3435 = vpack.c.bf16 %v3355, %v3354
      %v3436 = vpack.c.bf16 %v3357, %v3356
      %v3437 = vpack.c.bf16 %v3359, %v3358
      %v3438 = vpack.c.bf16 %v3361, %v3360
      %v3439 = vpack.c.bf16 %v3363, %v3362
      %v3440 = vpack.c.bf16 %v3365, %v3364
      %v3441 = vpack.c.bf16 %v3367, %v3366
      %v3442 = vpack.c.bf16 %v3369, %v3368
      %v3443 = vpack.c.bf16 %v3371, %v3370
      %v3444 = vpack.c.bf16 %v3373, %v3372
      %v3445 = vpack.c.bf16 %v3375, %v3374
      %v3446 = vpack.c.bf16 %v3377, %v3376
      %v3447 = vpack.c.bf16 %v3379, %v3378
      %v3448 = vpack.c.bf16 %v3381, %v3380
      %v3449 = vpack.c.bf16 %v3383, %v3382
      %v3450 = vpack.c.bf16 %v3385, %v3384
      %v3451 = vpack.c.bf16 %v3387, %v3386
      %3452 = vrot.lane.b32.xlu0 %v642, 32
      %v3453 = vpop.permute.xlu0 %3452
      %3454 = vrot.lane.b32.xlu0 %v643, 32
      %v3455 = vpop.permute.xlu0 %3454
      %3458 = vrot.lane.b32.xlu0 %v312, 32
      %v3459 = vpop.permute.xlu0 %3458
      %v3462 = vsel %vm646, %v3388, 0
      %v3465 = vsel %vm646, %v3389, 0
      %v3468 = vsel %vm646, %v3390, 0
      %v3471 = vsel %vm646, %v3391, 0
      %v3474 = vsel %vm646, %v3392, 0
      %v3477 = vsel %vm646, %v3393, 0
      %v3480 = vsel %vm646, %v3394, 0
      %v3483 = vsel %vm646, %v3395, 0
      %v3486 = vsel %vm646, %v3396, 0
      %v3489 = vsel %vm646, %v3397, 0
      %v3492 = vsel %vm646, %v3398, 0
      %v3495 = vsel %vm646, %v3399, 0
      %v3498 = vsel %vm646, %v3400, 0
      %v3501 = vsel %vm646, %v3401, 0
      %v3504 = vsel %vm646, %v3402, 0
      %v3507 = vsel %vm646, %v3403, 0
      %v3510 = vsel %vm646, %v3404, 0
      %v3513 = vsel %vm646, %v3405, 0
      %v3516 = vsel %vm646, %v3406, 0
      %v3519 = vsel %vm646, %v3407, 0
      %v3522 = vsel %vm646, %v3408, 0
      %v3525 = vsel %vm646, %v3409, 0
      %v3528 = vsel %vm646, %v3410, 0
      %v3531 = vsel %vm646, %v3411, 0
      %v3534 = vsel %vm646, %v3412, 0
      %v3537 = vsel %vm646, %v3413, 0
      %v3540 = vsel %vm646, %v3414, 0
      %v3543 = vsel %vm646, %v3415, 0
      %v3546 = vsel %vm646, %v3416, 0
      %v3549 = vsel %vm646, %v3417, 0
      %v3552 = vsel %vm646, %v3418, 0
      %v3555 = vsel %vm646, %v3419, 0
      %v3558 = vsel %vm646, %v3420, 0
      %v3561 = vsel %vm646, %v3421, 0
      %v3564 = vsel %vm646, %v3422, 0
      %v3567 = vsel %vm646, %v3423, 0
      %v3570 = vsel %vm646, %v3424, 0
      %v3573 = vsel %vm646, %v3425, 0
      %v3576 = vsel %vm646, %v3426, 0
      %v3579 = vsel %vm646, %v3427, 0
      %v3582 = vsel %vm646, %v3428, 0
      %v3585 = vsel %vm646, %v3429, 0
      %v3588 = vsel %vm646, %v3430, 0
      %v3591 = vsel %vm646, %v3431, 0
      %v3594 = vsel %vm646, %v3432, 0
      %v3597 = vsel %vm646, %v3433, 0
      %v3600 = vsel %vm646, %v3434, 0
      %v3603 = vsel %vm646, %v3435, 0
      %v3606 = vsel %vm646, %v3436, 0
      %v3609 = vsel %vm646, %v3437, 0
      %v3612 = vsel %vm646, %v3438, 0
      %v3615 = vsel %vm646, %v3439, 0
      %v3618 = vsel %vm646, %v3440, 0
      %v3621 = vsel %vm646, %v3441, 0
      %v3624 = vsel %vm646, %v3442, 0
      %v3627 = vsel %vm646, %v3443, 0
      %v3630 = vsel %vm646, %v3444, 0
      %v3633 = vsel %vm646, %v3445, 0
      %v3636 = vsel %vm646, %v3446, 0
      %v3639 = vsel %vm646, %v3447, 0
      %v3642 = vsel %vm646, %v3448, 0
      %v3645 = vsel %vm646, %v3449, 0
      %v3648 = vsel %vm646, %v3450, 0
      %v3651 = vsel %vm646, %v3451, 0
      %3653 = vmatprep.subr.bf16.mxu0 0
      %3654 = vmatpush1.bf16.msra.mxu0 %v3453
      %3655 = vmatprep.subr.bf16.mxu0 0
      %3656 = vmatpush1.bf16.msra.mxu0 %v3455
      %3657 = vmatprep.subr.bf16.mxu0 0
      %3658 = vmatpush1.bf16.msra.mxu0 0
      %3659 = vmatprep.subr.bf16.mxu0 0
      %3660 = vmatpush1.bf16.msra.mxu0 0
      %3661 = vmatprep.subr.bf16.mxu0 0
      %3662 = vmatpush1.bf16.msra.mxu0 0
      %3663 = vmatprep.subr.bf16.mxu0 0
      %3664 = vmatpush1.bf16.msra.mxu0 0
      %3665 = vmatprep.subr.bf16.mxu0 0
      %3666 = vmatpush1.bf16.msra.mxu0 0
      %3667 = vmatprep.subr.bf16.mxu0 0
      %3668 = vmatpush1.bf16.msra.mxu0 0
      %3669 = vmatprep.subr.bf16.mxu0 0
      %3670 = vmatpush1.bf16.msra.mxu0 0
      %3671 = vmatprep.subr.bf16.mxu0 0
      %3672 = vmatpush1.bf16.msra.mxu0 0
      %3673 = vmatprep.subr.bf16.mxu0 0
      %3674 = vmatpush1.bf16.msra.mxu0 0
      %3675 = vmatprep.subr.bf16.mxu0 0
      %3676 = vmatpush1.bf16.msra.mxu0 0
      %3677 = vmatprep.subr.bf16.mxu0 0
      %3678 = vmatpush1.bf16.msra.mxu0 0
      %3679 = vmatprep.subr.bf16.mxu0 0
      %3680 = vmatpush1.bf16.msra.mxu0 0
      %3681 = vmatprep.subr.bf16.mxu0 0
      %3682 = vmatpush1.bf16.msra.mxu0 0
      %3683 = vmatprep.subr.bf16.mxu0 0
      %3684 = vmatpush1.bf16.msra.mxu0 0
      %3685 = vmatprep.mubr.bf16.mxu0 0
      %3686 = vmatmul.mubr.bf16.gmra.mrb[0].mxu0 %v3462
      %v3687 = vpop.f32.mrb[0].mxu0
      %v3688 = vadd.f32 %v3459, %v3687
      %v3689 = vpop.f32.mrb[0].mxu0
      %v3690 = vpop.f32.mrb[0].mxu0
      %v3691 = vadd.f32 %v3459, %v3690
      %v3692 = vpop.f32.mrb[0].mxu0
      %3693 = vmatprep.mubr.bf16.mxu0 0
      %3694 = vmatmul.mubr.bf16.gmra.mrb[0].mxu0 %v3465
      %v3695 = vpop.f32.mrb[0].mxu0
      %v3696 = vadd.f32 %v3459, %v3695
      %v3697 = vpop.f32.mrb[0].mxu0
      %v3698 = vpop.f32.mrb[0].mxu0
      %v3699 = vadd.f32 %v3459, %v3698
      %v3700 = vpop.f32.mrb[0].mxu0
      %3701 = vmatprep.mubr.bf16.mxu0 0
      %3702 = vmatmul.mubr.bf16.gmra.mrb[0].mxu0 %v3468
      %v3703 = vpop.f32.mrb[0].mxu0
      %v3704 = vadd.f32 %v3459, %v3703
      %v3705 = vpop.f32.mrb[0].mxu0
      %v3706 = vpop.f32.mrb[0].mxu0
      %v3707 = vadd.f32 %v3459, %v3706
      %v3708 = vpop.f32.mrb[0].mxu0
      %3709 = vmatprep.mubr.bf16.mxu0 0
      %3710 = vmatmul.mubr.bf16.gmra.mrb[0].mxu0 %v3471
      %v3711 = vpop.f32.mrb[0].mxu0
      %v3712 = vadd.f32 %v3459, %v3711
      %v3713 = vpop.f32.mrb[0].mxu0
      %v3714 = vpop.f32.mrb[0].mxu0
      %v3715 = vadd.f32 %v3459, %v3714
      %v3716 = vpop.f32.mrb[0].mxu0
      %3717 = vmatprep.mubr.bf16.mxu0 0
      %3718 = vmatmul.mubr.bf16.gmra.mrb[0].mxu0 %v3474
      %v3719 = vpop.f32.mrb[0].mxu0
      %v3720 = vadd.f32 %v3459, %v3719
      %v3721 = vpop.f32.mrb[0].mxu0
      %v3722 = vpop.f32.mrb[0].mxu0
      %v3723 = vadd.f32 %v3459, %v3722
      %v3724 = vpop.f32.mrb[0].mxu0
      %3725 = vmatprep.mubr.bf16.mxu0 0
      %3726 = vmatmul.mubr.bf16.gmra.mrb[0].mxu0 %v3477
      %v3727 = vpop.f32.mrb[0].mxu0
      %v3728 = vadd.f32 %v3459, %v3727
      %v3729 = vpop.f32.mrb[0].mxu0
      %v3730 = vpop.f32.mrb[0].mxu0
      %v3731 = vadd.f32 %v3459, %v3730
      %v3732 = vpop.f32.mrb[0].mxu0
      %3733 = vmatprep.mubr.bf16.mxu0 0
      %3734 = vmatmul.mubr.bf16.gmra.mrb[0].mxu0 %v3480
      %v3735 = vpop.f32.mrb[0].mxu0
      %v3736 = vadd.f32 %v3459, %v3735
      %v3737 = vpop.f32.mrb[0].mxu0
      %v3738 = vpop.f32.mrb[0].mxu0
      %v3739 = vadd.f32 %v3459, %v3738
      %v3740 = vpop.f32.mrb[0].mxu0
      %3741 = vmatprep.mubr.bf16.mxu0 0
      %3742 = vmatmul.mubr.bf16.gmra.mrb[0].mxu0 %v3483
      %v3743 = vpop.f32.mrb[0].mxu0
      %v3744 = vadd.f32 %v3459, %v3743
      %v3745 = vpop.f32.mrb[0].mxu0
      %v3746 = vpop.f32.mrb[0].mxu0
      %v3747 = vadd.f32 %v3459, %v3746
      %v3748 = vpop.f32.mrb[0].mxu0
      %3749 = vmatprep.mubr.bf16.mxu0 0
      %3750 = vmatmul.mubr.bf16.gmra.mrb[0].mxu0 %v3486
      %v3751 = vpop.f32.mrb[0].mxu0
      %v3752 = vadd.f32 %v3459, %v3751
      %v3753 = vpop.f32.mrb[0].mxu0
      %v3754 = vpop.f32.mrb[0].mxu0
      %v3755 = vadd.f32 %v3459, %v3754
      %v3756 = vpop.f32.mrb[0].mxu0
      %3757 = vmatprep.mubr.bf16.mxu0 0
      %3758 = vmatmul.mubr.bf16.gmra.mrb[0].mxu0 %v3489
      %v3759 = vpop.f32.mrb[0].mxu0
      %v3760 = vadd.f32 %v3459, %v3759
      %v3761 = vpop.f32.mrb[0].mxu0
      %v3762 = vpop.f32.mrb[0].mxu0
      %v3763 = vadd.f32 %v3459, %v3762
      %v3764 = vpop.f32.mrb[0].mxu0
      %3765 = vmatprep.mubr.bf16.mxu0 0
      %3766 = vmatmul.mubr.bf16.gmra.mrb[0].mxu0 %v3492
      %v3767 = vpop.f32.mrb[0].mxu0
      %v3768 = vadd.f32 %v3459, %v3767
      %v3769 = vpop.f32.mrb[0].mxu0
      %v3770 = vpop.f32.mrb[0].mxu0
      %v3771 = vadd.f32 %v3459, %v3770
      %v3772 = vpop.f32.mrb[0].mxu0
      %3773 = vmatprep.mubr.bf16.mxu0 0
      %3774 = vmatmul.mubr.bf16.gmra.mrb[0].mxu0 %v3495
      %v3775 = vpop.f32.mrb[0].mxu0
      %v3776 = vadd.f32 %v3459, %v3775
      %v3777 = vpop.f32.mrb[0].mxu0
      %v3778 = vpop.f32.mrb[0].mxu0
      %v3779 = vadd.f32 %v3459, %v3778
      %v3780 = vpop.f32.mrb[0].mxu0
      %3781 = vmatprep.mubr.bf16.mxu0 0
      %3782 = vmatmul.mubr.bf16.gmra.mrb[0].mxu0 %v3498
      %v3783 = vpop.f32.mrb[0].mxu0
      %v3784 = vadd.f32 %v3459, %v3783
      %v3785 = vpop.f32.mrb[0].mxu0
      %v3786 = vpop.f32.mrb[0].mxu0
      %v3787 = vadd.f32 %v3459, %v3786
      %v3788 = vpop.f32.mrb[0].mxu0
      %3789 = vmatprep.mubr.bf16.mxu0 0
      %3790 = vmatmul.mubr.bf16.gmra.mrb[0].mxu0 %v3501
      %v3791 = vpop.f32.mrb[0].mxu0
      %v3792 = vadd.f32 %v3459, %v3791
      %v3793 = vpop.f32.mrb[0].mxu0
      %v3794 = vpop.f32.mrb[0].mxu0
      %v3795 = vadd.f32 %v3459, %v3794
      %v3796 = vpop.f32.mrb[0].mxu0
      %3797 = vmatprep.mubr.bf16.mxu0 0
      %3798 = vmatmul.mubr.bf16.gmra.mrb[0].mxu0 %v3504
      %v3799 = vpop.f32.mrb[0].mxu0
      %v3800 = vadd.f32 %v3459, %v3799
      %v3801 = vpop.f32.mrb[0].mxu0
      %v3802 = vpop.f32.mrb[0].mxu0
      %v3803 = vadd.f32 %v3459, %v3802
      %v3804 = vpop.f32.mrb[0].mxu0
      %3805 = vmatprep.mubr.bf16.mxu0 0
      %3806 = vmatmul.mubr.bf16.gmra.mrb[0].mxu0 %v3507
      %v3807 = vpop.f32.mrb[0].mxu0
      %v3808 = vadd.f32 %v3459, %v3807
      %v3809 = vpop.f32.mrb[0].mxu0
      %v3810 = vpop.f32.mrb[0].mxu0
      %v3811 = vadd.f32 %v3459, %v3810
      %v3812 = vpop.f32.mrb[0].mxu0
      %3813 = vmatprep.mubr.bf16.mxu0 0
      %3814 = vmatmul.mubr.bf16.gmra.mrb[0].mxu0 %v3510
      %v3815 = vpop.f32.mrb[0].mxu0
      %v3816 = vadd.f32 %v3459, %v3815
      %v3817 = vpop.f32.mrb[0].mxu0
      %v3818 = vpop.f32.mrb[0].mxu0
      %v3819 = vadd.f32 %v3459, %v3818
      %v3820 = vpop.f32.mrb[0].mxu0
      %3821 = vmatprep.mubr.bf16.mxu0 0
      %3822 = vmatmul.mubr.bf16.gmra.mrb[0].mxu0 %v3513
      %v3823 = vpop.f32.mrb[0].mxu0
      %v3824 = vadd.f32 %v3459, %v3823
      %v3825 = vpop.f32.mrb[0].mxu0
      %v3826 = vpop.f32.mrb[0].mxu0
      %v3827 = vadd.f32 %v3459, %v3826
      %v3828 = vpop.f32.mrb[0].mxu0
      %3829 = vmatprep.mubr.bf16.mxu0 0
      %3830 = vmatmul.mubr.bf16.gmra.mrb[0].mxu0 %v3516
      %v3831 = vpop.f32.mrb[0].mxu0
      %v3832 = vadd.f32 %v3459, %v3831
      %v3833 = vpop.f32.mrb[0].mxu0
      %v3834 = vpop.f32.mrb[0].mxu0
      %v3835 = vadd.f32 %v3459, %v3834
      %v3836 = vpop.f32.mrb[0].mxu0
      %3837 = vmatprep.mubr.bf16.mxu0 0
      %3838 = vmatmul.mubr.bf16.gmra.mrb[0].mxu0 %v3519
      %v3839 = vpop.f32.mrb[0].mxu0
      %v3840 = vadd.f32 %v3459, %v3839
      %v3841 = vpop.f32.mrb[0].mxu0
      %v3842 = vpop.f32.mrb[0].mxu0
      %v3843 = vadd.f32 %v3459, %v3842
      %v3844 = vpop.f32.mrb[0].mxu0
      %3845 = vmatprep.mubr.bf16.mxu0 0
      %3846 = vmatmul.mubr.bf16.gmra.mrb[0].mxu0 %v3522
      %v3847 = vpop.f32.mrb[0].mxu0
      %v3848 = vadd.f32 %v3459, %v3847
      %v3849 = vpop.f32.mrb[0].mxu0
      %v3850 = vpop.f32.mrb[0].mxu0
      %v3851 = vadd.f32 %v3459, %v3850
      %v3852 = vpop.f32.mrb[0].mxu0
      %3853 = vmatprep.mubr.bf16.mxu0 0
      %3854 = vmatmul.mubr.bf16.gmra.mrb[0].mxu0 %v3525
      %v3855 = vpop.f32.mrb[0].mxu0
      %v3856 = vadd.f32 %v3459, %v3855
      %v3857 = vpop.f32.mrb[0].mxu0
      %v3858 = vpop.f32.mrb[0].mxu0
      %v3859 = vadd.f32 %v3459, %v3858
      %v3860 = vpop.f32.mrb[0].mxu0
      %3861 = vmatprep.mubr.bf16.mxu0 0
      %3862 = vmatmul.mubr.bf16.gmra.mrb[0].mxu0 %v3528
      %v3863 = vpop.f32.mrb[0].mxu0
      %v3864 = vadd.f32 %v3459, %v3863
      %v3865 = vpop.f32.mrb[0].mxu0
      %v3866 = vpop.f32.mrb[0].mxu0
      %v3867 = vadd.f32 %v3459, %v3866
      %v3868 = vpop.f32.mrb[0].mxu0
      %3869 = vmatprep.mubr.bf16.mxu0 0
      %3870 = vmatmul.mubr.bf16.gmra.mrb[0].mxu0 %v3531
      %v3871 = vpop.f32.mrb[0].mxu0
      %v3872 = vadd.f32 %v3459, %v3871
      %v3873 = vpop.f32.mrb[0].mxu0
      %v3874 = vpop.f32.mrb[0].mxu0
      %v3875 = vadd.f32 %v3459, %v3874
      %v3876 = vpop.f32.mrb[0].mxu0
      %3877 = vmatprep.mubr.bf16.mxu0 0
      %3878 = vmatmul.mubr.bf16.gmra.mrb[0].mxu0 %v3534
      %v3879 = vpop.f32.mrb[0].mxu0
      %v3880 = vadd.f32 %v3459, %v3879
      %v3881 = vpop.f32.mrb[0].mxu0
      %v3882 = vpop.f32.mrb[0].mxu0
      %v3883 = vadd.f32 %v3459, %v3882
      %v3884 = vpop.f32.mrb[0].mxu0
      %3885 = vmatprep.mubr.bf16.mxu0 0
      %3886 = vmatmul.mubr.bf16.gmra.mrb[0].mxu0 %v3537
      %v3887 = vpop.f32.mrb[0].mxu0
      %v3888 = vadd.f32 %v3459, %v3887
      %v3889 = vpop.f32.mrb[0].mxu0
      %v3890 = vpop.f32.mrb[0].mxu0
      %v3891 = vadd.f32 %v3459, %v3890
      %v3892 = vpop.f32.mrb[0].mxu0
      %3893 = vmatprep.mubr.bf16.mxu0 0
      %3894 = vmatmul.mubr.bf16.gmra.mrb[0].mxu0 %v3540
      %v3895 = vpop.f32.mrb[0].mxu0
      %v3896 = vadd.f32 %v3459, %v3895
      %v3897 = vpop.f32.mrb[0].mxu0
      %v3898 = vpop.f32.mrb[0].mxu0
      %v3899 = vadd.f32 %v3459, %v3898
      %v3900 = vpop.f32.mrb[0].mxu0
      %3901 = vmatprep.mubr.bf16.mxu0 0
      %3902 = vmatmul.mubr.bf16.gmra.mrb[0].mxu0 %v3543
      %v3903 = vpop.f32.mrb[0].mxu0
      %v3904 = vadd.f32 %v3459, %v3903
      %v3905 = vpop.f32.mrb[0].mxu0
      %v3906 = vpop.f32.mrb[0].mxu0
      %v3907 = vadd.f32 %v3459, %v3906
      %v3908 = vpop.f32.mrb[0].mxu0
      %3909 = vmatprep.mubr.bf16.mxu0 0
      %3910 = vmatmul.mubr.bf16.gmra.mrb[0].mxu0 %v3546
      %v3911 = vpop.f32.mrb[0].mxu0
      %v3912 = vadd.f32 %v3459, %v3911
      %v3913 = vpop.f32.mrb[0].mxu0
      %v3914 = vpop.f32.mrb[0].mxu0
      %v3915 = vadd.f32 %v3459, %v3914
      %v3916 = vpop.f32.mrb[0].mxu0
      %3917 = vmatprep.mubr.bf16.mxu0 0
      %3918 = vmatmul.mubr.bf16.gmra.mrb[0].mxu0 %v3549
      %v3919 = vpop.f32.mrb[0].mxu0
      %v3920 = vadd.f32 %v3459, %v3919
      %v3921 = vpop.f32.mrb[0].mxu0
      %v3922 = vpop.f32.mrb[0].mxu0
      %v3923 = vadd.f32 %v3459, %v3922
      %v3924 = vpop.f32.mrb[0].mxu0
      %3925 = vmatprep.mubr.bf16.mxu0 0
      %3926 = vmatmul.mubr.bf16.gmra.mrb[0].mxu0 %v3552
      %v3927 = vpop.f32.mrb[0].mxu0
      %v3928 = vadd.f32 %v3459, %v3927
      %v3929 = vpop.f32.mrb[0].mxu0
      %v3930 = vpop.f32.mrb[0].mxu0
      %v3931 = vadd.f32 %v3459, %v3930
      %v3932 = vpop.f32.mrb[0].mxu0
      %3933 = vmatprep.mubr.bf16.mxu0 0
      %3934 = vmatmul.mubr.bf16.gmra.mrb[0].mxu0 %v3555
      %v3935 = vpop.f32.mrb[0].mxu0
      %v3936 = vadd.f32 %v3459, %v3935
      %v3937 = vpop.f32.mrb[0].mxu0
      %v3938 = vpop.f32.mrb[0].mxu0
      %v3939 = vadd.f32 %v3459, %v3938
      %v3940 = vpop.f32.mrb[0].mxu0
      %3941 = vmatprep.mubr.bf16.mxu0 0
      %3942 = vmatmul.mubr.bf16.gmra.mrb[0].mxu0 %v3558
      %v3943 = vpop.f32.mrb[0].mxu0
      %v3944 = vadd.f32 %v3459, %v3943
      %v3945 = vpop.f32.mrb[0].mxu0
      %v3946 = vpop.f32.mrb[0].mxu0
      %v3947 = vadd.f32 %v3459, %v3946
      %v3948 = vpop.f32.mrb[0].mxu0
      %3949 = vmatprep.mubr.bf16.mxu0 0
      %3950 = vmatmul.mubr.bf16.gmra.mrb[0].mxu0 %v3561
      %v3951 = vpop.f32.mrb[0].mxu0
      %v3952 = vadd.f32 %v3459, %v3951
      %v3953 = vpop.f32.mrb[0].mxu0
      %v3954 = vpop.f32.mrb[0].mxu0
      %v3955 = vadd.f32 %v3459, %v3954
      %v3956 = vpop.f32.mrb[0].mxu0
      %3957 = vmatprep.mubr.bf16.mxu0 0
      %3958 = vmatmul.mubr.bf16.gmra.mrb[0].mxu0 %v3564
      %v3959 = vpop.f32.mrb[0].mxu0
      %v3960 = vadd.f32 %v3459, %v3959
      %v3961 = vpop.f32.mrb[0].mxu0
      %v3962 = vpop.f32.mrb[0].mxu0
      %v3963 = vadd.f32 %v3459, %v3962
      %v3964 = vpop.f32.mrb[0].mxu0
      %3965 = vmatprep.mubr.bf16.mxu0 0
      %3966 = vmatmul.mubr.bf16.gmra.mrb[0].mxu0 %v3567
      %v3967 = vpop.f32.mrb[0].mxu0
      %v3968 = vadd.f32 %v3459, %v3967
      %v3969 = vpop.f32.mrb[0].mxu0
      %v3970 = vpop.f32.mrb[0].mxu0
      %v3971 = vadd.f32 %v3459, %v3970
      %v3972 = vpop.f32.mrb[0].mxu0
      %3973 = vmatprep.mubr.bf16.mxu0 0
      %3974 = vmatmul.mubr.bf16.gmra.mrb[0].mxu0 %v3570
      %v3975 = vpop.f32.mrb[0].mxu0
      %v3976 = vadd.f32 %v3459, %v3975
      %v3977 = vpop.f32.mrb[0].mxu0
      %v3978 = vpop.f32.mrb[0].mxu0
      %v3979 = vadd.f32 %v3459, %v3978
      %v3980 = vpop.f32.mrb[0].mxu0
      %3981 = vmatprep.mubr.bf16.mxu0 0
      %3982 = vmatmul.mubr.bf16.gmra.mrb[0].mxu0 %v3573
      %v3983 = vpop.f32.mrb[0].mxu0
      %v3984 = vadd.f32 %v3459, %v3983
      %v3985 = vpop.f32.mrb[0].mxu0
      %v3986 = vpop.f32.mrb[0].mxu0
      %v3987 = vadd.f32 %v3459, %v3986
      %v3988 = vpop.f32.mrb[0].mxu0
      %3989 = vmatprep.mubr.bf16.mxu0 0
      %3990 = vmatmul.mubr.bf16.gmra.mrb[0].mxu0 %v3576
      %v3991 = vpop.f32.mrb[0].mxu0
      %v3992 = vadd.f32 %v3459, %v3991
      %v3993 = vpop.f32.mrb[0].mxu0
      %v3994 = vpop.f32.mrb[0].mxu0
      %v3995 = vadd.f32 %v3459, %v3994
      %v3996 = vpop.f32.mrb[0].mxu0
      %3997 = vmatprep.mubr.bf16.mxu0 0
      %3998 = vmatmul.mubr.bf16.gmra.mrb[0].mxu0 %v3579
      %v3999 = vpop.f32.mrb[0].mxu0
      %v4000 = vadd.f32 %v3459, %v3999
      %v4001 = vpop.f32.mrb[0].mxu0
      %v4002 = vpop.f32.mrb[0].mxu0
      %v4003 = vadd.f32 %v3459, %v4002
      %v4004 = vpop.f32.mrb[0].mxu0
      %4005 = vmatprep.mubr.bf16.mxu0 0
      %4006 = vmatmul.mubr.bf16.gmra.mrb[0].mxu0 %v3582
      %v4007 = vpop.f32.mrb[0].mxu0
      %v4008 = vadd.f32 %v3459, %v4007
      %v4009 = vpop.f32.mrb[0].mxu0
      %v4010 = vpop.f32.mrb[0].mxu0
      %v4011 = vadd.f32 %v3459, %v4010
      %v4012 = vpop.f32.mrb[0].mxu0
      %4013 = vmatprep.mubr.bf16.mxu0 0
      %4014 = vmatmul.mubr.bf16.gmra.mrb[0].mxu0 %v3585
      %v4015 = vpop.f32.mrb[0].mxu0
      %v4016 = vadd.f32 %v3459, %v4015
      %v4017 = vpop.f32.mrb[0].mxu0
      %v4018 = vpop.f32.mrb[0].mxu0
      %v4019 = vadd.f32 %v3459, %v4018
      %v4020 = vpop.f32.mrb[0].mxu0
      %4021 = vmatprep.mubr.bf16.mxu0 0
      %4022 = vmatmul.mubr.bf16.gmra.mrb[0].mxu0 %v3588
      %v4023 = vpop.f32.mrb[0].mxu0
      %v4024 = vadd.f32 %v3459, %v4023
      %v4025 = vpop.f32.mrb[0].mxu0
      %v4026 = vpop.f32.mrb[0].mxu0
      %v4027 = vadd.f32 %v3459, %v4026
      %v4028 = vpop.f32.mrb[0].mxu0
      %4029 = vmatprep.mubr.bf16.mxu0 0
      %4030 = vmatmul.mubr.bf16.gmra.mrb[0].mxu0 %v3591
      %v4031 = vpop.f32.mrb[0].mxu0
      %v4032 = vadd.f32 %v3459, %v4031
      %v4033 = vpop.f32.mrb[0].mxu0
      %v4034 = vpop.f32.mrb[0].mxu0
      %v4035 = vadd.f32 %v3459, %v4034
      %v4036 = vpop.f32.mrb[0].mxu0
      %4037 = vmatprep.mubr.bf16.mxu0 0
      %4038 = vmatmul.mubr.bf16.gmra.mrb[0].mxu0 %v3594
      %v4039 = vpop.f32.mrb[0].mxu0
      %v4040 = vadd.f32 %v3459, %v4039
      %v4041 = vpop.f32.mrb[0].mxu0
      %v4042 = vpop.f32.mrb[0].mxu0
      %v4043 = vadd.f32 %v3459, %v4042
      %v4044 = vpop.f32.mrb[0].mxu0
      %4045 = vmatprep.mubr.bf16.mxu0 0
      %4046 = vmatmul.mubr.bf16.gmra.mrb[0].mxu0 %v3597
      %v4047 = vpop.f32.mrb[0].mxu0
      %v4048 = vadd.f32 %v3459, %v4047
      %v4049 = vpop.f32.mrb[0].mxu0
      %v4050 = vpop.f32.mrb[0].mxu0
      %v4051 = vadd.f32 %v3459, %v4050
      %v4052 = vpop.f32.mrb[0].mxu0
      %4053 = vmatprep.mubr.bf16.mxu0 0
      %4054 = vmatmul.mubr.bf16.gmra.mrb[0].mxu0 %v3600
      %v4055 = vpop.f32.mrb[0].mxu0
      %v4056 = vadd.f32 %v3459, %v4055
      %v4057 = vpop.f32.mrb[0].mxu0
      %v4058 = vpop.f32.mrb[0].mxu0
      %v4059 = vadd.f32 %v3459, %v4058
      %v4060 = vpop.f32.mrb[0].mxu0
      %4061 = vmatprep.mubr.bf16.mxu0 0
      %4062 = vmatmul.mubr.bf16.gmra.mrb[0].mxu0 %v3603
      %v4063 = vpop.f32.mrb[0].mxu0
      %v4064 = vadd.f32 %v3459, %v4063
      %v4065 = vpop.f32.mrb[0].mxu0
      %v4066 = vpop.f32.mrb[0].mxu0
      %v4067 = vadd.f32 %v3459, %v4066
      %v4068 = vpop.f32.mrb[0].mxu0
      %4069 = vmatprep.mubr.bf16.mxu0 0
      %4070 = vmatmul.mubr.bf16.gmra.mrb[0].mxu0 %v3606
      %v4071 = vpop.f32.mrb[0].mxu0
      %v4072 = vadd.f32 %v3459, %v4071
      %v4073 = vpop.f32.mrb[0].mxu0
      %v4074 = vpop.f32.mrb[0].mxu0
      %v4075 = vadd.f32 %v3459, %v4074
      %v4076 = vpop.f32.mrb[0].mxu0
      %4077 = vmatprep.mubr.bf16.mxu0 0
      %4078 = vmatmul.mubr.bf16.gmra.mrb[0].mxu0 %v3609
      %v4079 = vpop.f32.mrb[0].mxu0
      %v4080 = vadd.f32 %v3459, %v4079
      %v4081 = vpop.f32.mrb[0].mxu0
      %v4082 = vpop.f32.mrb[0].mxu0
      %v4083 = vadd.f32 %v3459, %v4082
      %v4084 = vpop.f32.mrb[0].mxu0
      %4085 = vmatprep.mubr.bf16.mxu0 0
      %4086 = vmatmul.mubr.bf16.gmra.mrb[0].mxu0 %v3612
      %v4087 = vpop.f32.mrb[0].mxu0
      %v4088 = vadd.f32 %v3459, %v4087
      %v4089 = vpop.f32.mrb[0].mxu0
      %v4090 = vpop.f32.mrb[0].mxu0
      %v4091 = vadd.f32 %v3459, %v4090
      %v4092 = vpop.f32.mrb[0].mxu0
      %4093 = vmatprep.mubr.bf16.mxu0 0
      %4094 = vmatmul.mubr.bf16.gmra.mrb[0].mxu0 %v3615
      %v4095 = vpop.f32.mrb[0].mxu0
      %v4096 = vadd.f32 %v3459, %v4095
      %v4097 = vpop.f32.mrb[0].mxu0
      %v4098 = vpop.f32.mrb[0].mxu0
      %v4099 = vadd.f32 %v3459, %v4098
      %v4100 = vpop.f32.mrb[0].mxu0
      %4101 = vmatprep.mubr.bf16.mxu0 0
      %4102 = vmatmul.mubr.bf16.gmra.mrb[0].mxu0 %v3618
      %v4103 = vpop.f32.mrb[0].mxu0
      %v4104 = vadd.f32 %v3459, %v4103
      %v4105 = vpop.f32.mrb[0].mxu0
      %v4106 = vpop.f32.mrb[0].mxu0
      %v4107 = vadd.f32 %v3459, %v4106
      %v4108 = vpop.f32.mrb[0].mxu0
      %4109 = vmatprep.mubr.bf16.mxu0 0
      %4110 = vmatmul.mubr.bf16.gmra.mrb[0].mxu0 %v3621
      %v4111 = vpop.f32.mrb[0].mxu0
      %v4112 = vadd.f32 %v3459, %v4111
      %v4113 = vpop.f32.mrb[0].mxu0
      %v4114 = vpop.f32.mrb[0].mxu0
      %v4115 = vadd.f32 %v3459, %v4114
      %v4116 = vpop.f32.mrb[0].mxu0
      %4117 = vmatprep.mubr.bf16.mxu0 0
      %4118 = vmatmul.mubr.bf16.gmra.mrb[0].mxu0 %v3624
      %v4119 = vpop.f32.mrb[0].mxu0
      %v4120 = vadd.f32 %v3459, %v4119
      %v4121 = vpop.f32.mrb[0].mxu0
      %v4122 = vpop.f32.mrb[0].mxu0
      %v4123 = vadd.f32 %v3459, %v4122
      %v4124 = vpop.f32.mrb[0].mxu0
      %4125 = vmatprep.mubr.bf16.mxu0 0
      %4126 = vmatmul.mubr.bf16.gmra.mrb[0].mxu0 %v3627
      %v4127 = vpop.f32.mrb[0].mxu0
      %v4128 = vadd.f32 %v3459, %v4127
      %v4129 = vpop.f32.mrb[0].mxu0
      %v4130 = vpop.f32.mrb[0].mxu0
      %v4131 = vadd.f32 %v3459, %v4130
      %v4132 = vpop.f32.mrb[0].mxu0
      %4133 = vmatprep.mubr.bf16.mxu0 0
      %4134 = vmatmul.mubr.bf16.gmra.mrb[0].mxu0 %v3630
      %v4135 = vpop.f32.mrb[0].mxu0
      %v4136 = vadd.f32 %v3459, %v4135
      %v4137 = vpop.f32.mrb[0].mxu0
      %v4138 = vpop.f32.mrb[0].mxu0
      %v4139 = vadd.f32 %v3459, %v4138
      %v4140 = vpop.f32.mrb[0].mxu0
      %4141 = vmatprep.mubr.bf16.mxu0 0
      %4142 = vmatmul.mubr.bf16.gmra.mrb[0].mxu0 %v3633
      %v4143 = vpop.f32.mrb[0].mxu0
      %v4144 = vadd.f32 %v3459, %v4143
      %v4145 = vpop.f32.mrb[0].mxu0
      %v4146 = vpop.f32.mrb[0].mxu0
      %v4147 = vadd.f32 %v3459, %v4146
      %v4148 = vpop.f32.mrb[0].mxu0
      %4149 = vmatprep.mubr.bf16.mxu0 0
      %4150 = vmatmul.mubr.bf16.gmra.mrb[0].mxu0 %v3636
      %v4151 = vpop.f32.mrb[0].mxu0
      %v4152 = vadd.f32 %v3459, %v4151
      %v4153 = vpop.f32.mrb[0].mxu0
      %v4154 = vpop.f32.mrb[0].mxu0
      %v4155 = vadd.f32 %v3459, %v4154
      %v4156 = vpop.f32.mrb[0].mxu0
      %4157 = vmatprep.mubr.bf16.mxu0 0
      %4158 = vmatmul.mubr.bf16.gmra.mrb[0].mxu0 %v3639
      %v4159 = vpop.f32.mrb[0].mxu0
      %v4160 = vadd.f32 %v3459, %v4159
      %v4161 = vpop.f32.mrb[0].mxu0
      %v4162 = vpop.f32.mrb[0].mxu0
      %v4163 = vadd.f32 %v3459, %v4162
      %v4164 = vpop.f32.mrb[0].mxu0
      %4165 = vmatprep.mubr.bf16.mxu0 0
      %4166 = vmatmul.mubr.bf16.gmra.mrb[0].mxu0 %v3642
      %v4167 = vpop.f32.mrb[0].mxu0
      %v4168 = vadd.f32 %v3459, %v4167
      %v4169 = vpop.f32.mrb[0].mxu0
      %v4170 = vpop.f32.mrb[0].mxu0
      %v4171 = vadd.f32 %v3459, %v4170
      %v4172 = vpop.f32.mrb[0].mxu0
      %4173 = vmatprep.mubr.bf16.mxu0 0
      %4174 = vmatmul.mubr.bf16.gmra.mrb[0].mxu0 %v3645
      %v4175 = vpop.f32.mrb[0].mxu0
      %v4176 = vadd.f32 %v3459, %v4175
      %v4177 = vpop.f32.mrb[0].mxu0
      %v4178 = vpop.f32.mrb[0].mxu0
      %v4179 = vadd.f32 %v3459, %v4178
      %v4180 = vpop.f32.mrb[0].mxu0
      %4181 = vmatprep.mubr.bf16.mxu0 0
      %4182 = vmatmul.mubr.bf16.gmra.mrb[0].mxu0 %v3648
      %v4183 = vpop.f32.mrb[0].mxu0
      %v4184 = vadd.f32 %v3459, %v4183
      %v4185 = vpop.f32.mrb[0].mxu0
      %v4186 = vpop.f32.mrb[0].mxu0
      %v4187 = vadd.f32 %v3459, %v4186
      %v4188 = vpop.f32.mrb[0].mxu0
      %4189 = vmatprep.mubr.bf16.mxu0 0
      %4190 = vmatmul.mubr.bf16.gmra.mrb[0].mxu0 %v3651
      %v4191 = vpop.f32.mrb[0].mxu0
      %v4192 = vadd.f32 %v3459, %v4191
      %v4193 = vpop.f32.mrb[0].mxu0
      %v4194 = vpop.f32.mrb[0].mxu0
      %v4195 = vadd.f32 %v3459, %v4194
      %v4196 = vpop.f32.mrb[0].mxu0
      %4197 = vdwg.mxu0
      %vm4198 = vcmask 130048
      %4199 = vst.msk [vmem:[%s172] sm:$0xff] %vm4198, %v3688
      %4200 = vst.msk [vmem:[%s172 + $0x8] sm:$0xff] %vm4198, %v3691
      %4201 = vst.msk [vmem:[%s172 + $0x10] sm:$0xff] %vm4198, %v3696
      %4202 = vst.msk [vmem:[%s172 + $0x18] sm:$0xff] %vm4198, %v3699
      %4203 = vst.msk [vmem:[%s172 + $0x20] sm:$0xff] %vm4198, %v3704
      %4204 = vst.msk [vmem:[%s172 + $0x28] sm:$0xff] %vm4198, %v3707
      %4205 = vst.msk [vmem:[%s172 + $0x30] sm:$0xff] %vm4198, %v3712
      %4206 = vst.msk [vmem:[%s172 + $0x38] sm:$0xff] %vm4198, %v3715
      %4207 = vst.msk [vmem:[%s172 + $0x40] sm:$0xff] %vm4198, %v3720
      %4208 = vst.msk [vmem:[%s172 + $0x48] sm:$0xff] %vm4198, %v3723
      %4209 = vst.msk [vmem:[%s172 + $0x50] sm:$0xff] %vm4198, %v3728
      %4210 = vst.msk [vmem:[%s172 + $0x58] sm:$0xff] %vm4198, %v3731
      %4211 = vst.msk [vmem:[%s172 + $0x60] sm:$0xff] %vm4198, %v3736
      %4212 = vst.msk [vmem:[%s172 + $0x68] sm:$0xff] %vm4198, %v3739
      %4213 = vst.msk [vmem:[%s172 + $0x70] sm:$0xff] %vm4198, %v3744
      %4214 = vst.msk [vmem:[%s172 + $0x78] sm:$0xff] %vm4198, %v3747
      %4215 = vst.msk [vmem:[%s172 + $0x80] sm:$0xff] %vm4198, %v3752
      %4216 = vst.msk [vmem:[%s172 + $0x88] sm:$0xff] %vm4198, %v3755
      %4217 = vst.msk [vmem:[%s172 + $0x90] sm:$0xff] %vm4198, %v3760
      %4218 = vst.msk [vmem:[%s172 + $0x98] sm:$0xff] %vm4198, %v3763
      %4219 = vst.msk [vmem:[%s172 + $0xa0] sm:$0xff] %vm4198, %v3768
      %4220 = vst.msk [vmem:[%s172 + $0xa8] sm:$0xff] %vm4198, %v3771
      %4221 = vst.msk [vmem:[%s172 + $0xb0] sm:$0xff] %vm4198, %v3776
      %4222 = vst.msk [vmem:[%s172 + $0xb8] sm:$0xff] %vm4198, %v3779
      %4223 = vst.msk [vmem:[%s172 + $0xc0] sm:$0xff] %vm4198, %v3784
      %4224 = vst.msk [vmem:[%s172 + $0xc8] sm:$0xff] %vm4198, %v3787
      %4225 = vst.msk [vmem:[%s172 + $0xd0] sm:$0xff] %vm4198, %v3792
      %4226 = vst.msk [vmem:[%s172 + $0xd8] sm:$0xff] %vm4198, %v3795
      %4227 = vst.msk [vmem:[%s172 + $0xe0] sm:$0xff] %vm4198, %v3800
      %4228 = vst.msk [vmem:[%s172 + $0xe8] sm:$0xff] %vm4198, %v3803
      %4229 = vst.msk [vmem:[%s172 + $0xf0] sm:$0xff] %vm4198, %v3808
      %4230 = vst.msk [vmem:[%s172 + $0xf8] sm:$0xff] %vm4198, %v3811
      %4231 = vst.msk [vmem:[%s172 + $0x100] sm:$0xff] %vm4198, %v3816
      %4232 = vst.msk [vmem:[%s172 + $0x108] sm:$0xff] %vm4198, %v3819
      %4233 = vst.msk [vmem:[%s172 + $0x110] sm:$0xff] %vm4198, %v3824
      %4234 = vst.msk [vmem:[%s172 + $0x118] sm:$0xff] %vm4198, %v3827
      %4235 = vst.msk [vmem:[%s172 + $0x120] sm:$0xff] %vm4198, %v3832
      %4236 = vst.msk [vmem:[%s172 + $0x128] sm:$0xff] %vm4198, %v3835
      %4237 = vst.msk [vmem:[%s172 + $0x130] sm:$0xff] %vm4198, %v3840
      %4238 = vst.msk [vmem:[%s172 + $0x138] sm:$0xff] %vm4198, %v3843
      %4239 = vst.msk [vmem:[%s172 + $0x140] sm:$0xff] %vm4198, %v3848
      %4240 = vst.msk [vmem:[%s172 + $0x148] sm:$0xff] %vm4198, %v3851
      %4241 = vst.msk [vmem:[%s172 + $0x150] sm:$0xff] %vm4198, %v3856
      %4242 = vst.msk [vmem:[%s172 + $0x158] sm:$0xff] %vm4198, %v3859
      %4243 = vst.msk [vmem:[%s172 + $0x160] sm:$0xff] %vm4198, %v3864
      %4244 = vst.msk [vmem:[%s172 + $0x168] sm:$0xff] %vm4198, %v3867
      %4245 = vst.msk [vmem:[%s172 + $0x170] sm:$0xff] %vm4198, %v3872
      %4246 = vst.msk [vmem:[%s172 + $0x178] sm:$0xff] %vm4198, %v3875
      %4247 = vst.msk [vmem:[%s172 + $0x180] sm:$0xff] %vm4198, %v3880
      %4248 = vst.msk [vmem:[%s172 + $0x188] sm:$0xff] %vm4198, %v3883
      %4249 = vst.msk [vmem:[%s172 + $0x190] sm:$0xff] %vm4198, %v3888
      %4250 = vst.msk [vmem:[%s172 + $0x198] sm:$0xff] %vm4198, %v3891
      %4251 = vst.msk [vmem:[%s172 + $0x1a0] sm:$0xff] %vm4198, %v3896
      %4252 = vst.msk [vmem:[%s172 + $0x1a8] sm:$0xff] %vm4198, %v3899
      %4253 = vst.msk [vmem:[%s172 + $0x1b0] sm:$0xff] %vm4198, %v3904
      %4254 = vst.msk [vmem:[%s172 + $0x1b8] sm:$0xff] %vm4198, %v3907
      %4255 = vst.msk [vmem:[%s172 + $0x1c0] sm:$0xff] %vm4198, %v3912
      %4256 = vst.msk [vmem:[%s172 + $0x1c8] sm:$0xff] %vm4198, %v3915
      %4257 = vst.msk [vmem:[%s172 + $0x1d0] sm:$0xff] %vm4198, %v3920
      %4258 = vst.msk [vmem:[%s172 + $0x1d8] sm:$0xff] %vm4198, %v3923
      %4259 = vst.msk [vmem:[%s172 + $0x1e0] sm:$0xff] %vm4198, %v3928
      %4260 = vst.msk [vmem:[%s172 + $0x1e8] sm:$0xff] %vm4198, %v3931
      %4261 = vst.msk [vmem:[%s172 + $0x1f0] sm:$0xff] %vm4198, %v3936
      %4262 = vst.msk [vmem:[%s172 + $0x1f8] sm:$0xff] %vm4198, %v3939
      %4263 = vst.msk [vmem:[%s172 + $0x200] sm:$0xff] %vm4198, %v3944
      %4264 = vst.msk [vmem:[%s172 + $0x208] sm:$0xff] %vm4198, %v3947
      %4265 = vst.msk [vmem:[%s172 + $0x210] sm:$0xff] %vm4198, %v3952
      %4266 = vst.msk [vmem:[%s172 + $0x218] sm:$0xff] %vm4198, %v3955
      %4267 = vst.msk [vmem:[%s172 + $0x220] sm:$0xff] %vm4198, %v3960
      %4268 = vst.msk [vmem:[%s172 + $0x228] sm:$0xff] %vm4198, %v3963
      %4269 = vst.msk [vmem:[%s172 + $0x230] sm:$0xff] %vm4198, %v3968
      %4270 = vst.msk [vmem:[%s172 + $0x238] sm:$0xff] %vm4198, %v3971
      %4271 = vst.msk [vmem:[%s172 + $0x240] sm:$0xff] %vm4198, %v3976
      %4272 = vst.msk [vmem:[%s172 + $0x248] sm:$0xff] %vm4198, %v3979
      %4273 = vst.msk [vmem:[%s172 + $0x250] sm:$0xff] %vm4198, %v3984
      %4274 = vst.msk [vmem:[%s172 + $0x258] sm:$0xff] %vm4198, %v3987
      %4275 = vst.msk [vmem:[%s172 + $0x260] sm:$0xff] %vm4198, %v3992
      %4276 = vst.msk [vmem:[%s172 + $0x268] sm:$0xff] %vm4198, %v3995
      %4277 = vst.msk [vmem:[%s172 + $0x270] sm:$0xff] %vm4198, %v4000
      %4278 = vst.msk [vmem:[%s172 + $0x278] sm:$0xff] %vm4198, %v4003
      %4279 = vst.msk [vmem:[%s172 + $0x280] sm:$0xff] %vm4198, %v4008
      %4280 = vst.msk [vmem:[%s172 + $0x288] sm:$0xff] %vm4198, %v4011
      %4281 = vst.msk [vmem:[%s172 + $0x290] sm:$0xff] %vm4198, %v4016
      %4282 = vst.msk [vmem:[%s172 + $0x298] sm:$0xff] %vm4198, %v4019
      %4283 = vst.msk [vmem:[%s172 + $0x2a0] sm:$0xff] %vm4198, %v4024
      %4284 = vst.msk [vmem:[%s172 + $0x2a8] sm:$0xff] %vm4198, %v4027
      %4285 = vst.msk [vmem:[%s172 + $0x2b0] sm:$0xff] %vm4198, %v4032
      %4286 = vst.msk [vmem:[%s172 + $0x2b8] sm:$0xff] %vm4198, %v4035
      %4287 = vst.msk [vmem:[%s172 + $0x2c0] sm:$0xff] %vm4198, %v4040
      %4288 = vst.msk [vmem:[%s172 + $0x2c8] sm:$0xff] %vm4198, %v4043
      %4289 = vst.msk [vmem:[%s172 + $0x2d0] sm:$0xff] %vm4198, %v4048
      %4290 = vst.msk [vmem:[%s172 + $0x2d8] sm:$0xff] %vm4198, %v4051
      %4291 = vst.msk [vmem:[%s172 + $0x2e0] sm:$0xff] %vm4198, %v4056
      %4292 = vst.msk [vmem:[%s172 + $0x2e8] sm:$0xff] %vm4198, %v4059
      %4293 = vst.msk [vmem:[%s172 + $0x2f0] sm:$0xff] %vm4198, %v4064
      %4294 = vst.msk [vmem:[%s172 + $0x2f8] sm:$0xff] %vm4198, %v4067
      %4295 = vst.msk [vmem:[%s172 + $0x300] sm:$0xff] %vm4198, %v4072
      %4296 = vst.msk [vmem:[%s172 + $0x308] sm:$0xff] %vm4198, %v4075
      %4297 = vst.msk [vmem:[%s172 + $0x310] sm:$0xff] %vm4198, %v4080
      %4298 = vst.msk [vmem:[%s172 + $0x318] sm:$0xff] %vm4198, %v4083
      %4299 = vst.msk [vmem:[%s172 + $0x320] sm:$0xff] %vm4198, %v4088
      %4300 = vst.msk [vmem:[%s172 + $0x328] sm:$0xff] %vm4198, %v4091
      %4301 = vst.msk [vmem:[%s172 + $0x330] sm:$0xff] %vm4198, %v4096
      %4302 = vst.msk [vmem:[%s172 + $0x338] sm:$0xff] %vm4198, %v4099
      %4303 = vst.msk [vmem:[%s172 + $0x340] sm:$0xff] %vm4198, %v4104
      %4304 = vst.msk [vmem:[%s172 + $0x348] sm:$0xff] %vm4198, %v4107
      %4305 = vst.msk [vmem:[%s172 + $0x350] sm:$0xff] %vm4198, %v4112
      %4306 = vst.msk [vmem:[%s172 + $0x358] sm:$0xff] %vm4198, %v4115
      %4307 = vst.msk [vmem:[%s172 + $0x360] sm:$0xff] %vm4198, %v4120
      %4308 = vst.msk [vmem:[%s172 + $0x368] sm:$0xff] %vm4198, %v4123
      %4309 = vst.msk [vmem:[%s172 + $0x370] sm:$0xff] %vm4198, %v4128
      %4310 = vst.msk [vmem:[%s172 + $0x378] sm:$0xff] %vm4198, %v4131
      %4311 = vst.msk [vmem:[%s172 + $0x380] sm:$0xff] %vm4198, %v4136
      %4312 = vst.msk [vmem:[%s172 + $0x388] sm:$0xff] %vm4198, %v4139
      %4313 = vst.msk [vmem:[%s172 + $0x390] sm:$0xff] %vm4198, %v4144
      %4314 = vst.msk [vmem:[%s172 + $0x398] sm:$0xff] %vm4198, %v4147
      %4315 = vst.msk [vmem:[%s172 + $0x3a0] sm:$0xff] %vm4198, %v4152
      %4316 = vst.msk [vmem:[%s172 + $0x3a8] sm:$0xff] %vm4198, %v4155
      %4317 = vst.msk [vmem:[%s172 + $0x3b0] sm:$0xff] %vm4198, %v4160
      %4318 = vst.msk [vmem:[%s172 + $0x3b8] sm:$0xff] %vm4198, %v4163
      %4319 = vst.msk [vmem:[%s172 + $0x3c0] sm:$0xff] %vm4198, %v4168
      %4320 = vst.msk [vmem:[%s172 + $0x3c8] sm:$0xff] %vm4198, %v4171
      %4321 = vst.msk [vmem:[%s172 + $0x3d0] sm:$0xff] %vm4198, %v4176
      %4322 = vst.msk [vmem:[%s172 + $0x3d8] sm:$0xff] %vm4198, %v4179
      %4323 = vst.msk [vmem:[%s172 + $0x3e0] sm:$0xff] %vm4198, %v4184
      %4324 = vst.msk [vmem:[%s172 + $0x3e8] sm:$0xff] %vm4198, %v4187
      %4325 = vst.msk [vmem:[%s172 + $0x3f0] sm:$0xff] %vm4198, %v4192
      %4326 = vst.msk [vmem:[%s172 + $0x3f8] sm:$0xff] %vm4198, %v4195
      %s4327 = smul.u32 128, %s14
      %p4328 = scmp.lt.s32.totalorder %s4327, 255
      %s4329 = scalar_select %p4328, %s4327, 255
      %s4330 = smul.addr %s4329, 8
      %s4331 = scalar_lea.vmem %s3, %s4330
      // Predicated region
      $region33: #{hybrid_voxel_neural_field.1} parent=31 // pred_check
        %p4332 = pneg %p100
      $region34: #{hybrid_voxel_neural_field.1} parent=31 // pred_check_branch
        %4334 = sbr.rel (%p4332) target = $region36
      $region35: #{hybrid_voxel_neural_field.1} parent=31 // pred_region
        %s4335 = smul.u32 128, %s14
      $region36: #{hybrid_voxel_neural_field.1} parent=31 // pred_fallthru
        _
    $region32: #{hybrid_voxel_neural_field.1} parent=5 // pred_fallthru
      _
    %p4336 = scmp.le.s32.totalorder 2, %s9
    // Predicated region
    $region37: #{hybrid_voxel_neural_field.1} parent=5 // pred_check
      %p4337 = pneg %p4336
    $region38: #{hybrid_voxel_neural_field.1} parent=5 // pred_check_branch
      %4339 = sbr.rel (%p4337) target = $region40
    $region39: #{hybrid_voxel_neural_field.1} parent=5 // pred_region
      %s4340 = ssub.s32 %s9, 2
      // Predicated region
      $region41: #{hybrid_voxel_neural_field.1} parent=39 // pred_check
        %p4341 = pneg %p106
      $region42: #{hybrid_voxel_neural_field.1} parent=39 // pred_check_branch
        %4343 = sbr.rel (%p4341) target = $region44
      $region43: #{hybrid_voxel_neural_field.1} parent=39 // pred_region
        %s4344 = smul.u32 128, %s15
        %p4345 = scmp.lt.s32.totalorder %s4344, 255
        %s4346 = scalar_select %p4345, %s4344, 255
        %s4347 = smul.addr %s4346, 8
        %s4348 = scalar_lea.vmem %s3, %s4347
      $region44: #{hybrid_voxel_neural_field.1} parent=39 // pred_fallthru
        _
    $region40: #{hybrid_voxel_neural_field.1} parent=5 // pred_fallthru
      _
  $region6: #{hybrid_voxel_neural_field.1} parent=0 // loop_footer
    %s13 = sadd.s32 1, %s9
  $region7: #{hybrid_voxel_neural_field.1} parent=0 // loop_footer_branch
    %8 = sbr.rel target = $region3
  $region8: #{hybrid_voxel_neural_field.1} parent=0 // loop_exit
    _

</llo_original>
